<compile_context>
chip_gen: v5e
topology: v5e:2x2
jax: 0.10.0
libtpu: 0.0.40
codegen_flags: <defaults>
</compile_context>

<pallas_src>
import numpy as np
import jax
import jax.numpy as jnp
from jax import lax
from jax.experimental import pallas as pl
from jax.experimental.pallas import tpu as pltpu

LANE = 128
WEIGHT_DTYPE = jnp.bfloat16   # weights fed to the MXU
ACT_DTYPE = jnp.bfloat16      # gx and inter-layer hidden sequences (HBM traffic)


# ------------------------------- small helpers -------------------------------
def _round_up(n, m):
    return ((n + m - 1) // m) * m


def _vmem_cap_bytes():
    # Physical VMEM minus headroom for compiler-internal scratch / semaphores.
    try:
        cap = int(pltpu.get_tpu_info().vmem_capacity_bytes)
        return max(cap - (16 << 20), 32 << 20)
    except Exception:
        return 48 << 20          # safe on every generation (v7x: 64 MiB/TC)


def _vmem_limit(est_bytes):
    return int(min(max(est_bytes + (4 << 20), 8 << 20), _vmem_cap_bytes()))


def _num_tensorcores():
    # v7x exposes 2 TensorCores behind one device; v5e/v6e have 1.
    try:
        kind = (jax.devices()[0].device_kind or "").lower()
        if "v7" in kind or "7x" in kind:
            return 2
    except Exception:
        pass
    return 1


def _resident_spec(block_shape, index_map):
    """BlockSpec for a block whose index_map is constant (resident weight/bias):
    single-buffer it so we don't double-buffer a tensor that never changes."""
    if hasattr(pl, "Buffered"):
        try:
            return pl.BlockSpec(block_shape, index_map, pipeline_mode=pl.Buffered(1))
        except TypeError:
            pass
    return pl.BlockSpec(block_shape, index_map)


def _choose_time_chunk(t):
    best = 1
    for tc in range(1, min(t, 32) + 1):
        if t % tc == 0:
            best = tc
    return best


def _choose_batch_tile(b, num_tc):
    # Split only when a second TensorCore exists AND each half stays sublane-full.
    if num_tc >= 2 and b % 16 == 0:
        return b // 2
    return b


# --------------------------- input-projection kernel --------------------------
def gate_proj_kernel(x_ref, w_ref, b_ref, o_ref):
    # (tm, D) @ (D, tn) + bias, f32 accumulation, bf16 store.
    acc = jnp.dot(x_ref[...].astype(w_ref.dtype), w_ref[...],
                  preferred_element_type=jnp.float32) + b_ref[...]
    o_ref[...] = acc.astype(o_ref.dtype)


def gate_proj(x2d, wT, bias_row, out_dtype=ACT_DTYPE):
    m, d = x2d.shape
    g = wT.shape[1]
    # Robust M tiling: pad M up to the tile size instead of emitting one giant block.
    tm = 512 if m >= 512 else _round_up(m, 8)
    mp = _round_up(m, tm)
    if mp != m:
        x2d = jnp.pad(x2d, ((0, mp - m), (0, 0)))
    # N-tile 4*Hp for very large Hp so resident weight + f32 tiles stay inside VMEM.
    tn = g if g <= 4096 else (g // 4)            # g = 4*Hp, Hp % 128 == 0
    n_res = (g == tn)
    w_spec = (_resident_spec((d, tn), lambda i, j: (0, 0)) if n_res
              else pl.BlockSpec((d, tn), lambda i, j: (0, j)))
    b_spec = (_resident_spec((1, tn), lambda i, j: (0, 0)) if n_res
              else pl.BlockSpec((1, tn), lambda i, j: (0, j)))
    est = (2 * tm * d * 4 + 2 * tm * tn * 4
           + d * tn * wT.dtype.itemsize * (1 if n_res else 2) + 2 * tn * 4)
    out = pl.pallas_call(
        gate_proj_kernel,
        out_shape=jax.ShapeDtypeStruct((mp, g), out_dtype),
        grid_spec=pltpu.PrefetchScalarGridSpec(
            num_scalar_prefetch=0,
            grid=(mp // tm, g // tn),
            in_specs=[pl.BlockSpec((tm, d), lambda i, j: (i, 0)), w_spec, b_spec],
            out_specs=pl.BlockSpec((tm, tn), lambda i, j: (i, j)),
        ),
        compiler_params=pltpu.CompilerParams(
            dimension_semantics=("parallel", "parallel"),
            vmem_limit_bytes=_vmem_limit(est)),
    )(x2d, wT, bias_row)
    return out if mp == m else out[:m]


# ----------------------------- recurrent kernels ------------------------------
def _lstm_steps(gx_ref, whh_ref, h_scr, c_scr, out_ref=None):
    """Run the Tc timesteps of this block; h/c carried through the fori_loop and
    persisted in VMEM scratch across grid steps. Partial unroll keeps LLO
    visibility without the vreg-pressure cliff of fully unrolling 32 steps."""
    tc = gx_ref.shape[0]
    hp = h_scr.shape[1]

    def step(t, carry):
        h, c = carry
        gates = (gx_ref[t].astype(jnp.float32)
                 + jnp.dot(h.astype(whh_ref.dtype), whh_ref[...],
                           preferred_element_type=jnp.float32))
        # Gate slices are 128-lane aligned (each gate occupies hp = k*128 lanes).
        i_g = jax.nn.sigmoid(gates[:, 0 * hp:1 * hp])
        f_g = jax.nn.sigmoid(gates[:, 1 * hp:2 * hp])
        g_g = jnp.tanh(gates[:, 2 * hp:3 * hp])
        o_g = jax.nn.sigmoid(gates[:, 3 * hp:4 * hp])
        c_new = f_g * c + i_g * g_g
        h_new = o_g * jnp.tanh(c_new)
        if out_ref is not None:
            out_ref[t] = h_new.astype(out_ref.dtype)
        return h_new, c_new

    h_fin, c_fin = lax.fori_loop(0, tc, step, (h_scr[...], c_scr[...]),
                                 unroll=min(tc, 8))
    h_scr[...] = h_fin
    c_scr[...] = c_fin
    return h_fin


def lstm_seq_kernel(gx_ref, whh_ref, out_ref, h_scr, c_scr):
    @pl.when(pl.program_id(1) == 0)          # first time-chunk of this batch tile
    def _():
        h_scr[...] = jnp.zeros_like(h_scr)
        c_scr[...] = jnp.zeros_like(c_scr)

    _lstm_steps(gx_ref, whh_ref, h_scr, c_scr, out_ref)


def lstm_final_kernel(gx_ref, whh_ref, fcw_ref, fcb_ref, out_ref, h_scr, c_scr):
    c_idx = pl.program_id(1)

    @pl.when(c_idx == 0)
    def _():
        h_scr[...] = jnp.zeros_like(h_scr)
        c_scr[...] = jnp.zeros_like(c_scr)

    h_last = _lstm_steps(gx_ref, whh_ref, h_scr, c_scr, out_ref=None)

    # Fused Linear head: only fc(h_{T-1}) is ever written to HBM for this layer.
    @pl.when(c_idx == pl.num_programs(1) - 1)
    def _():
        out_ref[...] = (
            jnp.dot(h_last.astype(fcw_ref.dtype), fcw_ref[...],
                    preferred_element_type=jnp.float32)
            + fcb_ref[...])


def lstm_layer_seq(gx, whhT, *, tc, bt):
    t, b, g = gx.shape
    hp = whhT.shape[0]
    nb, nc = b // bt, t // tc
    est = (2 * tc * bt * g * gx.dtype.itemsize            # gx stream (double buffered)
           + 2 * tc * bt * hp * 2                         # bf16 hidden output
           + whhT.size * whhT.dtype.itemsize              # single-buffered weight
           + 2 * bt * hp * 4 * 2)                         # h/c scratch
    return pl.pallas_call(
        lstm_seq_kernel,
        out_shape=jax.ShapeDtypeStruct((t, b, hp), ACT_DTYPE),
        grid_spec=pltpu.PrefetchScalarGridSpec(
            num_scalar_prefetch=0,
            grid=(nb, nc),                                    # (batch tiles, time chunks)
            in_specs=[
                pl.BlockSpec((tc, bt, g), lambda bi, ci: (ci, bi, 0)),
                _resident_spec((hp, g), lambda bi, ci: (0, 0)),   # resident W_hh^T (bf16)
            ],
            out_specs=pl.BlockSpec((tc, bt, hp), lambda bi, ci: (ci, bi, 0)),
            scratch_shapes=[pltpu.VMEM((bt, hp), jnp.float32),   # h carry
                            pltpu.VMEM((bt, hp), jnp.float32)],  # c carry
        ),
        compiler_params=pltpu.CompilerParams(
            dimension_semantics=("parallel", "arbitrary"),
            vmem_limit_bytes=_vmem_limit(est)),
    )(gx, whhT)


def lstm_layer_final(gx, whhT, fc_wT, fc_b, *, tc, bt):
    t, b, g = gx.shape
    hp = whhT.shape[0]
    o = fc_wT.shape[1]
    nb, nc = b // bt, t // tc
    est = (2 * tc * bt * g * gx.dtype.itemsize + 2 * bt * o * 4
           + whhT.size * whhT.dtype.itemsize
           + fc_wT.size * fc_wT.dtype.itemsize
           + 2 * bt * hp * 4 * 2 + 2 * o * 4)
    return pl.pallas_call(
        lstm_final_kernel,
        out_shape=jax.ShapeDtypeStruct((b, o), jnp.float32),
        grid_spec=pltpu.PrefetchScalarGridSpec(
            num_scalar_prefetch=0,
            grid=(nb, nc),
            in_specs=[
                pl.BlockSpec((tc, bt, g), lambda bi, ci: (ci, bi, 0)),
                _resident_spec((hp, g), lambda bi, ci: (0, 0)),   # resident W_hh^T
                _resident_spec((hp, o), lambda bi, ci: (0, 0)),   # resident fc W^T
                _resident_spec((1, o), lambda bi, ci: (0, 0)),    # fc bias
            ],
            out_specs=pl.BlockSpec((bt, o), lambda bi, ci: (bi, 0)),
            scratch_shapes=[pltpu.VMEM((bt, hp), jnp.float32),
                            pltpu.VMEM((bt, hp), jnp.float32)],
        ),
        compiler_params=pltpu.CompilerParams(
            dimension_semantics=("parallel", "arbitrary"),
            vmem_limit_bytes=_vmem_limit(est)),
    )(gx, whhT, fc_wT, fc_b)


# ----------------------- parameter init & kernel packing ----------------------
def init_params(key, input_dim, hidden_dim, num_layers, output_dim):
    """PyTorch-layout params (uniform +/- 1/sqrt(H)), f32."""
    params = {"layers": []}
    bound = 1.0 / np.sqrt(hidden_dim)
    for layer in range(num_layers):
        d_in = input_dim if layer == 0 else hidden_dim
        key, k1, k2, k3, k4 = jax.random.split(key, 5)
        w_ih = jax.random.uniform(k1, (4 * hidden_dim, d_in), jnp.float32, -bound, bound)
        w_hh = jax.random.uniform(k2, (4 * hidden_dim, hidden_dim), jnp.float32, -bound, bound)
        b_ih = jax.random.uniform(k3, (4 * hidden_dim,), jnp.float32, -bound, bound)
        b_hh = jax.random.uniform(k4, (4 * hidden_dim,), jnp.float32, -bound, bound)
        params["layers"].append((w_ih, w_hh, b_ih, b_hh))
    key, k5, k6 = jax.random.split(key, 3)
    params["fc_w"] = jax.random.uniform(k5, (output_dim, hidden_dim), jnp.float32, -bound, bound)
    params["fc_b"] = jax.random.uniform(k6, (output_dim,), jnp.float32, -bound, bound)
    return params


def _pack_gate_cols(w, hp):
    """(4H, Din) -> transposed (Din, 4*hp); gate k's columns start at k*hp (128-aligned)."""
    w = np.asarray(w, np.float32)
    h = w.shape[0] // 4
    wt = w.T
    out = np.zeros((wt.shape[0], 4 * hp), np.float32)
    for k in range(4):
        out[:, k * hp:k * hp + h] = wt[:, k * h:(k + 1) * h]
    return out


def _pack_gate_vec(v, hp):
    v = np.asarray(v, np.float32)
    h = v.shape[0] // 4
    out = np.zeros((1, 4 * hp), np.float32)
    for k in range(4):
        out[0, k * hp:k * hp + h] = v[k * h:(k + 1) * h]
    return out


def _pad_rows(a, rows):
    if a.shape[0] == rows:
        return a
    out = np.zeros((rows, a.shape[1]), a.dtype)
    out[:a.shape[0]] = a
    return out


def prepare_params(params, hidden_dim):
    """One-time: transpose, gate-pack to 128-lane boundaries, pre-sum biases, cast
    weights to bf16.  Padded hidden lanes carry exact zeros end to end."""
    hp = _round_up(hidden_dim, LANE)
    layers = []
    for idx, (w_ih, w_hh, b_ih, b_hh) in enumerate(params["layers"]):
        wihT = _pack_gate_cols(w_ih, hp)                       # (Din, 4hp)
        if idx > 0:                                            # input is padded h
            wihT = _pad_rows(wihT, hp)
        whhT = _pad_rows(_pack_gate_cols(w_hh, hp), hp)        # (hp, 4hp)
        bias = _pack_gate_vec(np.asarray(b_ih) + np.asarray(b_hh), hp)
        layers.append((jnp.asarray(wihT, WEIGHT_DTYPE),
                       jnp.asarray(whhT, WEIGHT_DTYPE),
                       jnp.asarray(bias, jnp.float32)))
    fc_wT = _pad_rows(np.asarray(params["fc_w"], np.float32).T, hp)   # (hp, O)
    fc_b = np.asarray(params["fc_b"], np.float32).reshape(1, -1)
    return {"layers": layers,
            "fc_wT": jnp.asarray(fc_wT, WEIGHT_DTYPE),
            "fc_b": jnp.asarray(fc_b, jnp.float32)}


# --------------------------------- full model ---------------------------------
_NUM_TC = _num_tensorcores()


@jax.jit
def lstm_model(x_btd, kp):
    """x_btd: (B, T, input_dim), batch_first like the PyTorch module."""
    x = jnp.transpose(x_btd, (1, 0, 2)).astype(jnp.float32)    # (T, B, D) time-major
    t, b, _ = x.shape
    tc = _choose_time_chunk(t)
    bt = _choose_batch_tile(b, _NUM_TC)
    n_layers = len(kp["layers"])
    out = None
    for idx, (wihT, whhT, bias) in enumerate(kp["layers"]):
        d_in, g = wihT.shape
        # Hoisted x-projection over the whole sequence: one (T*B, D) x (D, 4Hp) matmul.
        # TODO(synk): for Hp small enough to keep W_ih^T + W_hh^T resident, fuse this
        # matmul into the recurrent kernel to drop the gx HBM round-trip entirely.
        gx = gate_proj(x.reshape(t * b, d_in), wihT, bias).reshape(t, b, g)
        if idx + 1 < n_layers:
            x = lstm_layer_seq(gx, whhT, tc=tc, bt=bt)          # (T, B, Hp) bf16
        else:
            out = lstm_layer_final(gx, whhT, kp["fc_wT"], kp["fc_b"], tc=tc, bt=bt)
    return out                                                  # (B, output_dim) f32


# ------------------------------ pure-JAX reference ----------------------------
def lstm_ref(x_btd, params):
    B, T, _ = x_btd.shape
    h_seq = x_btd.astype(jnp.float32)
    for (w_ih, w_hh, b_ih, b_hh) in params["layers"]:
        H = w_hh.shape[1]
        h = jnp.zeros((B, H), jnp.float32)
        c = jnp.zeros((B, H), jnp.float32)
        outs = []
        for t in range(T):
            g = h_seq[:, t, :] @ w_ih.T + h @ w_hh.T + b_ih + b_hh
            i = jax.nn.sigmoid(g[:, 0 * H:1 * H])
            f = jax.nn.sigmoid(g[:, 1 * H:2 * H])
            gg = jnp.tanh(g[:, 2 * H:3 * H])
            o = jax.nn.sigmoid(g[:, 3 * H:4 * H])
            c = f * c + i * gg
            h = o * jnp.tanh(c)
            outs.append(h)
        h_seq = jnp.stack(outs, axis=1)
    return h_seq[:, -1, :] @ params["fc_w"].T + params["fc_b"]


if __name__ == "__main__":
    B, T, INPUT_DIM, HIDDEN_DIM, NUM_LAYERS, OUTPUT_DIM = 2, 8, 16, 32, 2, 4

    key = jax.random.PRNGKey(0)
    key, kx = jax.random.split(key)
    x = jax.random.normal(kx, (B, T, INPUT_DIM), jnp.float32)
    params = init_params(key, INPUT_DIM, HIDDEN_DIM, NUM_LAYERS, OUTPUT_DIM)
    kparams = prepare_params(params, HIDDEN_DIM)

    out = jax.block_until_ready(lstm_model(x, kparams))

    # Tolerance accounts for bf16 weights + bf16 gx / inter-layer hidden
    # (all accumulation and gate math in float32).
    ref = lstm_ref(x, params)
    np.testing.assert_allclose(np.asarray(out), np.asarray(ref), atol=4e-2, rtol=4e-2)

    assert out.shape == (B, OUTPUT_DIM)
    print("KERNEL_OK")
</pallas_src>

<mosaic_0001>
module attributes {stable_mosaic.version = 11 : i64} {
  func.func @gate_proj_kernel(%arg0: i32, %arg1: i32, %arg2: memref<16x16xf32, #tpu.memory_space<vmem>>, %arg3: memref<16x512xbf16, #tpu.memory_space<vmem>>, %arg4: memref<1x512xf32, #tpu.memory_space<vmem>>, %arg5: memref<16x512xbf16, #tpu.memory_space<vmem>>) attributes {dimension_semantics = [#tpu.dimension_semantics<parallel>, #tpu.dimension_semantics<parallel>], iteration_bounds = array<i64: 1, 1>, scalar_prefetch = 0 : i64, scratch_operands = 0 : i64, tpu.core_type = #tpu.core_type<tc>, window_params = [{transform_indices = @transform_0, window_bounds = array<i64: 16, 16>}, {pipeline_mode = #tpu.pipeline_mode<synchronous>, transform_indices = @transform_1, window_bounds = array<i64: 16, 512>}, {pipeline_mode = #tpu.pipeline_mode<synchronous>, transform_indices = @transform_2, window_bounds = array<i64: 1, 512>}, {transform_indices = @transform_3, window_bounds = array<i64: 16, 512>}]} {
    %c0 = arith.constant 0 : index
    %c0_0 = arith.constant 0 : index
    %0 = vector.load %arg2[%c0, %c0_0] : memref<16x16xf32, #tpu.memory_space<vmem>>, vector<16x16xf32>
    %1 = arith.truncf %0 : vector<16x16xf32> to vector<16x16xbf16>
    %c0_1 = arith.constant 0 : index
    %c0_2 = arith.constant 0 : index
    %2 = vector.load %arg3[%c0_1, %c0_2] : memref<16x512xbf16, #tpu.memory_space<vmem>>, vector<16x512xbf16>
    %cst = arith.constant dense<0.000000e+00> : vector<16x512xf32>
    %3 = tpu.matmul %1, %2, %cst {dimension_numbers = #tpu.dot_dimension_numbers<[1], [0], [0], [1], [0, 0, 1, 1], [], []>} : vector<16x16xbf16>, vector<16x512xbf16>, vector<16x512xf32> -> vector<16x512xf32>
    %c0_3 = arith.constant 0 : index
    %c0_4 = arith.constant 0 : index
    %4 = vector.load %arg4[%c0_3, %c0_4] : memref<1x512xf32, #tpu.memory_space<vmem>>, vector<1x512xf32>
    %5 = vector.broadcast %4 : vector<1x512xf32> to vector<16x512xf32>
    %6 = arith.addf %3, %5 : vector<16x512xf32>
    %7 = arith.truncf %6 : vector<16x512xf32> to vector<16x512xbf16>
    %c0_5 = arith.constant 0 : index
    %c0_6 = arith.constant 0 : index
    %8 = vector.load %arg5[%c0_5, %c0_6] : memref<16x512xbf16, #tpu.memory_space<vmem>>, vector<16x512xbf16>
    tpu.vector_store %arg5[%c0_5, %c0_6], %7 {strides = array<i32>} : memref<16x512xbf16, #tpu.memory_space<vmem>>, vector<16x512xbf16>,
    return
  }
  func.func @transform_0(%arg0: i32, %arg1: i32) -> (i32, i32) {
    %c0_i32 = arith.constant 0 : i32
    %c0_i32_0 = arith.constant 0 : i32
    return %arg0, %c0_i32 : i32, i32
  }
  func.func @transform_1(%arg0: i32, %arg1: i32) -> (i32, i32) {
    %c0_i32 = arith.constant 0 : i32
    %c0_i32_0 = arith.constant 0 : i32
    %c0_i32_1 = arith.constant 0 : i32
    return %c0_i32, %c0_i32_0 : i32, i32
  }
  func.func @transform_2(%arg0: i32, %arg1: i32) -> (i32, i32) {
    %c0_i32 = arith.constant 0 : i32
    %c0_i32_0 = arith.constant 0 : i32
    %c0_i32_1 = arith.constant 0 : i32
    return %c0_i32, %c0_i32_0 : i32, i32
  }
  func.func @transform_3(%arg0: i32, %arg1: i32) -> (i32, i32) {
    %c0_i32 = arith.constant 0 : i32
    return %arg0, %arg1 : i32, i32
  }
}

module attributes {stable_mosaic.version = 11 : i64} {
  func.func @lstm_seq_kernel(%arg0: i32, %arg1: i32, %arg2: memref<8x2x512xbf16, #tpu.memory_space<vmem>>, %arg3: memref<128x512xbf16, #tpu.memory_space<vmem>>, %arg4: memref<8x2x128xbf16, #tpu.memory_space<vmem>>, %arg5: memref<2x128xf32, #tpu.memory_space<vmem>>, %arg6: memref<2x128xf32, #tpu.memory_space<vmem>>) attributes {dimension_semantics = [#tpu.dimension_semantics<parallel>, #tpu.dimension_semantics<arbitrary>], iteration_bounds = array<i64: 1, 1>, scalar_prefetch = 0 : i64, scratch_operands = 2 : i64, tpu.core_type = #tpu.core_type<tc>, window_params = [{transform_indices = @transform_0, window_bounds = array<i64: 8, 2, 512>}, {pipeline_mode = #tpu.pipeline_mode<synchronous>, transform_indices = @transform_1, window_bounds = array<i64: 128, 512>}, {transform_indices = @transform_2, window_bounds = array<i64: 8, 2, 128>}]} {
    %c0_i32 = arith.constant 0 : i32
    %0 = arith.cmpi eq, %arg1, %c0_i32 : i32
    %1 = arith.extui %0 : i1 to i32
    %c0_i32_0 = arith.constant 0 : i32
    %2 = arith.cmpi ne, %1, %c0_i32_0 : i32
    scf.if %2 {
      %cst_88 = arith.constant 0.000000e+00 : f32
      %311 = vector.broadcast %cst_88 : f32 to vector<2x128xf32>
      %c0_89 = arith.constant 0 : index
      %c0_90 = arith.constant 0 : index
      %312 = vector.load %arg5[%c0_89, %c0_90] : memref<2x128xf32, #tpu.memory_space<vmem>>, vector<2x128xf32>
      tpu.vector_store %arg5[%c0_89, %c0_90], %311 {strides = array<i32>} : memref<2x128xf32, #tpu.memory_space<vmem>>, vector<2x128xf32>,
      %cst_91 = arith.constant 0.000000e+00 : f32
      %313 = vector.broadcast %cst_91 : f32 to vector<2x128xf32>
      %c0_92 = arith.constant 0 : index
      %c0_93 = arith.constant 0 : index
      %314 = vector.load %arg6[%c0_92, %c0_93] : memref<2x128xf32, #tpu.memory_space<vmem>>, vector<2x128xf32>
      tpu.vector_store %arg6[%c0_92, %c0_93], %313 {strides = array<i32>} : memref<2x128xf32, #tpu.memory_space<vmem>>, vector<2x128xf32>,
    } else {
    }
    %c0 = arith.constant 0 : index
    %c0_1 = arith.constant 0 : index
    %3 = vector.load %arg5[%c0, %c0_1] : memref<2x128xf32, #tpu.memory_space<vmem>>, vector<2x128xf32>
    %c0_2 = arith.constant 0 : index
    %c0_3 = arith.constant 0 : index
    %4 = vector.load %arg6[%c0_2, %c0_3] : memref<2x128xf32, #tpu.memory_space<vmem>>, vector<2x128xf32>
    %c0_i32_4 = arith.constant 0 : i32
    %5 = arith.index_cast %c0_i32_4 : i32 to index
    %c0_5 = arith.constant 0 : index
    %c0_6 = arith.constant 0 : index
    %6 = vector.load %arg2[%5, %c0_5, %c0_6] : memref<8x2x512xbf16, #tpu.memory_space<vmem>>, vector<1x2x512xbf16>
    %7 = vector.shape_cast %6 : vector<1x2x512xbf16> to vector<2x512xbf16>
    %8 = arith.extf %7 : vector<2x512xbf16> to vector<2x512xf32>
    %9 = arith.truncf %3 : vector<2x128xf32> to vector<2x128xbf16>
    %c0_7 = arith.constant 0 : index
    %c0_8 = arith.constant 0 : index
    %10 = vector.load %arg3[%c0_7, %c0_8] : memref<128x512xbf16, #tpu.memory_space<vmem>>, vector<128x512xbf16>
    %cst = arith.constant dense<0.000000e+00> : vector<2x512xf32>
    %11 = tpu.matmul %9, %10, %cst {dimension_numbers = #tpu.dot_dimension_numbers<[1], [0], [0], [1], [0, 0, 1, 1], [], []>} : vector<2x128xbf16>, vector<128x512xbf16>, vector<2x512xf32> -> vector<2x512xf32>
    %12 = arith.addf %8, %11 : vector<2x512xf32>
    %13 = vector.extract_strided_slice %12 {offsets = [0, 0], sizes = [2, 128], strides = [1, 1]} : vector<2x512xf32> to vector<2x128xf32>
    %14 = arith.negf %13 : vector<2x128xf32>
    %15 = math.exp %14 : vector<2x128xf32>
    %cst_9 = arith.constant 1.000000e+00 : f32
    %16 = vector.broadcast %cst_9 : f32 to vector<2x128xf32>
    %17 = arith.addf %16, %15 : vector<2x128xf32>
    %18 = arith.divf %16, %17 : vector<2x128xf32>
    %19 = vector.extract_strided_slice %12 {offsets = [0, 128], sizes = [2, 128], strides = [1, 1]} : vector<2x512xf32> to vector<2x128xf32>
    %20 = arith.negf %19 : vector<2x128xf32>
    %21 = math.exp %20 : vector<2x128xf32>
    %cst_10 = arith.constant 1.000000e+00 : f32
    %22 = vector.broadcast %cst_10 : f32 to vector<2x128xf32>
    %23 = arith.addf %22, %21 : vector<2x128xf32>
    %24 = arith.divf %22, %23 : vector<2x128xf32>
    %25 = vector.extract_strided_slice %12 {offsets = [0, 256], sizes = [2, 128], strides = [1, 1]} : vector<2x512xf32> to vector<2x128xf32>
    %26 = math.tanh %25 : vector<2x128xf32>
    %27 = vector.extract_strided_slice %12 {offsets = [0, 384], sizes = [2, 128], strides = [1, 1]} : vector<2x512xf32> to vector<2x128xf32>
    %28 = arith.negf %27 : vector<2x128xf32>
    %29 = math.exp %28 : vector<2x128xf32>
    %cst_11 = arith.constant 1.000000e+00 : f32
    %30 = vector.broadcast %cst_11 : f32 to vector<2x128xf32>
    %31 = arith.addf %30, %29 : vector<2x128xf32>
    %32 = arith.divf %30, %31 : vector<2x128xf32>
    %33 = arith.mulf %24, %4 : vector<2x128xf32>
    %34 = arith.mulf %18, %26 : vector<2x128xf32>
    %35 = arith.addf %33, %34 : vector<2x128xf32>
    %36 = math.tanh %35 : vector<2x128xf32>
    %37 = arith.mulf %32, %36 : vector<2x128xf32>
    %38 = arith.truncf %37 : vector<2x128xf32> to vector<2x128xbf16>
    %39 = arith.index_cast %c0_i32_4 : i32 to index
    %c0_12 = arith.constant 0 : index
    %c0_13 = arith.constant 0 : index
    %40 = vector.load %arg4[%39, %c0_12, %c0_13] : memref<8x2x128xbf16, #tpu.memory_space<vmem>>, vector<1x2x128xbf16>
    %41 = vector.shape_cast %40 : vector<1x2x128xbf16> to vector<2x128xbf16>
    %42 = vector.shape_cast %38 : vector<2x128xbf16> to vector<1x2x128xbf16>
    tpu.vector_store %arg4[%39, %c0_12, %c0_13], %42 {strides = array<i32>} : memref<8x2x128xbf16, #tpu.memory_space<vmem>>, vector<1x2x128xbf16>,
    %c1_i32 = arith.constant 1 : i32
    %43 = arith.index_cast %c1_i32 : i32 to index
    %c0_14 = arith.constant 0 : index
    %c0_15 = arith.constant 0 : index
    %44 = vector.load %arg2[%43, %c0_14, %c0_15] : memref<8x2x512xbf16, #tpu.memory_space<vmem>>, vector<1x2x512xbf16>
    %45 = vector.shape_cast %44 : vector<1x2x512xbf16> to vector<2x512xbf16>
    %46 = arith.extf %45 : vector<2x512xbf16> to vector<2x512xf32>
    %47 = arith.truncf %37 : vector<2x128xf32> to vector<2x128xbf16>
    %c0_16 = arith.constant 0 : index
    %c0_17 = arith.constant 0 : index
    %48 = vector.load %arg3[%c0_16, %c0_17] : memref<128x512xbf16, #tpu.memory_space<vmem>>, vector<128x512xbf16>
    %cst_18 = arith.constant dense<0.000000e+00> : vector<2x512xf32>
    %49 = tpu.matmul %47, %48, %cst_18 {dimension_numbers = #tpu.dot_dimension_numbers<[1], [0], [0], [1], [0, 0, 1, 1], [], []>} : vector<2x128xbf16>, vector<128x512xbf16>, vector<2x512xf32> -> vector<2x512xf32>
    %50 = arith.addf %46, %49 : vector<2x512xf32>
    %51 = vector.extract_strided_slice %50 {offsets = [0, 0], sizes = [2, 128], strides = [1, 1]} : vector<2x512xf32> to vector<2x128xf32>
    %52 = arith.negf %51 : vector<2x128xf32>
    %53 = math.exp %52 : vector<2x128xf32>
    %cst_19 = arith.constant 1.000000e+00 : f32
    %54 = vector.broadcast %cst_19 : f32 to vector<2x128xf32>
    %55 = arith.addf %54, %53 : vector<2x128xf32>
    %56 = arith.divf %54, %55 : vector<2x128xf32>
    %57 = vector.extract_strided_slice %50 {offsets = [0, 128], sizes = [2, 128], strides = [1, 1]} : vector<2x512xf32> to vector<2x128xf32>
    %58 = arith.negf %57 : vector<2x128xf32>
    %59 = math.exp %58 : vector<2x128xf32>
    %cst_20 = arith.constant 1.000000e+00 : f32
    %60 = vector.broadcast %cst_20 : f32 to vector<2x128xf32>
    %61 = arith.addf %60, %59 : vector<2x128xf32>
    %62 = arith.divf %60, %61 : vector<2x128xf32>
    %63 = vector.extract_strided_slice %50 {offsets = [0, 256], sizes = [2, 128], strides = [1, 1]} : vector<2x512xf32> to vector<2x128xf32>
    %64 = math.tanh %63 : vector<2x128xf32>
    %65 = vector.extract_strided_slice %50 {offsets = [0, 384], sizes = [2, 128], strides = [1, 1]} : vector<2x512xf32> to vector<2x128xf32>
    %66 = arith.negf %65 : vector<2x128xf32>
    %67 = math.exp %66 : vector<2x128xf32>
    %cst_21 = arith.constant 1.000000e+00 : f32
    %68 = vector.broadcast %cst_21 : f32 to vector<2x128xf32>
    %69 = arith.addf %68, %67 : vector<2x128xf32>
    %70 = arith.divf %68, %69 : vector<2x128xf32>
    %71 = arith.mulf %62, %35 : vector<2x128xf32>
    %72 = arith.mulf %56, %64 : vector<2x128xf32>
    %73 = arith.addf %71, %72 : vector<2x128xf32>
    %74 = math.tanh %73 : vector<2x128xf32>
    %75 = arith.mulf %70, %74 : vector<2x128xf32>
    %76 = arith.truncf %75 : vector<2x128xf32> to vector<2x128xbf16>
    %77 = arith.index_cast %c1_i32 : i32 to index
    %c0_22 = arith.constant 0 : index
    %c0_23 = arith.constant 0 : index
    %78 = vector.load %arg4[%77, %c0_22, %c0_23] : memref<8x2x128xbf16, #tpu.memory_space<vmem>>, vector<1x2x128xbf16>
    %79 = vector.shape_cast %78 : vector<1x2x128xbf16> to vector<2x128xbf16>
    %80 = vector.shape_cast %76 : vector<2x128xbf16> to vector<1x2x128xbf16>
    tpu.vector_store %arg4[%77, %c0_22, %c0_23], %80 {strides = array<i32>} : memref<8x2x128xbf16, #tpu.memory_space<vmem>>, vector<1x2x128xbf16>,
    %c2_i32 = arith.constant 2 : i32
    %81 = arith.index_cast %c2_i32 : i32 to index
    %c0_24 = arith.constant 0 : index
    %c0_25 = arith.constant 0 : index
    %82 = vector.load %arg2[%81, %c0_24, %c0_25] : memref<8x2x512xbf16, #tpu.memory_space<vmem>>, vector<1x2x512xbf16>
    %83 = vector.shape_cast %82 : vector<1x2x512xbf16> to vector<2x512xbf16>
    %84 = arith.extf %83 : vector<2x512xbf16> to vector<2x512xf32>
    %85 = arith.truncf %75 : vector<2x128xf32> to vector<2x128xbf16>
    %c0_26 = arith.constant 0 : index
    %c0_27 = arith.constant 0 : index
    %86 = vector.load %arg3[%c0_26, %c0_27] : memref<128x512xbf16, #tpu.memory_space<vmem>>, vector<128x512xbf16>
    %cst_28 = arith.constant dense<0.000000e+00> : vector<2x512xf32>
    %87 = tpu.matmul %85, %86, %cst_28 {dimension_numbers = #tpu.dot_dimension_numbers<[1], [0], [0], [1], [0, 0, 1, 1], [], []>} : vector<2x128xbf16>, vector<128x512xbf16>, vector<2x512xf32> -> vector<2x512xf32>
    %88 = arith.addf %84, %87 : vector<2x512xf32>
    %89 = vector.extract_strided_slice %88 {offsets = [0, 0], sizes = [2, 128], strides = [1, 1]} : vector<2x512xf32> to vector<2x128xf32>
    %90 = arith.negf %89 : vector<2x128xf32>
    %91 = math.exp %90 : vector<2x128xf32>
    %cst_29 = arith.constant 1.000000e+00 : f32
    %92 = vector.broadcast %cst_29 : f32 to vector<2x128xf32>
    %93 = arith.addf %92, %91 : vector<2x128xf32>
    %94 = arith.divf %92, %93 : vector<2x128xf32>
    %95 = vector.extract_strided_slice %88 {offsets = [0, 128], sizes = [2, 128], strides = [1, 1]} : vector<2x512xf32> to vector<2x128xf32>
    %96 = arith.negf %95 : vector<2x128xf32>
    %97 = math.exp %96 : vector<2x128xf32>
    %cst_30 = arith.constant 1.000000e+00 : f32
    %98 = vector.broadcast %cst_30 : f32 to vector<2x128xf32>
    %99 = arith.addf %98, %97 : vector<2x128xf32>
    %100 = arith.divf %98, %99 : vector<2x128xf32>
    %101 = vector.extract_strided_slice %88 {offsets = [0, 256], sizes = [2, 128], strides = [1, 1]} : vector<2x512xf32> to vector<2x128xf32>
    %102 = math.tanh %101 : vector<2x128xf32>
    %103 = vector.extract_strided_slice %88 {offsets = [0, 384], sizes = [2, 128], strides = [1, 1]} : vector<2x512xf32> to vector<2x128xf32>
    %104 = arith.negf %103 : vector<2x128xf32>
    %105 = math.exp %104 : vector<2x128xf32>
    %cst_31 = arith.constant 1.000000e+00 : f32
    %106 = vector.broadcast %cst_31 : f32 to vector<2x128xf32>
    %107 = arith.addf %106, %105 : vector<2x128xf32>
    %108 = arith.divf %106, %107 : vector<2x128xf32>
    %109 = arith.mulf %100, %73 : vector<2x128xf32>
    %110 = arith.mulf %94, %102 : vector<2x128xf32>
    %111 = arith.addf %109, %110 : vector<2x128xf32>
    %112 = math.tanh %111 : vector<2x128xf32>
    %113 = arith.mulf %108, %112 : vector<2x128xf32>
    %114 = arith.truncf %113 : vector<2x128xf32> to vector<2x128xbf16>
    %115 = arith.index_cast %c2_i32 : i32 to index
    %c0_32 = arith.constant 0 : index
    %c0_33 = arith.constant 0 : index
    %116 = vector.load %arg4[%115, %c0_32, %c0_33] : memref<8x2x128xbf16, #tpu.memory_space<vmem>>, vector<1x2x128xbf16>
    %117 = vector.shape_cast %116 : vector<1x2x128xbf16> to vector<2x128xbf16>
    %118 = vector.shape_cast %114 : vector<2x128xbf16> to vector<1x2x128xbf16>
    tpu.vector_store %arg4[%115, %c0_32, %c0_33], %118 {strides = array<i32>} : memref<8x2x128xbf16, #tpu.memory_space<vmem>>, vector<1x2x128xbf16>,
    %c3_i32 = arith.constant 3 : i32
    %119 = arith.index_cast %c3_i32 : i32 to index
    %c0_34 = arith.constant 0 : index
    %c0_35 = arith.constant 0 : index
    %120 = vector.load %arg2[%119, %c0_34, %c0_35] : memref<8x2x512xbf16, #tpu.memory_space<vmem>>, vector<1x2x512xbf16>
    %121 = vector.shape_cast %120 : vector<1x2x512xbf16> to vector<2x512xbf16>
    %122 = arith.extf %121 : vector<2x512xbf16> to vector<2x512xf32>
    %123 = arith.truncf %113 : vector<2x128xf32> to vector<2x128xbf16>
    %c0_36 = arith.constant 0 : index
    %c0_37 = arith.constant 0 : index
    %124 = vector.load %arg3[%c0_36, %c0_37] : memref<128x512xbf16, #tpu.memory_space<vmem>>, vector<128x512xbf16>
    %cst_38 = arith.constant dense<0.000000e+00> : vector<2x512xf32>
    %125 = tpu.matmul %123, %124, %cst_38 {dimension_numbers = #tpu.dot_dimension_numbers<[1], [0], [0], [1], [0, 0, 1, 1], [], []>} : vector<2x128xbf16>, vector<128x512xbf16>, vector<2x512xf32> -> vector<2x512xf32>
    %126 = arith.addf %122, %125 : vector<2x512xf32>
    %127 = vector.extract_strided_slice %126 {offsets = [0, 0], sizes = [2, 128], strides = [1, 1]} : vector<2x512xf32> to vector<2x128xf32>
    %128 = arith.negf %127 : vector<2x128xf32>
    %129 = math.exp %128 : vector<2x128xf32>
    %cst_39 = arith.constant 1.000000e+00 : f32
    %130 = vector.broadcast %cst_39 : f32 to vector<2x128xf32>
    %131 = arith.addf %130, %129 : vector<2x128xf32>
    %132 = arith.divf %130, %131 : vector<2x128xf32>
    %133 = vector.extract_strided_slice %126 {offsets = [0, 128], sizes = [2, 128], strides = [1, 1]} : vector<2x512xf32> to vector<2x128xf32>
    %134 = arith.negf %133 : vector<2x128xf32>
    %135 = math.exp %134 : vector<2x128xf32>
    %cst_40 = arith.constant 1.000000e+00 : f32
    %136 = vector.broadcast %cst_40 : f32 to vector<2x128xf32>
    %137 = arith.addf %136, %135 : vector<2x128xf32>
    %138 = arith.divf %136, %137 : vector<2x128xf32>
    %139 = vector.extract_strided_slice %126 {offsets = [0, 256], sizes = [2, 128], strides = [1, 1]} : vector<2x512xf32> to vector<2x128xf32>
    %140 = math.tanh %139 : vector<2x128xf32>
    %141 = vector.extract_strided_slice %126 {offsets = [0, 384], sizes = [2, 128], strides = [1, 1]} : vector<2x512xf32> to vector<2x128xf32>
    %142 = arith.negf %141 : vector<2x128xf32>
    %143 = math.exp %142 : vector<2x128xf32>
    %cst_41 = arith.constant 1.000000e+00 : f32
    %144 = vector.broadcast %cst_41 : f32 to vector<2x128xf32>
    %145 = arith.addf %144, %143 : vector<2x128xf32>
    %146 = arith.divf %144, %145 : vector<2x128xf32>
    %147 = arith.mulf %138, %111 : vector<2x128xf32>
    %148 = arith.mulf %132, %140 : vector<2x128xf32>
    %149 = arith.addf %147, %148 : vector<2x128xf32>
    %150 = math.tanh %149 : vector<2x128xf32>
    %151 = arith.mulf %146, %150 : vector<2x128xf32>
    %152 = arith.truncf %151 : vector<2x128xf32> to vector<2x128xbf16>
    %153 = arith.index_cast %c3_i32 : i32 to index
    %c0_42 = arith.constant 0 : index
    %c0_43 = arith.constant 0 : index
    %154 = vector.load %arg4[%153, %c0_42, %c0_43] : memref<8x2x128xbf16, #tpu.memory_space<vmem>>, vector<1x2x128xbf16>
    %155 = vector.shape_cast %154 : vector<1x2x128xbf16> to vector<2x128xbf16>
    %156 = vector.shape_cast %152 : vector<2x128xbf16> to vector<1x2x128xbf16>
    tpu.vector_store %arg4[%153, %c0_42, %c0_43], %156 {strides = array<i32>} : memref<8x2x128xbf16, #tpu.memory_space<vmem>>, vector<1x2x128xbf16>,
    %c4_i32 = arith.constant 4 : i32
    %157 = arith.index_cast %c4_i32 : i32 to index
    %c0_44 = arith.constant 0 : index
    %c0_45 = arith.constant 0 : index
    %158 = vector.load %arg2[%157, %c0_44, %c0_45] : memref<8x2x512xbf16, #tpu.memory_space<vmem>>, vector<1x2x512xbf16>
    %159 = vector.shape_cast %158 : vector<1x2x512xbf16> to vector<2x512xbf16>
    %160 = arith.extf %159 : vector<2x512xbf16> to vector<2x512xf32>
    %161 = arith.truncf %151 : vector<2x128xf32> to vector<2x128xbf16>
    %c0_46 = arith.constant 0 : index
    %c0_47 = arith.constant 0 : index
    %162 = vector.load %arg3[%c0_46, %c0_47] : memref<128x512xbf16, #tpu.memory_space<vmem>>, vector<128x512xbf16>
    %cst_48 = arith.constant dense<0.000000e+00> : vector<2x512xf32>
    %163 = tpu.matmul %161, %162, %cst_48 {dimension_numbers = #tpu.dot_dimension_numbers<[1], [0], [0], [1], [0, 0, 1, 1], [], []>} : vector<2x128xbf16>, vector<128x512xbf16>, vector<2x512xf32> -> vector<2x512xf32>
    %164 = arith.addf %160, %163 : vector<2x512xf32>
    %165 = vector.extract_strided_slice %164 {offsets = [0, 0], sizes = [2, 128], strides = [1, 1]} : vector<2x512xf32> to vector<2x128xf32>
    %166 = arith.negf %165 : vector<2x128xf32>
    %167 = math.exp %166 : vector<2x128xf32>
    %cst_49 = arith.constant 1.000000e+00 : f32
    %168 = vector.broadcast %cst_49 : f32 to vector<2x128xf32>
    %169 = arith.addf %168, %167 : vector<2x128xf32>
    %170 = arith.divf %168, %169 : vector<2x128xf32>
    %171 = vector.extract_strided_slice %164 {offsets = [0, 128], sizes = [2, 128], strides = [1, 1]} : vector<2x512xf32> to vector<2x128xf32>
    %172 = arith.negf %171 : vector<2x128xf32>
    %173 = math.exp %172 : vector<2x128xf32>
    %cst_50 = arith.constant 1.000000e+00 : f32
    %174 = vector.broadcast %cst_50 : f32 to vector<2x128xf32>
    %175 = arith.addf %174, %173 : vector<2x128xf32>
    %176 = arith.divf %174, %175 : vector<2x128xf32>
    %177 = vector.extract_strided_slice %164 {offsets = [0, 256], sizes = [2, 128], strides = [1, 1]} : vector<2x512xf32> to vector<2x128xf32>
    %178 = math.tanh %177 : vector<2x128xf32>
    %179 = vector.extract_strided_slice %164 {offsets = [0, 384], sizes = [2, 128], strides = [1, 1]} : vector<2x512xf32> to vector<2x128xf32>
    %180 = arith.negf %179 : vector<2x128xf32>
    %181 = math.exp %180 : vector<2x128xf32>
    %cst_51 = arith.constant 1.000000e+00 : f32
    %182 = vector.broadcast %cst_51 : f32 to vector<2x128xf32>
    %183 = arith.addf %182, %181 : vector<2x128xf32>
    %184 = arith.divf %182, %183 : vector<2x128xf32>
    %185 = arith.mulf %176, %149 : vector<2x128xf32>
    %186 = arith.mulf %170, %178 : vector<2x128xf32>
    %187 = arith.addf %185, %186 : vector<2x128xf32>
    %188 = math.tanh %187 : vector<2x128xf32>
    %189 = arith.mulf %184, %188 : vector<2x128xf32>
    %190 = arith.truncf %189 : vector<2x128xf32> to vector<2x128xbf16>
    %191 = arith.index_cast %c4_i32 : i32 to index
    %c0_52 = arith.constant 0 : index
    %c0_53 = arith.constant 0 : index
    %192 = vector.load %arg4[%191, %c0_52, %c0_53] : memref<8x2x128xbf16, #tpu.memory_space<vmem>>, vector<1x2x128xbf16>
    %193 = vector.shape_cast %192 : vector<1x2x128xbf16> to vector<2x128xbf16>
    %194 = vector.shape_cast %190 : vector<2x128xbf16> to vector<1x2x128xbf16>
    tpu.vector_store %arg4[%191, %c0_52, %c0_53], %194 {strides = array<i32>} : memref<8x2x128xbf16, #tpu.memory_space<vmem>>, vector<1x2x128xbf16>,
    %c5_i32 = arith.constant 5 : i32
    %195 = arith.index_cast %c5_i32 : i32 to index
    %c0_54 = arith.constant 0 : index
    %c0_55 = arith.constant 0 : index
    %196 = vector.load %arg2[%195, %c0_54, %c0_55] : memref<8x2x512xbf16, #tpu.memory_space<vmem>>, vector<1x2x512xbf16>
    %197 = vector.shape_cast %196 : vector<1x2x512xbf16> to vector<2x512xbf16>
    %198 = arith.extf %197 : vector<2x512xbf16> to vector<2x512xf32>
    %199 = arith.truncf %189 : vector<2x128xf32> to vector<2x128xbf16>
    %c0_56 = arith.constant 0 : index
    %c0_57 = arith.constant 0 : index
    %200 = vector.load %arg3[%c0_56, %c0_57] : memref<128x512xbf16, #tpu.memory_space<vmem>>, vector<128x512xbf16>
    %cst_58 = arith.constant dense<0.000000e+00> : vector<2x512xf32>
    %201 = tpu.matmul %199, %200, %cst_58 {dimension_numbers = #tpu.dot_dimension_numbers<[1], [0], [0], [1], [0, 0, 1, 1], [], []>} : vector<2x128xbf16>, vector<128x512xbf16>, vector<2x512xf32> -> vector<2x512xf32>
    %202 = arith.addf %198, %201 : vector<2x512xf32>
    %203 = vector.extract_strided_slice %202 {offsets = [0, 0], sizes = [2, 128], strides = [1, 1]} : vector<2x512xf32> to vector<2x128xf32>
    %204 = arith.negf %203 : vector<2x128xf32>
    %205 = math.exp %204 : vector<2x128xf32>
    %cst_59 = arith.constant 1.000000e+00 : f32
    %206 = vector.broadcast %cst_59 : f32 to vector<2x128xf32>
    %207 = arith.addf %206, %205 : vector<2x128xf32>
    %208 = arith.divf %206, %207 : vector<2x128xf32>
    %209 = vector.extract_strided_slice %202 {offsets = [0, 128], sizes = [2, 128], strides = [1, 1]} : vector<2x512xf32> to vector<2x128xf32>
    %210 = arith.negf %209 : vector<2x128xf32>
    %211 = math.exp %210 : vector<2x128xf32>
    %cst_60 = arith.constant 1.000000e+00 : f32
    %212 = vector.broadcast %cst_60 : f32 to vector<2x128xf32>
    %213 = arith.addf %212, %211 : vector<2x128xf32>
    %214 = arith.divf %212, %213 : vector<2x128xf32>
    %215 = vector.extract_strided_slice %202 {offsets = [0, 256], sizes = [2, 128], strides = [1, 1]} : vector<2x512xf32> to vector<2x128xf32>
    %216 = math.tanh %215 : vector<2x128xf32>
    %217 = vector.extract_strided_slice %202 {offsets = [0, 384], sizes = [2, 128], strides = [1, 1]} : vector<2x512xf32> to vector<2x128xf32>
    %218 = arith.negf %217 : vector<2x128xf32>
    %219 = math.exp %218 : vector<2x128xf32>
    %cst_61 = arith.constant 1.000000e+00 : f32
    %220 = vector.broadcast %cst_61 : f32 to vector<2x128xf32>
    %221 = arith.addf %220, %219 : vector<2x128xf32>
    %222 = arith.divf %220, %221 : vector<2x128xf32>
    %223 = arith.mulf %214, %187 : vector<2x128xf32>
    %224 = arith.mulf %208, %216 : vector<2x128xf32>
    %225 = arith.addf %223, %224 : vector<2x128xf32>
    %226 = math.tanh %225 : vector<2x128xf32>
    %227 = arith.mulf %222, %226 : vector<2x128xf32>
    %228 = arith.truncf %227 : vector<2x128xf32> to vector<2x128xbf16>
    %229 = arith.index_cast %c5_i32 : i32 to index
    %c0_62 = arith.constant 0 : index
    %c0_63 = arith.constant 0 : index
    %230 = vector.load %arg4[%229, %c0_62, %c0_63] : memref<8x2x128xbf16, #tpu.memory_space<vmem>>, vector<1x2x128xbf16>
    %231 = vector.shape_cast %230 : vector<1x2x128xbf16> to vector<2x128xbf16>
    %232 = vector.shape_cast %228 : vector<2x128xbf16> to vector<1x2x128xbf16>
    tpu.vector_store %arg4[%229, %c0_62, %c0_63], %232 {strides = array<i32>} : memref<8x2x128xbf16, #tpu.memory_space<vmem>>, vector<1x2x128xbf16>,
    %c6_i32 = arith.constant 6 : i32
    %233 = arith.index_cast %c6_i32 : i32 to index
    %c0_64 = arith.constant 0 : index
    %c0_65 = arith.constant 0 : index
    %234 = vector.load %arg2[%233, %c0_64, %c0_65] : memref<8x2x512xbf16, #tpu.memory_space<vmem>>, vector<1x2x512xbf16>
    %235 = vector.shape_cast %234 : vector<1x2x512xbf16> to vector<2x512xbf16>
    %236 = arith.extf %235 : vector<2x512xbf16> to vector<2x512xf32>
    %237 = arith.truncf %227 : vector<2x128xf32> to vector<2x128xbf16>
    %c0_66 = arith.constant 0 : index
    %c0_67 = arith.constant 0 : index
    %238 = vector.load %arg3[%c0_66, %c0_67] : memref<128x512xbf16, #tpu.memory_space<vmem>>, vector<128x512xbf16>
    %cst_68 = arith.constant dense<0.000000e+00> : vector<2x512xf32>
    %239 = tpu.matmul %237, %238, %cst_68 {dimension_numbers = #tpu.dot_dimension_numbers<[1], [0], [0], [1], [0, 0, 1, 1], [], []>} : vector<2x128xbf16>, vector<128x512xbf16>, vector<2x512xf32> -> vector<2x512xf32>
    %240 = arith.addf %236, %239 : vector<2x512xf32>
    %241 = vector.extract_strided_slice %240 {offsets = [0, 0], sizes = [2, 128], strides = [1, 1]} : vector<2x512xf32> to vector<2x128xf32>
    %242 = arith.negf %241 : vector<2x128xf32>
    %243 = math.exp %242 : vector<2x128xf32>
    %cst_69 = arith.constant 1.000000e+00 : f32
    %244 = vector.broadcast %cst_69 : f32 to vector<2x128xf32>
    %245 = arith.addf %244, %243 : vector<2x128xf32>
    %246 = arith.divf %244, %245 : vector<2x128xf32>
    %247 = vector.extract_strided_slice %240 {offsets = [0, 128], sizes = [2, 128], strides = [1, 1]} : vector<2x512xf32> to vector<2x128xf32>
    %248 = arith.negf %247 : vector<2x128xf32>
    %249 = math.exp %248 : vector<2x128xf32>
    %cst_70 = arith.constant 1.000000e+00 : f32
    %250 = vector.broadcast %cst_70 : f32 to vector<2x128xf32>
    %251 = arith.addf %250, %249 : vector<2x128xf32>
    %252 = arith.divf %250, %251 : vector<2x128xf32>
    %253 = vector.extract_strided_slice %240 {offsets = [0, 256], sizes = [2, 128], strides = [1, 1]} : vector<2x512xf32> to vector<2x128xf32>
    %254 = math.tanh %253 : vector<2x128xf32>
    %255 = vector.extract_strided_slice %240 {offsets = [0, 384], sizes = [2, 128], strides = [1, 1]} : vector<2x512xf32> to vector<2x128xf32>
    %256 = arith.negf %255 : vector<2x128xf32>
    %257 = math.exp %256 : vector<2x128xf32>
    %cst_71 = arith.constant 1.000000e+00 : f32
    %258 = vector.broadcast %cst_71 : f32 to vector<2x128xf32>
    %259 = arith.addf %258, %257 : vector<2x128xf32>
    %260 = arith.divf %258, %259 : vector<2x128xf32>
    %261 = arith.mulf %252, %225 : vector<2x128xf32>
    %262 = arith.mulf %246, %254 : vector<2x128xf32>
    %263 = arith.addf %261, %262 : vector<2x128xf32>
    %264 = math.tanh %263 : vector<2x128xf32>
    %265 = arith.mulf %260, %264 : vector<2x128xf32>
    %266 = arith.truncf %265 : vector<2x128xf32> to vector<2x128xbf16>
    %267 = arith.index_cast %c6_i32 : i32 to index
    %c0_72 = arith.constant 0 : index
    %c0_73 = arith.constant 0 : index
    %268 = vector.load %arg4[%267, %c0_72, %c0_73] : memref<8x2x128xbf16, #tpu.memory_space<vmem>>, vector<1x2x128xbf16>
    %269 = vector.shape_cast %268 : vector<1x2x128xbf16> to vector<2x128xbf16>
    %270 = vector.shape_cast %266 : vector<2x128xbf16> to vector<1x2x128xbf16>
    tpu.vector_store %arg4[%267, %c0_72, %c0_73], %270 {strides = array<i32>} : memref<8x2x128xbf16, #tpu.memory_space<vmem>>, vector<1x2x128xbf16>,
    %c7_i32 = arith.constant 7 : i32
    %271 = arith.index_cast %c7_i32 : i32 to index
    %c0_74 = arith.constant 0 : index
    %c0_75 = arith.constant 0 : index
    %272 = vector.load %arg2[%271, %c0_74, %c0_75] : memref<8x2x512xbf16, #tpu.memory_space<vmem>>, vector<1x2x512xbf16>
    %273 = vector.shape_cast %272 : vector<1x2x512xbf16> to vector<2x512xbf16>
    %274 = arith.extf %273 : vector<2x512xbf16> to vector<2x512xf32>
    %275 = arith.truncf %265 : vector<2x128xf32> to vector<2x128xbf16>
    %c0_76 = arith.constant 0 : index
    %c0_77 = arith.constant 0 : index
    %276 = vector.load %arg3[%c0_76, %c0_77] : memref<128x512xbf16, #tpu.memory_space<vmem>>, vector<128x512xbf16>
    %cst_78 = arith.constant dense<0.000000e+00> : vector<2x512xf32>
    %277 = tpu.matmul %275, %276, %cst_78 {dimension_numbers = #tpu.dot_dimension_numbers<[1], [0], [0], [1], [0, 0, 1, 1], [], []>} : vector<2x128xbf16>, vector<128x512xbf16>, vector<2x512xf32> -> vector<2x512xf32>
    %278 = arith.addf %274, %277 : vector<2x512xf32>
    %279 = vector.extract_strided_slice %278 {offsets = [0, 0], sizes = [2, 128], strides = [1, 1]} : vector<2x512xf32> to vector<2x128xf32>
    %280 = arith.negf %279 : vector<2x128xf32>
    %281 = math.exp %280 : vector<2x128xf32>
    %cst_79 = arith.constant 1.000000e+00 : f32
    %282 = vector.broadcast %cst_79 : f32 to vector<2x128xf32>
    %283 = arith.addf %282, %281 : vector<2x128xf32>
    %284 = arith.divf %282, %283 : vector<2x128xf32>
    %285 = vector.extract_strided_slice %278 {offsets = [0, 128], sizes = [2, 128], strides = [1, 1]} : vector<2x512xf32> to vector<2x128xf32>
    %286 = arith.negf %285 : vector<2x128xf32>
    %287 = math.exp %286 : vector<2x128xf32>
    %cst_80 = arith.constant 1.000000e+00 : f32
    %288 = vector.broadcast %cst_80 : f32 to vector<2x128xf32>
    %289 = arith.addf %288, %287 : vector<2x128xf32>
    %290 = arith.divf %288, %289 : vector<2x128xf32>
    %291 = vector.extract_strided_slice %278 {offsets = [0, 256], sizes = [2, 128], strides = [1, 1]} : vector<2x512xf32> to vector<2x128xf32>
    %292 = math.tanh %291 : vector<2x128xf32>
    %293 = vector.extract_strided_slice %278 {offsets = [0, 384], sizes = [2, 128], strides = [1, 1]} : vector<2x512xf32> to vector<2x128xf32>
    %294 = arith.negf %293 : vector<2x128xf32>
    %295 = math.exp %294 : vector<2x128xf32>
    %cst_81 = arith.constant 1.000000e+00 : f32
    %296 = vector.broadcast %cst_81 : f32 to vector<2x128xf32>
    %297 = arith.addf %296, %295 : vector<2x128xf32>
    %298 = arith.divf %296, %297 : vector<2x128xf32>
    %299 = arith.mulf %290, %263 : vector<2x128xf32>
    %300 = arith.mulf %284, %292 : vector<2x128xf32>
    %301 = arith.addf %299, %300 : vector<2x128xf32>
    %302 = math.tanh %301 : vector<2x128xf32>
    %303 = arith.mulf %298, %302 : vector<2x128xf32>
    %304 = arith.truncf %303 : vector<2x128xf32> to vector<2x128xbf16>
    %305 = arith.index_cast %c7_i32 : i32 to index
    %c0_82 = arith.constant 0 : index
    %c0_83 = arith.constant 0 : index
    %306 = vector.load %arg4[%305, %c0_82, %c0_83] : memref<8x2x128xbf16, #tpu.memory_space<vmem>>, vector<1x2x128xbf16>
    %307 = vector.shape_cast %306 : vector<1x2x128xbf16> to vector<2x128xbf16>
    %308 = vector.shape_cast %304 : vector<2x128xbf16> to vector<1x2x128xbf16>
    tpu.vector_store %arg4[%305, %c0_82, %c0_83], %308 {strides = array<i32>} : memref<8x2x128xbf16, #tpu.memory_space<vmem>>, vector<1x2x128xbf16>,
    %c8_i32 = arith.constant 8 : i32
    %c0_84 = arith.constant 0 : index
    %c0_85 = arith.constant 0 : index
    %309 = vector.load %arg5[%c0_84, %c0_85] : memref<2x128xf32, #tpu.memory_space<vmem>>, vector<2x128xf32>
    tpu.vector_store %arg5[%c0_84, %c0_85], %303 {strides = array<i32>} : memref<2x128xf32, #tpu.memory_space<vmem>>, vector<2x128xf32>,
    %c0_86 = arith.constant 0 : index
    %c0_87 = arith.constant 0 : index
    %310 = vector.load %arg6[%c0_86, %c0_87] : memref<2x128xf32, #tpu.memory_space<vmem>>, vector<2x128xf32>
    tpu.vector_store %arg6[%c0_86, %c0_87], %301 {strides = array<i32>} : memref<2x128xf32, #tpu.memory_space<vmem>>, vector<2x128xf32>,
    return
  }
  func.func @transform_0(%arg0: i32, %arg1: i32) -> (i32, i32, i32) {
    %c0_i32 = arith.constant 0 : i32
    %c0_i32_0 = arith.constant 0 : i32
    return %arg1, %arg0, %c0_i32 : i32, i32, i32
  }
  func.func @transform_1(%arg0: i32, %arg1: i32) -> (i32, i32) {
    %c0_i32 = arith.constant 0 : i32
    %c0_i32_0 = arith.constant 0 : i32
    %c0_i32_1 = arith.constant 0 : i32
    return %c0_i32, %c0_i32_0 : i32, i32
  }
  func.func @transform_2(%arg0: i32, %arg1: i32) -> (i32, i32, i32) {
    %c0_i32 = arith.constant 0 : i32
    %c0_i32_0 = arith.constant 0 : i32
    return %arg1, %arg0, %c0_i32 : i32, i32, i32
  }
}

module attributes {stable_mosaic.version = 11 : i64} {
  func.func @gate_proj_kernel(%arg0: i32, %arg1: i32, %arg2: memref<16x128xbf16, #tpu.memory_space<vmem>>, %arg3: memref<128x512xbf16, #tpu.memory_space<vmem>>, %arg4: memref<1x512xf32, #tpu.memory_space<vmem>>, %arg5: memref<16x512xbf16, #tpu.memory_space<vmem>>) attributes {dimension_semantics = [#tpu.dimension_semantics<parallel>, #tpu.dimension_semantics<parallel>], iteration_bounds = array<i64: 1, 1>, scalar_prefetch = 0 : i64, scratch_operands = 0 : i64, tpu.core_type = #tpu.core_type<tc>, window_params = [{transform_indices = @transform_0, window_bounds = array<i64: 16, 128>}, {pipeline_mode = #tpu.pipeline_mode<synchronous>, transform_indices = @transform_1, window_bounds = array<i64: 128, 512>}, {pipeline_mode = #tpu.pipeline_mode<synchronous>, transform_indices = @transform_2, window_bounds = array<i64: 1, 512>}, {transform_indices = @transform_3, window_bounds = array<i64: 16, 512>}]} {
    %c0 = arith.constant 0 : index
    %c0_0 = arith.constant 0 : index
    %0 = vector.load %arg2[%c0, %c0_0] : memref<16x128xbf16, #tpu.memory_space<vmem>>, vector<16x128xbf16>
    %c0_1 = arith.constant 0 : index
    %c0_2 = arith.constant 0 : index
    %1 = vector.load %arg3[%c0_1, %c0_2] : memref<128x512xbf16, #tpu.memory_space<vmem>>, vector<128x512xbf16>
    %cst = arith.constant dense<0.000000e+00> : vector<16x512xf32>
    %2 = tpu.matmul %0, %1, %cst {dimension_numbers = #tpu.dot_dimension_numbers<[1], [0], [0], [1], [0, 0, 1, 1], [], []>} : vector<16x128xbf16>, vector<128x512xbf16>, vector<16x512xf32> -> vector<16x512xf32>
    %c0_3 = arith.constant 0 : index
    %c0_4 = arith.constant 0 : index
    %3 = vector.load %arg4[%c0_3, %c0_4] : memref<1x512xf32, #tpu.memory_space<vmem>>, vector<1x512xf32>
    %4 = vector.broadcast %3 : vector<1x512xf32> to vector<16x512xf32>
    %5 = arith.addf %2, %4 : vector<16x512xf32>
    %6 = arith.truncf %5 : vector<16x512xf32> to vector<16x512xbf16>
    %c0_5 = arith.constant 0 : index
    %c0_6 = arith.constant 0 : index
    %7 = vector.load %arg5[%c0_5, %c0_6] : memref<16x512xbf16, #tpu.memory_space<vmem>>, vector<16x512xbf16>
    tpu.vector_store %arg5[%c0_5, %c0_6], %6 {strides = array<i32>} : memref<16x512xbf16, #tpu.memory_space<vmem>>, vector<16x512xbf16>,
    return
  }
  func.func @transform_0(%arg0: i32, %arg1: i32) -> (i32, i32) {
    %c0_i32 = arith.constant 0 : i32
    %c0_i32_0 = arith.constant 0 : i32
    return %arg0, %c0_i32 : i32, i32
  }
  func.func @transform_1(%arg0: i32, %arg1: i32) -> (i32, i32) {
    %c0_i32 = arith.constant 0 : i32
    %c0_i32_0 = arith.constant 0 : i32
    %c0_i32_1 = arith.constant 0 : i32
    return %c0_i32, %c0_i32_0 : i32, i32
  }
  func.func @transform_2(%arg0: i32, %arg1: i32) -> (i32, i32) {
    %c0_i32 = arith.constant 0 : i32
    %c0_i32_0 = arith.constant 0 : i32
    %c0_i32_1 = arith.constant 0 : i32
    return %c0_i32, %c0_i32_0 : i32, i32
  }
  func.func @transform_3(%arg0: i32, %arg1: i32) -> (i32, i32) {
    %c0_i32 = arith.constant 0 : i32
    return %arg0, %arg1 : i32, i32
  }
}

module attributes {stable_mosaic.version = 11 : i64} {
  func.func @lstm_final_kernel(%arg0: i32, %arg1: i32, %arg2: memref<8x2x512xbf16, #tpu.memory_space<vmem>>, %arg3: memref<128x512xbf16, #tpu.memory_space<vmem>>, %arg4: memref<128x4xbf16, #tpu.memory_space<vmem>>, %arg5: memref<1x4xf32, #tpu.memory_space<vmem>>, %arg6: memref<2x4xf32, #tpu.memory_space<vmem>>, %arg7: memref<2x128xf32, #tpu.memory_space<vmem>>, %arg8: memref<2x128xf32, #tpu.memory_space<vmem>>) attributes {dimension_semantics = [#tpu.dimension_semantics<parallel>, #tpu.dimension_semantics<arbitrary>], iteration_bounds = array<i64: 1, 1>, scalar_prefetch = 0 : i64, scratch_operands = 2 : i64, tpu.core_type = #tpu.core_type<tc>, window_params = [{transform_indices = @transform_0, window_bounds = array<i64: 8, 2, 512>}, {pipeline_mode = #tpu.pipeline_mode<synchronous>, transform_indices = @transform_1, window_bounds = array<i64: 128, 512>}, {pipeline_mode = #tpu.pipeline_mode<synchronous>, transform_indices = @transform_2, window_bounds = array<i64: 128, 4>}, {pipeline_mode = #tpu.pipeline_mode<synchronous>, transform_indices = @transform_3, window_bounds = array<i64: 1, 4>}, {transform_indices = @transform_4, window_bounds = array<i64: 2, 4>}]} {
    %c0_i32 = arith.constant 0 : i32
    %0 = arith.cmpi eq, %arg1, %c0_i32 : i32
    %1 = arith.extui %0 : i1 to i32
    %c0_i32_0 = arith.constant 0 : i32
    %2 = arith.cmpi ne, %1, %c0_i32_0 : i32
    scf.if %2 {
      %cst_74 = arith.constant 0.000000e+00 : f32
      %274 = vector.broadcast %cst_74 : f32 to vector<2x128xf32>
      %c0_75 = arith.constant 0 : index
      %c0_76 = arith.constant 0 : index
      %275 = vector.load %arg7[%c0_75, %c0_76] : memref<2x128xf32, #tpu.memory_space<vmem>>, vector<2x128xf32>
      tpu.vector_store %arg7[%c0_75, %c0_76], %274 {strides = array<i32>} : memref<2x128xf32, #tpu.memory_space<vmem>>, vector<2x128xf32>,
      %cst_77 = arith.constant 0.000000e+00 : f32
      %276 = vector.broadcast %cst_77 : f32 to vector<2x128xf32>
      %c0_78 = arith.constant 0 : index
      %c0_79 = arith.constant 0 : index
      %277 = vector.load %arg8[%c0_78, %c0_79] : memref<2x128xf32, #tpu.memory_space<vmem>>, vector<2x128xf32>
      tpu.vector_store %arg8[%c0_78, %c0_79], %276 {strides = array<i32>} : memref<2x128xf32, #tpu.memory_space<vmem>>, vector<2x128xf32>,
    } else {
    }
    %c0 = arith.constant 0 : index
    %c0_1 = arith.constant 0 : index
    %3 = vector.load %arg7[%c0, %c0_1] : memref<2x128xf32, #tpu.memory_space<vmem>>, vector<2x128xf32>
    %c0_2 = arith.constant 0 : index
    %c0_3 = arith.constant 0 : index
    %4 = vector.load %arg8[%c0_2, %c0_3] : memref<2x128xf32, #tpu.memory_space<vmem>>, vector<2x128xf32>
    %c0_i32_4 = arith.constant 0 : i32
    %5 = arith.index_cast %c0_i32_4 : i32 to index
    %c0_5 = arith.constant 0 : index
    %c0_6 = arith.constant 0 : index
    %6 = vector.load %arg2[%5, %c0_5, %c0_6] : memref<8x2x512xbf16, #tpu.memory_space<vmem>>, vector<1x2x512xbf16>
    %7 = vector.shape_cast %6 : vector<1x2x512xbf16> to vector<2x512xbf16>
    %8 = arith.extf %7 : vector<2x512xbf16> to vector<2x512xf32>
    %9 = arith.truncf %3 : vector<2x128xf32> to vector<2x128xbf16>
    %c0_7 = arith.constant 0 : index
    %c0_8 = arith.constant 0 : index
    %10 = vector.load %arg3[%c0_7, %c0_8] : memref<128x512xbf16, #tpu.memory_space<vmem>>, vector<128x512xbf16>
    %cst = arith.constant dense<0.000000e+00> : vector<2x512xf32>
    %11 = tpu.matmul %9, %10, %cst {dimension_numbers = #tpu.dot_dimension_numbers<[1], [0], [0], [1], [0, 0, 1, 1], [], []>} : vector<2x128xbf16>, vector<128x512xbf16>, vector<2x512xf32> -> vector<2x512xf32>
    %12 = arith.addf %8, %11 : vector<2x512xf32>
    %13 = vector.extract_strided_slice %12 {offsets = [0, 0], sizes = [2, 128], strides = [1, 1]} : vector<2x512xf32> to vector<2x128xf32>
    %14 = arith.negf %13 : vector<2x128xf32>
    %15 = math.exp %14 : vector<2x128xf32>
    %cst_9 = arith.constant 1.000000e+00 : f32
    %16 = vector.broadcast %cst_9 : f32 to vector<2x128xf32>
    %17 = arith.addf %16, %15 : vector<2x128xf32>
    %18 = arith.divf %16, %17 : vector<2x128xf32>
    %19 = vector.extract_strided_slice %12 {offsets = [0, 128], sizes = [2, 128], strides = [1, 1]} : vector<2x512xf32> to vector<2x128xf32>
    %20 = arith.negf %19 : vector<2x128xf32>
    %21 = math.exp %20 : vector<2x128xf32>
    %cst_10 = arith.constant 1.000000e+00 : f32
    %22 = vector.broadcast %cst_10 : f32 to vector<2x128xf32>
    %23 = arith.addf %22, %21 : vector<2x128xf32>
    %24 = arith.divf %22, %23 : vector<2x128xf32>
    %25 = vector.extract_strided_slice %12 {offsets = [0, 256], sizes = [2, 128], strides = [1, 1]} : vector<2x512xf32> to vector<2x128xf32>
    %26 = math.tanh %25 : vector<2x128xf32>
    %27 = vector.extract_strided_slice %12 {offsets = [0, 384], sizes = [2, 128], strides = [1, 1]} : vector<2x512xf32> to vector<2x128xf32>
    %28 = arith.negf %27 : vector<2x128xf32>
    %29 = math.exp %28 : vector<2x128xf32>
    %cst_11 = arith.constant 1.000000e+00 : f32
    %30 = vector.broadcast %cst_11 : f32 to vector<2x128xf32>
    %31 = arith.addf %30, %29 : vector<2x128xf32>
    %32 = arith.divf %30, %31 : vector<2x128xf32>
    %33 = arith.mulf %24, %4 : vector<2x128xf32>
    %34 = arith.mulf %18, %26 : vector<2x128xf32>
    %35 = arith.addf %33, %34 : vector<2x128xf32>
    %36 = math.tanh %35 : vector<2x128xf32>
    %37 = arith.mulf %32, %36 : vector<2x128xf32>
    %c1_i32 = arith.constant 1 : i32
    %38 = arith.index_cast %c1_i32 : i32 to index
    %c0_12 = arith.constant 0 : index
    %c0_13 = arith.constant 0 : index
    %39 = vector.load %arg2[%38, %c0_12, %c0_13] : memref<8x2x512xbf16, #tpu.memory_space<vmem>>, vector<1x2x512xbf16>
    %40 = vector.shape_cast %39 : vector<1x2x512xbf16> to vector<2x512xbf16>
    %41 = arith.extf %40 : vector<2x512xbf16> to vector<2x512xf32>
    %42 = arith.truncf %37 : vector<2x128xf32> to vector<2x128xbf16>
    %c0_14 = arith.constant 0 : index
    %c0_15 = arith.constant 0 : index
    %43 = vector.load %arg3[%c0_14, %c0_15] : memref<128x512xbf16, #tpu.memory_space<vmem>>, vector<128x512xbf16>
    %cst_16 = arith.constant dense<0.000000e+00> : vector<2x512xf32>
    %44 = tpu.matmul %42, %43, %cst_16 {dimension_numbers = #tpu.dot_dimension_numbers<[1], [0], [0], [1], [0, 0, 1, 1], [], []>} : vector<2x128xbf16>, vector<128x512xbf16>, vector<2x512xf32> -> vector<2x512xf32>
    %45 = arith.addf %41, %44 : vector<2x512xf32>
    %46 = vector.extract_strided_slice %45 {offsets = [0, 0], sizes = [2, 128], strides = [1, 1]} : vector<2x512xf32> to vector<2x128xf32>
    %47 = arith.negf %46 : vector<2x128xf32>
    %48 = math.exp %47 : vector<2x128xf32>
    %cst_17 = arith.constant 1.000000e+00 : f32
    %49 = vector.broadcast %cst_17 : f32 to vector<2x128xf32>
    %50 = arith.addf %49, %48 : vector<2x128xf32>
    %51 = arith.divf %49, %50 : vector<2x128xf32>
    %52 = vector.extract_strided_slice %45 {offsets = [0, 128], sizes = [2, 128], strides = [1, 1]} : vector<2x512xf32> to vector<2x128xf32>
    %53 = arith.negf %52 : vector<2x128xf32>
    %54 = math.exp %53 : vector<2x128xf32>
    %cst_18 = arith.constant 1.000000e+00 : f32
    %55 = vector.broadcast %cst_18 : f32 to vector<2x128xf32>
    %56 = arith.addf %55, %54 : vector<2x128xf32>
    %57 = arith.divf %55, %56 : vector<2x128xf32>
    %58 = vector.extract_strided_slice %45 {offsets = [0, 256], sizes = [2, 128], strides = [1, 1]} : vector<2x512xf32> to vector<2x128xf32>
    %59 = math.tanh %58 : vector<2x128xf32>
    %60 = vector.extract_strided_slice %45 {offsets = [0, 384], sizes = [2, 128], strides = [1, 1]} : vector<2x512xf32> to vector<2x128xf32>
    %61 = arith.negf %60 : vector<2x128xf32>
    %62 = math.exp %61 : vector<2x128xf32>
    %cst_19 = arith.constant 1.000000e+00 : f32
    %63 = vector.broadcast %cst_19 : f32 to vector<2x128xf32>
    %64 = arith.addf %63, %62 : vector<2x128xf32>
    %65 = arith.divf %63, %64 : vector<2x128xf32>
    %66 = arith.mulf %57, %35 : vector<2x128xf32>
    %67 = arith.mulf %51, %59 : vector<2x128xf32>
    %68 = arith.addf %66, %67 : vector<2x128xf32>
    %69 = math.tanh %68 : vector<2x128xf32>
    %70 = arith.mulf %65, %69 : vector<2x128xf32>
    %c2_i32 = arith.constant 2 : i32
    %71 = arith.index_cast %c2_i32 : i32 to index
    %c0_20 = arith.constant 0 : index
    %c0_21 = arith.constant 0 : index
    %72 = vector.load %arg2[%71, %c0_20, %c0_21] : memref<8x2x512xbf16, #tpu.memory_space<vmem>>, vector<1x2x512xbf16>
    %73 = vector.shape_cast %72 : vector<1x2x512xbf16> to vector<2x512xbf16>
    %74 = arith.extf %73 : vector<2x512xbf16> to vector<2x512xf32>
    %75 = arith.truncf %70 : vector<2x128xf32> to vector<2x128xbf16>
    %c0_22 = arith.constant 0 : index
    %c0_23 = arith.constant 0 : index
    %76 = vector.load %arg3[%c0_22, %c0_23] : memref<128x512xbf16, #tpu.memory_space<vmem>>, vector<128x512xbf16>
    %cst_24 = arith.constant dense<0.000000e+00> : vector<2x512xf32>
    %77 = tpu.matmul %75, %76, %cst_24 {dimension_numbers = #tpu.dot_dimension_numbers<[1], [0], [0], [1], [0, 0, 1, 1], [], []>} : vector<2x128xbf16>, vector<128x512xbf16>, vector<2x512xf32> -> vector<2x512xf32>
    %78 = arith.addf %74, %77 : vector<2x512xf32>
    %79 = vector.extract_strided_slice %78 {offsets = [0, 0], sizes = [2, 128], strides = [1, 1]} : vector<2x512xf32> to vector<2x128xf32>
    %80 = arith.negf %79 : vector<2x128xf32>
    %81 = math.exp %80 : vector<2x128xf32>
    %cst_25 = arith.constant 1.000000e+00 : f32
    %82 = vector.broadcast %cst_25 : f32 to vector<2x128xf32>
    %83 = arith.addf %82, %81 : vector<2x128xf32>
    %84 = arith.divf %82, %83 : vector<2x128xf32>
    %85 = vector.extract_strided_slice %78 {offsets = [0, 128], sizes = [2, 128], strides = [1, 1]} : vector<2x512xf32> to vector<2x128xf32>
    %86 = arith.negf %85 : vector<2x128xf32>
    %87 = math.exp %86 : vector<2x128xf32>
    %cst_26 = arith.constant 1.000000e+00 : f32
    %88 = vector.broadcast %cst_26 : f32 to vector<2x128xf32>
    %89 = arith.addf %88, %87 : vector<2x128xf32>
    %90 = arith.divf %88, %89 : vector<2x128xf32>
    %91 = vector.extract_strided_slice %78 {offsets = [0, 256], sizes = [2, 128], strides = [1, 1]} : vector<2x512xf32> to vector<2x128xf32>
    %92 = math.tanh %91 : vector<2x128xf32>
    %93 = vector.extract_strided_slice %78 {offsets = [0, 384], sizes = [2, 128], strides = [1, 1]} : vector<2x512xf32> to vector<2x128xf32>
    %94 = arith.negf %93 : vector<2x128xf32>
    %95 = math.exp %94 : vector<2x128xf32>
    %cst_27 = arith.constant 1.000000e+00 : f32
    %96 = vector.broadcast %cst_27 : f32 to vector<2x128xf32>
    %97 = arith.addf %96, %95 : vector<2x128xf32>
    %98 = arith.divf %96, %97 : vector<2x128xf32>
    %99 = arith.mulf %90, %68 : vector<2x128xf32>
    %100 = arith.mulf %84, %92 : vector<2x128xf32>
    %101 = arith.addf %99, %100 : vector<2x128xf32>
    %102 = math.tanh %101 : vector<2x128xf32>
    %103 = arith.mulf %98, %102 : vector<2x128xf32>
    %c3_i32 = arith.constant 3 : i32
    %104 = arith.index_cast %c3_i32 : i32 to index
    %c0_28 = arith.constant 0 : index
    %c0_29 = arith.constant 0 : index
    %105 = vector.load %arg2[%104, %c0_28, %c0_29] : memref<8x2x512xbf16, #tpu.memory_space<vmem>>, vector<1x2x512xbf16>
    %106 = vector.shape_cast %105 : vector<1x2x512xbf16> to vector<2x512xbf16>
    %107 = arith.extf %106 : vector<2x512xbf16> to vector<2x512xf32>
    %108 = arith.truncf %103 : vector<2x128xf32> to vector<2x128xbf16>
    %c0_30 = arith.constant 0 : index
    %c0_31 = arith.constant 0 : index
    %109 = vector.load %arg3[%c0_30, %c0_31] : memref<128x512xbf16, #tpu.memory_space<vmem>>, vector<128x512xbf16>
    %cst_32 = arith.constant dense<0.000000e+00> : vector<2x512xf32>
    %110 = tpu.matmul %108, %109, %cst_32 {dimension_numbers = #tpu.dot_dimension_numbers<[1], [0], [0], [1], [0, 0, 1, 1], [], []>} : vector<2x128xbf16>, vector<128x512xbf16>, vector<2x512xf32> -> vector<2x512xf32>
    %111 = arith.addf %107, %110 : vector<2x512xf32>
    %112 = vector.extract_strided_slice %111 {offsets = [0, 0], sizes = [2, 128], strides = [1, 1]} : vector<2x512xf32> to vector<2x128xf32>
    %113 = arith.negf %112 : vector<2x128xf32>
    %114 = math.exp %113 : vector<2x128xf32>
    %cst_33 = arith.constant 1.000000e+00 : f32
    %115 = vector.broadcast %cst_33 : f32 to vector<2x128xf32>
    %116 = arith.addf %115, %114 : vector<2x128xf32>
    %117 = arith.divf %115, %116 : vector<2x128xf32>
    %118 = vector.extract_strided_slice %111 {offsets = [0, 128], sizes = [2, 128], strides = [1, 1]} : vector<2x512xf32> to vector<2x128xf32>
    %119 = arith.negf %118 : vector<2x128xf32>
    %120 = math.exp %119 : vector<2x128xf32>
    %cst_34 = arith.constant 1.000000e+00 : f32
    %121 = vector.broadcast %cst_34 : f32 to vector<2x128xf32>
    %122 = arith.addf %121, %120 : vector<2x128xf32>
    %123 = arith.divf %121, %122 : vector<2x128xf32>
    %124 = vector.extract_strided_slice %111 {offsets = [0, 256], sizes = [2, 128], strides = [1, 1]} : vector<2x512xf32> to vector<2x128xf32>
    %125 = math.tanh %124 : vector<2x128xf32>
    %126 = vector.extract_strided_slice %111 {offsets = [0, 384], sizes = [2, 128], strides = [1, 1]} : vector<2x512xf32> to vector<2x128xf32>
    %127 = arith.negf %126 : vector<2x128xf32>
    %128 = math.exp %127 : vector<2x128xf32>
    %cst_35 = arith.constant 1.000000e+00 : f32
    %129 = vector.broadcast %cst_35 : f32 to vector<2x128xf32>
    %130 = arith.addf %129, %128 : vector<2x128xf32>
    %131 = arith.divf %129, %130 : vector<2x128xf32>
    %132 = arith.mulf %123, %101 : vector<2x128xf32>
    %133 = arith.mulf %117, %125 : vector<2x128xf32>
    %134 = arith.addf %132, %133 : vector<2x128xf32>
    %135 = math.tanh %134 : vector<2x128xf32>
    %136 = arith.mulf %131, %135 : vector<2x128xf32>
    %c4_i32 = arith.constant 4 : i32
    %137 = arith.index_cast %c4_i32 : i32 to index
    %c0_36 = arith.constant 0 : index
    %c0_37 = arith.constant 0 : index
    %138 = vector.load %arg2[%137, %c0_36, %c0_37] : memref<8x2x512xbf16, #tpu.memory_space<vmem>>, vector<1x2x512xbf16>
    %139 = vector.shape_cast %138 : vector<1x2x512xbf16> to vector<2x512xbf16>
    %140 = arith.extf %139 : vector<2x512xbf16> to vector<2x512xf32>
    %141 = arith.truncf %136 : vector<2x128xf32> to vector<2x128xbf16>
    %c0_38 = arith.constant 0 : index
    %c0_39 = arith.constant 0 : index
    %142 = vector.load %arg3[%c0_38, %c0_39] : memref<128x512xbf16, #tpu.memory_space<vmem>>, vector<128x512xbf16>
    %cst_40 = arith.constant dense<0.000000e+00> : vector<2x512xf32>
    %143 = tpu.matmul %141, %142, %cst_40 {dimension_numbers = #tpu.dot_dimension_numbers<[1], [0], [0], [1], [0, 0, 1, 1], [], []>} : vector<2x128xbf16>, vector<128x512xbf16>, vector<2x512xf32> -> vector<2x512xf32>
    %144 = arith.addf %140, %143 : vector<2x512xf32>
    %145 = vector.extract_strided_slice %144 {offsets = [0, 0], sizes = [2, 128], strides = [1, 1]} : vector<2x512xf32> to vector<2x128xf32>
    %146 = arith.negf %145 : vector<2x128xf32>
    %147 = math.exp %146 : vector<2x128xf32>
    %cst_41 = arith.constant 1.000000e+00 : f32
    %148 = vector.broadcast %cst_41 : f32 to vector<2x128xf32>
    %149 = arith.addf %148, %147 : vector<2x128xf32>
    %150 = arith.divf %148, %149 : vector<2x128xf32>
    %151 = vector.extract_strided_slice %144 {offsets = [0, 128], sizes = [2, 128], strides = [1, 1]} : vector<2x512xf32> to vector<2x128xf32>
    %152 = arith.negf %151 : vector<2x128xf32>
    %153 = math.exp %152 : vector<2x128xf32>
    %cst_42 = arith.constant 1.000000e+00 : f32
    %154 = vector.broadcast %cst_42 : f32 to vector<2x128xf32>
    %155 = arith.addf %154, %153 : vector<2x128xf32>
    %156 = arith.divf %154, %155 : vector<2x128xf32>
    %157 = vector.extract_strided_slice %144 {offsets = [0, 256], sizes = [2, 128], strides = [1, 1]} : vector<2x512xf32> to vector<2x128xf32>
    %158 = math.tanh %157 : vector<2x128xf32>
    %159 = vector.extract_strided_slice %144 {offsets = [0, 384], sizes = [2, 128], strides = [1, 1]} : vector<2x512xf32> to vector<2x128xf32>
    %160 = arith.negf %159 : vector<2x128xf32>
    %161 = math.exp %160 : vector<2x128xf32>
    %cst_43 = arith.constant 1.000000e+00 : f32
    %162 = vector.broadcast %cst_43 : f32 to vector<2x128xf32>
    %163 = arith.addf %162, %161 : vector<2x128xf32>
    %164 = arith.divf %162, %163 : vector<2x128xf32>
    %165 = arith.mulf %156, %134 : vector<2x128xf32>
    %166 = arith.mulf %150, %158 : vector<2x128xf32>
    %167 = arith.addf %165, %166 : vector<2x128xf32>
    %168 = math.tanh %167 : vector<2x128xf32>
    %169 = arith.mulf %164, %168 : vector<2x128xf32>
    %c5_i32 = arith.constant 5 : i32
    %170 = arith.index_cast %c5_i32 : i32 to index
    %c0_44 = arith.constant 0 : index
    %c0_45 = arith.constant 0 : index
    %171 = vector.load %arg2[%170, %c0_44, %c0_45] : memref<8x2x512xbf16, #tpu.memory_space<vmem>>, vector<1x2x512xbf16>
    %172 = vector.shape_cast %171 : vector<1x2x512xbf16> to vector<2x512xbf16>
    %173 = arith.extf %172 : vector<2x512xbf16> to vector<2x512xf32>
    %174 = arith.truncf %169 : vector<2x128xf32> to vector<2x128xbf16>
    %c0_46 = arith.constant 0 : index
    %c0_47 = arith.constant 0 : index
    %175 = vector.load %arg3[%c0_46, %c0_47] : memref<128x512xbf16, #tpu.memory_space<vmem>>, vector<128x512xbf16>
    %cst_48 = arith.constant dense<0.000000e+00> : vector<2x512xf32>
    %176 = tpu.matmul %174, %175, %cst_48 {dimension_numbers = #tpu.dot_dimension_numbers<[1], [0], [0], [1], [0, 0, 1, 1], [], []>} : vector<2x128xbf16>, vector<128x512xbf16>, vector<2x512xf32> -> vector<2x512xf32>
    %177 = arith.addf %173, %176 : vector<2x512xf32>
    %178 = vector.extract_strided_slice %177 {offsets = [0, 0], sizes = [2, 128], strides = [1, 1]} : vector<2x512xf32> to vector<2x128xf32>
    %179 = arith.negf %178 : vector<2x128xf32>
    %180 = math.exp %179 : vector<2x128xf32>
    %cst_49 = arith.constant 1.000000e+00 : f32
    %181 = vector.broadcast %cst_49 : f32 to vector<2x128xf32>
    %182 = arith.addf %181, %180 : vector<2x128xf32>
    %183 = arith.divf %181, %182 : vector<2x128xf32>
    %184 = vector.extract_strided_slice %177 {offsets = [0, 128], sizes = [2, 128], strides = [1, 1]} : vector<2x512xf32> to vector<2x128xf32>
    %185 = arith.negf %184 : vector<2x128xf32>
    %186 = math.exp %185 : vector<2x128xf32>
    %cst_50 = arith.constant 1.000000e+00 : f32
    %187 = vector.broadcast %cst_50 : f32 to vector<2x128xf32>
    %188 = arith.addf %187, %186 : vector<2x128xf32>
    %189 = arith.divf %187, %188 : vector<2x128xf32>
    %190 = vector.extract_strided_slice %177 {offsets = [0, 256], sizes = [2, 128], strides = [1, 1]} : vector<2x512xf32> to vector<2x128xf32>
    %191 = math.tanh %190 : vector<2x128xf32>
    %192 = vector.extract_strided_slice %177 {offsets = [0, 384], sizes = [2, 128], strides = [1, 1]} : vector<2x512xf32> to vector<2x128xf32>
    %193 = arith.negf %192 : vector<2x128xf32>
    %194 = math.exp %193 : vector<2x128xf32>
    %cst_51 = arith.constant 1.000000e+00 : f32
    %195 = vector.broadcast %cst_51 : f32 to vector<2x128xf32>
    %196 = arith.addf %195, %194 : vector<2x128xf32>
    %197 = arith.divf %195, %196 : vector<2x128xf32>
    %198 = arith.mulf %189, %167 : vector<2x128xf32>
    %199 = arith.mulf %183, %191 : vector<2x128xf32>
    %200 = arith.addf %198, %199 : vector<2x128xf32>
    %201 = math.tanh %200 : vector<2x128xf32>
    %202 = arith.mulf %197, %201 : vector<2x128xf32>
    %c6_i32 = arith.constant 6 : i32
    %203 = arith.index_cast %c6_i32 : i32 to index
    %c0_52 = arith.constant 0 : index
    %c0_53 = arith.constant 0 : index
    %204 = vector.load %arg2[%203, %c0_52, %c0_53] : memref<8x2x512xbf16, #tpu.memory_space<vmem>>, vector<1x2x512xbf16>
    %205 = vector.shape_cast %204 : vector<1x2x512xbf16> to vector<2x512xbf16>
    %206 = arith.extf %205 : vector<2x512xbf16> to vector<2x512xf32>
    %207 = arith.truncf %202 : vector<2x128xf32> to vector<2x128xbf16>
    %c0_54 = arith.constant 0 : index
    %c0_55 = arith.constant 0 : index
    %208 = vector.load %arg3[%c0_54, %c0_55] : memref<128x512xbf16, #tpu.memory_space<vmem>>, vector<128x512xbf16>
    %cst_56 = arith.constant dense<0.000000e+00> : vector<2x512xf32>
    %209 = tpu.matmul %207, %208, %cst_56 {dimension_numbers = #tpu.dot_dimension_numbers<[1], [0], [0], [1], [0, 0, 1, 1], [], []>} : vector<2x128xbf16>, vector<128x512xbf16>, vector<2x512xf32> -> vector<2x512xf32>
    %210 = arith.addf %206, %209 : vector<2x512xf32>
    %211 = vector.extract_strided_slice %210 {offsets = [0, 0], sizes = [2, 128], strides = [1, 1]} : vector<2x512xf32> to vector<2x128xf32>
    %212 = arith.negf %211 : vector<2x128xf32>
    %213 = math.exp %212 : vector<2x128xf32>
    %cst_57 = arith.constant 1.000000e+00 : f32
    %214 = vector.broadcast %cst_57 : f32 to vector<2x128xf32>
    %215 = arith.addf %214, %213 : vector<2x128xf32>
    %216 = arith.divf %214, %215 : vector<2x128xf32>
    %217 = vector.extract_strided_slice %210 {offsets = [0, 128], sizes = [2, 128], strides = [1, 1]} : vector<2x512xf32> to vector<2x128xf32>
    %218 = arith.negf %217 : vector<2x128xf32>
    %219 = math.exp %218 : vector<2x128xf32>
    %cst_58 = arith.constant 1.000000e+00 : f32
    %220 = vector.broadcast %cst_58 : f32 to vector<2x128xf32>
    %221 = arith.addf %220, %219 : vector<2x128xf32>
    %222 = arith.divf %220, %221 : vector<2x128xf32>
    %223 = vector.extract_strided_slice %210 {offsets = [0, 256], sizes = [2, 128], strides = [1, 1]} : vector<2x512xf32> to vector<2x128xf32>
    %224 = math.tanh %223 : vector<2x128xf32>
    %225 = vector.extract_strided_slice %210 {offsets = [0, 384], sizes = [2, 128], strides = [1, 1]} : vector<2x512xf32> to vector<2x128xf32>
    %226 = arith.negf %225 : vector<2x128xf32>
    %227 = math.exp %226 : vector<2x128xf32>
    %cst_59 = arith.constant 1.000000e+00 : f32
    %228 = vector.broadcast %cst_59 : f32 to vector<2x128xf32>
    %229 = arith.addf %228, %227 : vector<2x128xf32>
    %230 = arith.divf %228, %229 : vector<2x128xf32>
    %231 = arith.mulf %222, %200 : vector<2x128xf32>
    %232 = arith.mulf %216, %224 : vector<2x128xf32>
    %233 = arith.addf %231, %232 : vector<2x128xf32>
    %234 = math.tanh %233 : vector<2x128xf32>
    %235 = arith.mulf %230, %234 : vector<2x128xf32>
    %c7_i32 = arith.constant 7 : i32
    %236 = arith.index_cast %c7_i32 : i32 to index
    %c0_60 = arith.constant 0 : index
    %c0_61 = arith.constant 0 : index
    %237 = vector.load %arg2[%236, %c0_60, %c0_61] : memref<8x2x512xbf16, #tpu.memory_space<vmem>>, vector<1x2x512xbf16>
    %238 = vector.shape_cast %237 : vector<1x2x512xbf16> to vector<2x512xbf16>
    %239 = arith.extf %238 : vector<2x512xbf16> to vector<2x512xf32>
    %240 = arith.truncf %235 : vector<2x128xf32> to vector<2x128xbf16>
    %c0_62 = arith.constant 0 : index
    %c0_63 = arith.constant 0 : index
    %241 = vector.load %arg3[%c0_62, %c0_63] : memref<128x512xbf16, #tpu.memory_space<vmem>>, vector<128x512xbf16>
    %cst_64 = arith.constant dense<0.000000e+00> : vector<2x512xf32>
    %242 = tpu.matmul %240, %241, %cst_64 {dimension_numbers = #tpu.dot_dimension_numbers<[1], [0], [0], [1], [0, 0, 1, 1], [], []>} : vector<2x128xbf16>, vector<128x512xbf16>, vector<2x512xf32> -> vector<2x512xf32>
    %243 = arith.addf %239, %242 : vector<2x512xf32>
    %244 = vector.extract_strided_slice %243 {offsets = [0, 0], sizes = [2, 128], strides = [1, 1]} : vector<2x512xf32> to vector<2x128xf32>
    %245 = arith.negf %244 : vector<2x128xf32>
    %246 = math.exp %245 : vector<2x128xf32>
    %cst_65 = arith.constant 1.000000e+00 : f32
    %247 = vector.broadcast %cst_65 : f32 to vector<2x128xf32>
    %248 = arith.addf %247, %246 : vector<2x128xf32>
    %249 = arith.divf %247, %248 : vector<2x128xf32>
    %250 = vector.extract_strided_slice %243 {offsets = [0, 128], sizes = [2, 128], strides = [1, 1]} : vector<2x512xf32> to vector<2x128xf32>
    %251 = arith.negf %250 : vector<2x128xf32>
    %252 = math.exp %251 : vector<2x128xf32>
    %cst_66 = arith.constant 1.000000e+00 : f32
    %253 = vector.broadcast %cst_66 : f32 to vector<2x128xf32>
    %254 = arith.addf %253, %252 : vector<2x128xf32>
    %255 = arith.divf %253, %254 : vector<2x128xf32>
    %256 = vector.extract_strided_slice %243 {offsets = [0, 256], sizes = [2, 128], strides = [1, 1]} : vector<2x512xf32> to vector<2x128xf32>
    %257 = math.tanh %256 : vector<2x128xf32>
    %258 = vector.extract_strided_slice %243 {offsets = [0, 384], sizes = [2, 128], strides = [1, 1]} : vector<2x512xf32> to vector<2x128xf32>
    %259 = arith.negf %258 : vector<2x128xf32>
    %260 = math.exp %259 : vector<2x128xf32>
    %cst_67 = arith.constant 1.000000e+00 : f32
    %261 = vector.broadcast %cst_67 : f32 to vector<2x128xf32>
    %262 = arith.addf %261, %260 : vector<2x128xf32>
    %263 = arith.divf %261, %262 : vector<2x128xf32>
    %264 = arith.mulf %255, %233 : vector<2x128xf32>
    %265 = arith.mulf %249, %257 : vector<2x128xf32>
    %266 = arith.addf %264, %265 : vector<2x128xf32>
    %267 = math.tanh %266 : vector<2x128xf32>
    %268 = arith.mulf %263, %267 : vector<2x128xf32>
    %c8_i32 = arith.constant 8 : i32
    %c0_68 = arith.constant 0 : index
    %c0_69 = arith.constant 0 : index
    %269 = vector.load %arg7[%c0_68, %c0_69] : memref<2x128xf32, #tpu.memory_space<vmem>>, vector<2x128xf32>
    tpu.vector_store %arg7[%c0_68, %c0_69], %268 {strides = array<i32>} : memref<2x128xf32, #tpu.memory_space<vmem>>, vector<2x128xf32>,
    %c0_70 = arith.constant 0 : index
    %c0_71 = arith.constant 0 : index
    %270 = vector.load %arg8[%c0_70, %c0_71] : memref<2x128xf32, #tpu.memory_space<vmem>>, vector<2x128xf32>
    tpu.vector_store %arg8[%c0_70, %c0_71], %266 {strides = array<i32>} : memref<2x128xf32, #tpu.memory_space<vmem>>, vector<2x128xf32>,
    %c0_i32_72 = arith.constant 0 : i32
    %271 = arith.cmpi eq, %arg1, %c0_i32_72 : i32
    %272 = arith.extui %271 : i1 to i32
    %c0_i32_73 = arith.constant 0 : i32
    %273 = arith.cmpi ne, %272, %c0_i32_73 : i32
    scf.if %273 {
      %274 = arith.truncf %268 : vector<2x128xf32> to vector<2x128xbf16>
      %c0_74 = arith.constant 0 : index
      %c0_75 = arith.constant 0 : index
      %275 = vector.load %arg4[%c0_74, %c0_75] : memref<128x4xbf16, #tpu.memory_space<vmem>>, vector<128x4xbf16>
      %cst_76 = arith.constant dense<0.000000e+00> : vector<2x4xf32>
      %276 = tpu.matmul %274, %275, %cst_76 {dimension_numbers = #tpu.dot_dimension_numbers<[1], [0], [0], [1], [0, 0, 1, 1], [], []>} : vector<2x128xbf16>, vector<128x4xbf16>, vector<2x4xf32> -> vector<2x4xf32>
      %c0_77 = arith.constant 0 : index
      %c0_78 = arith.constant 0 : index
      %277 = vector.load %arg5[%c0_77, %c0_78] : memref<1x4xf32, #tpu.memory_space<vmem>>, vector<1x4xf32>
      %278 = vector.broadcast %277 : vector<1x4xf32> to vector<2x4xf32>
      %279 = arith.addf %276, %278 : vector<2x4xf32>
      %c0_79 = arith.constant 0 : index
      %c0_80 = arith.constant 0 : index
      %280 = vector.load %arg6[%c0_79, %c0_80] : memref<2x4xf32, #tpu.memory_space<vmem>>, vector<2x4xf32>
      tpu.vector_store %arg6[%c0_79, %c0_80], %279 {strides = array<i32>} : memref<2x4xf32, #tpu.memory_space<vmem>>, vector<2x4xf32>,
    } else {
    }
    return
  }
  func.func @transform_0(%arg0: i32, %arg1: i32) -> (i32, i32, i32) {
    %c0_i32 = arith.constant 0 : i32
    %c0_i32_0 = arith.constant 0 : i32
    return %arg1, %arg0, %c0_i32 : i32, i32, i32
  }
  func.func @transform_1(%arg0: i32, %arg1: i32) -> (i32, i32) {
    %c0_i32 = arith.constant 0 : i32
    %c0_i32_0 = arith.constant 0 : i32
    %c0_i32_1 = arith.constant 0 : i32
    return %c0_i32, %c0_i32_0 : i32, i32
  }
  func.func @transform_2(%arg0: i32, %arg1: i32) -> (i32, i32) {
    %c0_i32 = arith.constant 0 : i32
    %c0_i32_0 = arith.constant 0 : i32
    %c0_i32_1 = arith.constant 0 : i32
    return %c0_i32, %c0_i32_0 : i32, i32
  }
  func.func @transform_3(%arg0: i32, %arg1: i32) -> (i32, i32) {
    %c0_i32 = arith.constant 0 : i32
    %c0_i32_0 = arith.constant 0 : i32
    %c0_i32_1 = arith.constant 0 : i32
    return %c0_i32, %c0_i32_0 : i32, i32
  }
  func.func @transform_4(%arg0: i32, %arg1: i32) -> (i32, i32) {
    %c0_i32 = arith.constant 0 : i32
    %c0_i32_0 = arith.constant 0 : i32
    return %arg0, %c0_i32 : i32, i32
  }
}

</mosaic_0001>

<llo_original>
// kernel: lstm_model.4
$region0: #{lstm_model.4}
  #allocation0 [shape = 'u32[]', space=smem, size = 0x4, offset = 0x4, fixed_abs, tag = 'smem constant byte address 0x4 - core index']
  #allocation1 [shape = 'u32[72,128]{1,0:T(1,128)}', space=vmem, size = 0x9000, scoped, tag = 'internal scratch']
  %s0 = inlined_call_operand.vmem [shape: f32[16,16], index: 0, kind: input, shape index: {}]
  %s1 = inlined_call_operand.vmem [shape: bf16[16,512], index: 1, kind: input, shape index: {}]
  %s2 = inlined_call_operand.vmem [shape: f32[1,512], index: 2, kind: input, shape index: {}]
  %s3 = inlined_call_operand.vmem [shape: bf16[16,512], index: 3, kind: output, shape index: {}]
  %s4 = sld [smem:[#allocation0]]
  $region22: #{lstm_model.4} parent=0
    _
  %s6 = ssub.s32 1, %s4
  %s7 = scalar_select 0, %s6, %s4
  // Predicated region
  $region2: #{lstm_model.4} parent=0 // pred_check
    _
  $region3: #{lstm_model.4} parent=0 // pred_check_branch
    %9 = sbr.rel (0) target = $region5
  $region4: #{lstm_model.4} parent=0 // pred_region
    _
  $region5: #{lstm_model.4} parent=0 // pred_fallthru
    _
  // Predicated region
  $region6: #{lstm_model.4} parent=0 // pred_check
    _
  $region7: #{lstm_model.4} parent=0 // pred_check_branch
    %11 = sbr.rel (0) target = $region9
  $region8: #{lstm_model.4} parent=0 // pred_region
    _
  $region9: #{lstm_model.4} parent=0 // pred_fallthru
    _
  // Predicated region
  $region10: #{lstm_model.4} parent=0 // pred_check
    _
  $region11: #{lstm_model.4} parent=0 // pred_check_branch
    %13 = sbr.rel (0) target = $region13
  $region12: #{lstm_model.4} parent=0 // pred_region
    _
  $region13: #{lstm_model.4} parent=0 // pred_fallthru
    _
  %v15 = vld [vmem:[%s0] sm:$0xff]
  %v16 = vld [vmem:[%s0 + $0x8] sm:$0xff]
  %v17 = vpack.c.bf16 %v16, %v15
  %v18 = vld [vmem:[%s1] sm:$0xff]
  %v19 = vld [vmem:[%s1 + $0x8] sm:$0xff]
  %v20 = vld [vmem:[%s1 + $0x10] sm:$0xff]
  %v21 = vld [vmem:[%s1 + $0x18] sm:$0xff]
  %v22 = vld [vmem:[%s2] sm:$0xf]
  %v24 = vperm.slane %v22, 0
  %v25 = vperm.slane %v22, 1
  %v26 = vperm.slane %v22, 2
  %v27 = vperm.slane %v22, 3
  %v36 = vunpack.c.l.b16 %v18
  %v37 = vunpack.c.h.b16 %v18
  %v38 = vunpack.c.l.b16 %v19
  %v39 = vunpack.c.h.b16 %v19
  %v40 = vunpack.c.l.b16 %v20
  %v41 = vunpack.c.h.b16 %v20
  %v42 = vunpack.c.l.b16 %v21
  %v43 = vunpack.c.h.b16 %v21
  %v44 = vpack.c.b16 %v40, %v36
  %v45 = vpack.c.b16 %v41, %v37
  %v46 = vpack.c.b16 %v42, %v38
  %v47 = vpack.c.b16 %v43, %v39
  %vm52 = vcmask 130048
  %v54 = vsel %vm52, %v17, 0
  %56 = vmatpush.bf16.msra.mxu0 0
  %57 = vmatpush.bf16.msra.mxu0 0
  %58 = vmatpush.bf16.msra.mxu0 0
  %59 = vmatpush.bf16.msra.mxu0 0
  %60 = vmatpush.bf16.msra.mxu0 0
  %61 = vmatpush.bf16.msra.mxu0 0
  %62 = vmatpush.bf16.msra.mxu0 0
  %63 = vmatpush.bf16.msra.mxu0 %v44
  %64 = vmatmul.bf16.gmra.mxu0 %v54
  %v65 = vpop.f32.mrf.mxu0
  %v66 = vadd.f32 %v24, %v65
  %v67 = vpop.f32.mrf.mxu0
  %v68 = vadd.f32 %v24, %v67
  %69 = vdwg.mxu0
  %70 = vmatpush.bf16.msra.mxu0 0
  %71 = vmatpush.bf16.msra.mxu0 0
  %72 = vmatpush.bf16.msra.mxu0 0
  %73 = vmatpush.bf16.msra.mxu0 0
  %74 = vmatpush.bf16.msra.mxu0 0
  %75 = vmatpush.bf16.msra.mxu0 0
  %76 = vmatpush.bf16.msra.mxu0 0
  %77 = vmatpush.bf16.msra.mxu0 %v45
  %78 = vmatmul.bf16.gmra.mxu0 %v54
  %v79 = vpop.f32.mrf.mxu0
  %v80 = vadd.f32 %v25, %v79
  %v81 = vpop.f32.mrf.mxu0
  %v82 = vadd.f32 %v25, %v81
  %83 = vdwg.mxu0
  %84 = vmatpush.bf16.msra.mxu0 0
  %85 = vmatpush.bf16.msra.mxu0 0
  %86 = vmatpush.bf16.msra.mxu0 0
  %87 = vmatpush.bf16.msra.mxu0 0
  %88 = vmatpush.bf16.msra.mxu0 0
  %89 = vmatpush.bf16.msra.mxu0 0
  %90 = vmatpush.bf16.msra.mxu0 0
  %91 = vmatpush.bf16.msra.mxu0 %v46
  %92 = vmatmul.bf16.gmra.mxu0 %v54
  %v93 = vpop.f32.mrf.mxu0
  %v94 = vadd.f32 %v26, %v93
  %v95 = vpop.f32.mrf.mxu0
  %v96 = vadd.f32 %v26, %v95
  %97 = vdwg.mxu0
  %98 = vmatpush.bf16.msra.mxu0 0
  %99 = vmatpush.bf16.msra.mxu0 0
  %100 = vmatpush.bf16.msra.mxu0 0
  %101 = vmatpush.bf16.msra.mxu0 0
  %102 = vmatpush.bf16.msra.mxu0 0
  %103 = vmatpush.bf16.msra.mxu0 0
  %104 = vmatpush.bf16.msra.mxu0 0
  %105 = vmatpush.bf16.msra.mxu0 %v47
  %106 = vmatmul.bf16.gmra.mxu0 %v54
  %v107 = vpop.f32.mrf.mxu0
  %v108 = vadd.f32 %v27, %v107
  %v109 = vpop.f32.mrf.mxu0
  %v110 = vadd.f32 %v27, %v109
  %111 = vdwg.mxu0
  %v112 = vpack.c.bf16 %v80, %v66
  %v113 = vpack.c.bf16 %v108, %v94
  %v114 = vpack.c.bf16 %v82, %v68
  %v115 = vpack.c.bf16 %v110, %v96
  %116 = vst [vmem:[%s3] sm:$0xff] %v112
  %117 = vst [vmem:[%s3 + $0x8] sm:$0xff] %v113
  %118 = vst [vmem:[%s3 + $0x10] sm:$0xff] %v114
  %119 = vst [vmem:[%s3 + $0x18] sm:$0xff] %v115
  // Predicated region
  $region14: #{lstm_model.4} parent=0 // pred_check
    _
  $region15: #{lstm_model.4} parent=0 // pred_check_branch
    %121 = sbr.rel (0) target = $region17
  $region16: #{lstm_model.4} parent=0 // pred_region
    _
  $region17: #{lstm_model.4} parent=0 // pred_fallthru
    _
  // Predicated region
  $region18: #{lstm_model.4} parent=0 // pred_check
    _
  $region19: #{lstm_model.4} parent=0 // pred_check_branch
    %123 = sbr.rel (0) target = $region21
  $region20: #{lstm_model.4} parent=0 // pred_region
    _
  $region21: #{lstm_model.4} parent=0 // pred_fallthru
    _

// kernel: lstm_model.6
$region0: #{lstm_model.6}
  #allocation0 [shape = 'u32[]', space=smem, size = 0x4, offset = 0x4, fixed_abs, tag = 'smem constant byte address 0x4 - core index']
  #allocation1 [shape = 'u32[72,128]{1,0:T(1,128)}', space=vmem, size = 0x9000, scoped, tag = 'internal scratch']
  %s0 = inlined_call_operand.vmem [shape: bf16[16,128], index: 0, kind: input, shape index: {}]
  %s1 = inlined_call_operand.hbm [shape: bf16[128,512], index: 1, kind: input, shape index: {}]
  %s2 = inlined_call_operand.vmem [shape: f32[1,512], index: 2, kind: input, shape index: {}]
  %s3 = inlined_call_operand.vmem [shape: bf16[16,512], index: 3, kind: output, shape index: {}]
  %s4 = sld [smem:[#allocation0]]
  $region26: #{lstm_model.6} parent=0
    _
  %s6 = ssub.s32 1, %s4
  %s7 = scalar_select 0, %s6, %s4
  $region1: #{lstm_model.6} parent=0
    #allocation2 [shape = 'u8[131072]{0}', space=vmem, size = 0x20000, scoped, tag = 'input window, operand 1, single buffered']
    #allocation3 [shape = 's32[1]{0}', space=sflag, size = 0x4, scoped, tag = 'scoped memory for lstm_model.6']
    %8 = vsyncpa [#allocation3], 0
    // Predicated region
    $region2: #{lstm_model.6} parent=1 // pred_check
      _
    $region3: #{lstm_model.6} parent=1 // pred_check_branch
      %10 = sbr.rel (0) target = $region5
    $region4: #{lstm_model.6} parent=1 // pred_region
      _
    $region5: #{lstm_model.6} parent=1 // pred_fallthru
      _
    // Predicated region
    $region6: #{lstm_model.6} parent=1 // pred_check
      _
    $region7: #{lstm_model.6} parent=1 // pred_check_branch
      %12 = sbr.rel (0) target = $region9
    $region8: #{lstm_model.6} parent=1 // pred_region
      %14 = vsyncadd [#allocation3], 0
      %s15 = sshll.u32 %s1, 4
      %s16 = int_to_ptr.hbm [resolvable:$true] %s15
      %s17 = sshll.u32 [#allocation2], 4
      %s18 = int_to_ptr.vmem [resolvable:$true] %s17
      %23 = dma.hbm_to_vmem [thread:$0]  %s16, 4096, %s18, [#allocation3], 256, 256, 16
    $region9: #{lstm_model.6} parent=1 // pred_fallthru
      _
    // Predicated region
    $region10: #{lstm_model.6} parent=1 // pred_check
      _
    $region11: #{lstm_model.6} parent=1 // pred_check_branch
      %25 = sbr.rel (0) target = $region13
    $region12: #{lstm_model.6} parent=1 // pred_region
      _
    $region13: #{lstm_model.6} parent=1 // pred_fallthru
      _
    // Predicated region
    $region14: #{lstm_model.6} parent=1 // pred_check
      _
    $region15: #{lstm_model.6} parent=1 // pred_check_branch
      %27 = sbr.rel (0) target = $region17
    $region16: #{lstm_model.6} parent=1 // pred_region
      %29 = dma.done [#allocation3], 4096
    $region17: #{lstm_model.6} parent=1 // pred_fallthru
      _
    %v30 = vld [vmem:[%s0] sm:$0xf]
    %v31 = vld [vmem:[%s0 + $0x4] sm:$0xf]
    %v32 = vld [vmem:[#allocation2] sm:$0xff]
    %v33 = vld [vmem:[#allocation2 + $0x8] sm:$0xff]
    %v34 = vld [vmem:[#allocation2 + $0x10] sm:$0xff]
    %v35 = vld [vmem:[#allocation2 + $0x18] sm:$0xff]
    %v36 = vld [vmem:[#allocation2 + $0x20] sm:$0xff]
    %v37 = vld [vmem:[#allocation2 + $0x28] sm:$0xff]
    %v38 = vld [vmem:[#allocation2 + $0x30] sm:$0xff]
    %v39 = vld [vmem:[#allocation2 + $0x38] sm:$0xff]
    %v40 = vld [vmem:[#allocation2 + $0x40] sm:$0xff]
    %v41 = vld [vmem:[#allocation2 + $0x48] sm:$0xff]
    %v42 = vld [vmem:[#allocation2 + $0x50] sm:$0xff]
    %v43 = vld [vmem:[#allocation2 + $0x58] sm:$0xff]
    %v44 = vld [vmem:[#allocation2 + $0x60] sm:$0xff]
    %v45 = vld [vmem:[#allocation2 + $0x68] sm:$0xff]
    %v46 = vld [vmem:[#allocation2 + $0x70] sm:$0xff]
    %v47 = vld [vmem:[#allocation2 + $0x78] sm:$0xff]
    %v48 = vld [vmem:[#allocation2 + $0x80] sm:$0xff]
    %v49 = vld [vmem:[#allocation2 + $0x88] sm:$0xff]
    %v50 = vld [vmem:[#allocation2 + $0x90] sm:$0xff]
    %v51 = vld [vmem:[#allocation2 + $0x98] sm:$0xff]
    %v52 = vld [vmem:[#allocation2 + $0xa0] sm:$0xff]
    %v53 = vld [vmem:[#allocation2 + $0xa8] sm:$0xff]
    %v54 = vld [vmem:[#allocation2 + $0xb0] sm:$0xff]
    %v55 = vld [vmem:[#allocation2 + $0xb8] sm:$0xff]
    %v56 = vld [vmem:[#allocation2 + $0xc0] sm:$0xff]
    %v57 = vld [vmem:[#allocation2 + $0xc8] sm:$0xff]
    %v58 = vld [vmem:[#allocation2 + $0xd0] sm:$0xff]
    %v59 = vld [vmem:[#allocation2 + $0xd8] sm:$0xff]
    %v60 = vld [vmem:[#allocation2 + $0xe0] sm:$0xff]
    %v61 = vld [vmem:[#allocation2 + $0xe8] sm:$0xff]
    %v62 = vld [vmem:[#allocation2 + $0xf0] sm:$0xff]
    %v63 = vld [vmem:[#allocation2 + $0xf8] sm:$0xff]
    %v64 = vld [vmem:[%s2] sm:$0xf]
    %v66 = vperm.slane %v64, 0
    %v67 = vperm.slane %v64, 1
    %v68 = vperm.slane %v64, 2
    %v69 = vperm.slane %v64, 3
    %v76 = vunpack.c.l.b16 %v30
    %v77 = vunpack.c.l.b16 %v31
    %v78 = vpack.c.b16 %v77, %v76
    %v112 = vunpack.c.l.b16 %v32
    %v113 = vunpack.c.h.b16 %v32
    %v114 = vunpack.c.l.b16 %v33
    %v115 = vunpack.c.h.b16 %v33
    %v116 = vunpack.c.l.b16 %v34
    %v117 = vunpack.c.h.b16 %v34
    %v118 = vunpack.c.l.b16 %v35
    %v119 = vunpack.c.h.b16 %v35
    %v120 = vunpack.c.l.b16 %v36
    %v121 = vunpack.c.h.b16 %v36
    %v122 = vunpack.c.l.b16 %v37
    %v123 = vunpack.c.h.b16 %v37
    %v124 = vunpack.c.l.b16 %v38
    %v125 = vunpack.c.h.b16 %v38
    %v126 = vunpack.c.l.b16 %v39
    %v127 = vunpack.c.h.b16 %v39
    %v128 = vunpack.c.l.b16 %v40
    %v129 = vunpack.c.h.b16 %v40
    %v130 = vunpack.c.l.b16 %v41
    %v131 = vunpack.c.h.b16 %v41
    %v132 = vunpack.c.l.b16 %v42
    %v133 = vunpack.c.h.b16 %v42
    %v134 = vunpack.c.l.b16 %v43
    %v135 = vunpack.c.h.b16 %v43
    %v136 = vunpack.c.l.b16 %v44
    %v137 = vunpack.c.h.b16 %v44
    %v138 = vunpack.c.l.b16 %v45
    %v139 = vunpack.c.h.b16 %v45
    %v140 = vunpack.c.l.b16 %v46
    %v141 = vunpack.c.h.b16 %v46
    %v142 = vunpack.c.l.b16 %v47
    %v143 = vunpack.c.h.b16 %v47
    %v144 = vunpack.c.l.b16 %v48
    %v145 = vunpack.c.h.b16 %v48
    %v146 = vunpack.c.l.b16 %v49
    %v147 = vunpack.c.h.b16 %v49
    %v148 = vunpack.c.l.b16 %v50
    %v149 = vunpack.c.h.b16 %v50
    %v150 = vunpack.c.l.b16 %v51
    %v151 = vunpack.c.h.b16 %v51
    %v152 = vunpack.c.l.b16 %v52
    %v153 = vunpack.c.h.b16 %v52
    %v154 = vunpack.c.l.b16 %v53
    %v155 = vunpack.c.h.b16 %v53
    %v156 = vunpack.c.l.b16 %v54
    %v157 = vunpack.c.h.b16 %v54
    %v158 = vunpack.c.l.b16 %v55
    %v159 = vunpack.c.h.b16 %v55
    %v160 = vunpack.c.l.b16 %v56
    %v161 = vunpack.c.h.b16 %v56
    %v162 = vunpack.c.l.b16 %v57
    %v163 = vunpack.c.h.b16 %v57
    %v164 = vunpack.c.l.b16 %v58
    %v165 = vunpack.c.h.b16 %v58
    %v166 = vunpack.c.l.b16 %v59
    %v167 = vunpack.c.h.b16 %v59
    %v168 = vunpack.c.l.b16 %v60
    %v169 = vunpack.c.h.b16 %v60
    %v170 = vunpack.c.l.b16 %v61
    %v171 = vunpack.c.h.b16 %v61
    %v172 = vunpack.c.l.b16 %v62
    %v173 = vunpack.c.h.b16 %v62
    %v174 = vunpack.c.l.b16 %v63
    %v175 = vunpack.c.h.b16 %v63
    %v176 = vpack.c.b16 %v116, %v112
    %v177 = vpack.c.b16 %v117, %v113
    %v178 = vpack.c.b16 %v118, %v114
    %v179 = vpack.c.b16 %v119, %v115
    %v180 = vpack.c.b16 %v124, %v120
    %v181 = vpack.c.b16 %v125, %v121
    %v182 = vpack.c.b16 %v126, %v122
    %v183 = vpack.c.b16 %v127, %v123
    %v184 = vpack.c.b16 %v132, %v128
    %v185 = vpack.c.b16 %v133, %v129
    %v186 = vpack.c.b16 %v134, %v130
    %v187 = vpack.c.b16 %v135, %v131
    %v188 = vpack.c.b16 %v140, %v136
    %v189 = vpack.c.b16 %v141, %v137
    %v190 = vpack.c.b16 %v142, %v138
    %v191 = vpack.c.b16 %v143, %v139
    %v192 = vpack.c.b16 %v148, %v144
    %v193 = vpack.c.b16 %v149, %v145
    %v194 = vpack.c.b16 %v150, %v146
    %v195 = vpack.c.b16 %v151, %v147
    %v196 = vpack.c.b16 %v156, %v152
    %v197 = vpack.c.b16 %v157, %v153
    %v198 = vpack.c.b16 %v158, %v154
    %v199 = vpack.c.b16 %v159, %v155
    %v200 = vpack.c.b16 %v164, %v160
    %v201 = vpack.c.b16 %v165, %v161
    %v202 = vpack.c.b16 %v166, %v162
    %v203 = vpack.c.b16 %v167, %v163
    %v204 = vpack.c.b16 %v172, %v168
    %v205 = vpack.c.b16 %v173, %v169
    %v206 = vpack.c.b16 %v174, %v170
    %v207 = vpack.c.b16 %v175, %v171
    %240 = vmatpush.bf16.msra.mxu0 %v204
    %241 = vmatpush.bf16.msra.mxu0 %v200
    %242 = vmatpush.bf16.msra.mxu0 %v196
    %243 = vmatpush.bf16.msra.mxu0 %v192
    %244 = vmatpush.bf16.msra.mxu0 %v188
    %245 = vmatpush.bf16.msra.mxu0 %v184
    %246 = vmatpush.bf16.msra.mxu0 %v180
    %247 = vmatpush.bf16.msra.mxu0 %v176
    %248 = vmatmul.bf16.gmra.mxu0 %v78
    %v249 = vpop.f32.mrf.mxu0
    %v250 = vadd.f32 %v66, %v249
    %v251 = vpop.f32.mrf.mxu0
    %v252 = vadd.f32 %v66, %v251
    %253 = vdwg.mxu0
    %254 = vmatpush.bf16.msra.mxu0 %v205
    %255 = vmatpush.bf16.msra.mxu0 %v201
    %256 = vmatpush.bf16.msra.mxu0 %v197
    %257 = vmatpush.bf16.msra.mxu0 %v193
    %258 = vmatpush.bf16.msra.mxu0 %v189
    %259 = vmatpush.bf16.msra.mxu0 %v185
    %260 = vmatpush.bf16.msra.mxu0 %v181
    %261 = vmatpush.bf16.msra.mxu0 %v177
    %262 = vmatmul.bf16.gmra.mxu0 %v78
    %v263 = vpop.f32.mrf.mxu0
    %v264 = vadd.f32 %v67, %v263
    %v265 = vpop.f32.mrf.mxu0
    %v266 = vadd.f32 %v67, %v265
    %267 = vdwg.mxu0
    %268 = vmatpush.bf16.msra.mxu0 %v206
    %269 = vmatpush.bf16.msra.mxu0 %v202
    %270 = vmatpush.bf16.msra.mxu0 %v198
    %271 = vmatpush.bf16.msra.mxu0 %v194
    %272 = vmatpush.bf16.msra.mxu0 %v190
    %273 = vmatpush.bf16.msra.mxu0 %v186
    %274 = vmatpush.bf16.msra.mxu0 %v182
    %275 = vmatpush.bf16.msra.mxu0 %v178
    %276 = vmatmul.bf16.gmra.mxu0 %v78
    %v277 = vpop.f32.mrf.mxu0
    %v278 = vadd.f32 %v68, %v277
    %v279 = vpop.f32.mrf.mxu0
    %v280 = vadd.f32 %v68, %v279
    %281 = vdwg.mxu0
    %282 = vmatpush.bf16.msra.mxu0 %v207
    %283 = vmatpush.bf16.msra.mxu0 %v203
    %284 = vmatpush.bf16.msra.mxu0 %v199
    %285 = vmatpush.bf16.msra.mxu0 %v195
    %286 = vmatpush.bf16.msra.mxu0 %v191
    %287 = vmatpush.bf16.msra.mxu0 %v187
    %288 = vmatpush.bf16.msra.mxu0 %v183
    %289 = vmatpush.bf16.msra.mxu0 %v179
    %290 = vmatmul.bf16.gmra.mxu0 %v78
    %v291 = vpop.f32.mrf.mxu0
    %v292 = vadd.f32 %v69, %v291
    %v293 = vpop.f32.mrf.mxu0
    %v294 = vadd.f32 %v69, %v293
    %295 = vdwg.mxu0
    %v296 = vpack.c.bf16 %v264, %v250
    %v297 = vpack.c.bf16 %v292, %v278
    %v298 = vpack.c.bf16 %v266, %v252
    %v299 = vpack.c.bf16 %v294, %v280
    %300 = vst [vmem:[%s3] sm:$0xff] %v296
    %301 = vst [vmem:[%s3 + $0x8] sm:$0xff] %v297
    %302 = vst [vmem:[%s3 + $0x10] sm:$0xff] %v298
    %303 = vst [vmem:[%s3 + $0x18] sm:$0xff] %v299
    // Predicated region
    $region18: #{lstm_model.6} parent=1 // pred_check
      _
    $region19: #{lstm_model.6} parent=1 // pred_check_branch
      %305 = sbr.rel (0) target = $region21
    $region20: #{lstm_model.6} parent=1 // pred_region
      _
    $region21: #{lstm_model.6} parent=1 // pred_fallthru
      _
    // Predicated region
    $region22: #{lstm_model.6} parent=1 // pred_check
      _
    $region23: #{lstm_model.6} parent=1 // pred_check_branch
      %307 = sbr.rel (0) target = $region25
    $region24: #{lstm_model.6} parent=1 // pred_region
      _
    $region25: #{lstm_model.6} parent=1 // pred_fallthru
      _
    %308 = vsyncpa [#allocation3], 1

// kernel: lstm_model.7
$region0: #{lstm_model.7}
  #allocation0 [shape = 'u32[]', space=smem, size = 0x4, offset = 0x4, fixed_abs, tag = 'smem constant byte address 0x4 - core index']
  #allocation1 [shape = 'u32[72,128]{1,0:T(1,128)}', space=vmem, size = 0x9000, scoped, tag = 'internal scratch']
  #allocation2 [shape = 'f32[2,128]{1,0:T(2,128)}', space=vmem, size = 0x400, scoped, tag = 'scratch operand']
  #allocation3 [shape = 'f32[2,128]{1,0:T(2,128)}', space=vmem, size = 0x400, scoped, tag = 'scratch operand']
  %s0 = inlined_call_operand.vmem [shape: bf16[8,2,512], index: 0, kind: input, shape index: {}]
  %s1 = inlined_call_operand.hbm [shape: bf16[128,512], index: 1, kind: input, shape index: {}]
  %s2 = inlined_call_operand.vmem [shape: bf16[128,4], index: 2, kind: input, shape index: {}]
  %s3 = inlined_call_operand.vmem [shape: f32[1,4], index: 3, kind: input, shape index: {}]
  %s4 = inlined_call_operand.hbm [shape: f32[2,4], index: 4, kind: output, shape index: {}]
  %s5 = sld [smem:[#allocation0]]
  $region38: #{lstm_model.7} parent=0
    _
  %s7 = ssub.s32 1, %s5
  %s8 = scalar_select 0, %s7, %s5
  $region1: #{lstm_model.7} parent=0
    #allocation4 [shape = 'u8[131072]{0}', space=vmem, size = 0x20000, scoped, tag = 'input window, operand 1, single buffered']
    #allocation5 [shape = 's32[1]{0}', space=sflag, size = 0x4, scoped, tag = 'scoped memory for lstm_model.7']
    #allocation6 [shape = 's32[1]{0}', space=sflag, size = 0x4, scoped, tag = 'scoped memory for lstm_model.7']
    #allocation7 [shape = 'u8[1024]{0}', space=vmem, size = 0x400, scoped, tag = 'output window, operand 0, single buffered']
    %9 = vsyncpa [#allocation5], 0
    %10 = vsyncpa [#allocation6], 0
    // Predicated region
    $region2: #{lstm_model.7} parent=1 // pred_check
      _
    $region3: #{lstm_model.7} parent=1 // pred_check_branch
      %12 = sbr.rel (0) target = $region5
    $region4: #{lstm_model.7} parent=1 // pred_region
      _
    $region5: #{lstm_model.7} parent=1 // pred_fallthru
      _
    // Predicated region
    $region6: #{lstm_model.7} parent=1 // pred_check
      _
    $region7: #{lstm_model.7} parent=1 // pred_check_branch
      %14 = sbr.rel (0) target = $region9
    $region8: #{lstm_model.7} parent=1 // pred_region
      %16 = vsyncadd [#allocation5], 0
      %s17 = sshll.u32 %s1, 4
      %s18 = int_to_ptr.hbm [resolvable:$true] %s17
      %s19 = sshll.u32 [#allocation4], 4
      %s20 = int_to_ptr.vmem [resolvable:$true] %s19
      %25 = dma.hbm_to_vmem [thread:$0]  %s18, 4096, %s20, [#allocation5], 256, 256, 16
    $region9: #{lstm_model.7} parent=1 // pred_fallthru
      _
    // Predicated region
    $region10: #{lstm_model.7} parent=1 // pred_check
      _
    $region11: #{lstm_model.7} parent=1 // pred_check_branch
      %27 = sbr.rel (0) target = $region13
    $region12: #{lstm_model.7} parent=1 // pred_region
      _
    $region13: #{lstm_model.7} parent=1 // pred_fallthru
      _
    // Predicated region
    $region14: #{lstm_model.7} parent=1 // pred_check
      _
    $region15: #{lstm_model.7} parent=1 // pred_check_branch
      %29 = sbr.rel (0) target = $region17
    $region16: #{lstm_model.7} parent=1 // pred_region
      _
    $region17: #{lstm_model.7} parent=1 // pred_fallthru
      _
    // Predicated region
    $region18: #{lstm_model.7} parent=1 // pred_check
      _
    $region19: #{lstm_model.7} parent=1 // pred_check_branch
      %31 = sbr.rel (0) target = $region21
    $region20: #{lstm_model.7} parent=1 // pred_region
      %33 = dma.done [#allocation5], 4096
    $region21: #{lstm_model.7} parent=1 // pred_fallthru
      _
    %p34 = scmp.eq.s32.totalorder 0, 0
    // Predicated region
    $region22: #{lstm_model.7} parent=1 // pred_check
      %p35 = pneg %p34
    $region23: #{lstm_model.7} parent=1 // pred_check_branch
      %37 = sbr.rel (%p35) target = $region25
    $region24: #{lstm_model.7} parent=1 // pred_region
      %38 = vst [vmem:[#allocation2] sm:$0x3] 0.0
      %39 = vst [vmem:[#allocation3] sm:$0x3] 0.0
    $region25: #{lstm_model.7} parent=1 // pred_fallthru
      _
    %v40 = vld [vmem:[#allocation2] sm:$0x3]
    %v41 = vld [vmem:[#allocation3] sm:$0x3]
    %v42 = vld [vmem:[%s0] sm:$0xf]
    %v43 = vunpack.c.l.bf16 %v42
    %v44 = vpack.c.bf16 %v40, %v40
    %v45 = vld [vmem:[#allocation4] sm:$0xff]
    %v46 = vld [vmem:[#allocation4 + $0x8] sm:$0xff]
    %v47 = vld [vmem:[#allocation4 + $0x10] sm:$0xff]
    %v48 = vld [vmem:[#allocation4 + $0x18] sm:$0xff]
    %v49 = vld [vmem:[#allocation4 + $0x20] sm:$0xff]
    %v50 = vld [vmem:[#allocation4 + $0x28] sm:$0xff]
    %v51 = vld [vmem:[#allocation4 + $0x30] sm:$0xff]
    %v52 = vld [vmem:[#allocation4 + $0x38] sm:$0xff]
    %v53 = vld [vmem:[#allocation4 + $0x40] sm:$0xff]
    %v54 = vld [vmem:[#allocation4 + $0x48] sm:$0xff]
    %v55 = vld [vmem:[#allocation4 + $0x50] sm:$0xff]
    %v56 = vld [vmem:[#allocation4 + $0x58] sm:$0xff]
    %v57 = vld [vmem:[#allocation4 + $0x60] sm:$0xff]
    %v58 = vld [vmem:[#allocation4 + $0x68] sm:$0xff]
    %v59 = vld [vmem:[#allocation4 + $0x70] sm:$0xff]
    %v60 = vld [vmem:[#allocation4 + $0x78] sm:$0xff]
    %v61 = vld [vmem:[#allocation4 + $0x80] sm:$0xff]
    %v62 = vld [vmem:[#allocation4 + $0x88] sm:$0xff]
    %v63 = vld [vmem:[#allocation4 + $0x90] sm:$0xff]
    %v64 = vld [vmem:[#allocation4 + $0x98] sm:$0xff]
    %v65 = vld [vmem:[#allocation4 + $0xa0] sm:$0xff]
    %v66 = vld [vmem:[#allocation4 + $0xa8] sm:$0xff]
    %v67 = vld [vmem:[#allocation4 + $0xb0] sm:$0xff]
    %v68 = vld [vmem:[#allocation4 + $0xb8] sm:$0xff]
    %v69 = vld [vmem:[#allocation4 + $0xc0] sm:$0xff]
    %v70 = vld [vmem:[#allocation4 + $0xc8] sm:$0xff]
    %v71 = vld [vmem:[#allocation4 + $0xd0] sm:$0xff]
    %v72 = vld [vmem:[#allocation4 + $0xd8] sm:$0xff]
    %v73 = vld [vmem:[#allocation4 + $0xe0] sm:$0xff]
    %v74 = vld [vmem:[#allocation4 + $0xe8] sm:$0xff]
    %v75 = vld [vmem:[#allocation4 + $0xf0] sm:$0xff]
    %v76 = vld [vmem:[#allocation4 + $0xf8] sm:$0xff]
    %v109 = vunpack.c.l.b16 %v45
    %v110 = vunpack.c.h.b16 %v45
    %v111 = vunpack.c.l.b16 %v46
    %v112 = vunpack.c.h.b16 %v46
    %v113 = vunpack.c.l.b16 %v47
    %v114 = vunpack.c.h.b16 %v47
    %v115 = vunpack.c.l.b16 %v48
    %v116 = vunpack.c.h.b16 %v48
    %v117 = vunpack.c.l.b16 %v49
    %v118 = vunpack.c.h.b16 %v49
    %v119 = vunpack.c.l.b16 %v50
    %v120 = vunpack.c.h.b16 %v50
    %v121 = vunpack.c.l.b16 %v51
    %v122 = vunpack.c.h.b16 %v51
    %v123 = vunpack.c.l.b16 %v52
    %v124 = vunpack.c.h.b16 %v52
    %v125 = vunpack.c.l.b16 %v53
    %v126 = vunpack.c.h.b16 %v53
    %v127 = vunpack.c.l.b16 %v54
    %v128 = vunpack.c.h.b16 %v54
    %v129 = vunpack.c.l.b16 %v55
    %v130 = vunpack.c.h.b16 %v55
    %v131 = vunpack.c.l.b16 %v56
    %v132 = vunpack.c.h.b16 %v56
    %v133 = vunpack.c.l.b16 %v57
    %v134 = vunpack.c.h.b16 %v57
    %v135 = vunpack.c.l.b16 %v58
    %v136 = vunpack.c.h.b16 %v58
    %v137 = vunpack.c.l.b16 %v59
    %v138 = vunpack.c.h.b16 %v59
    %v139 = vunpack.c.l.b16 %v60
    %v140 = vunpack.c.h.b16 %v60
    %v141 = vunpack.c.l.b16 %v61
    %v142 = vunpack.c.h.b16 %v61
    %v143 = vunpack.c.l.b16 %v62
    %v144 = vunpack.c.h.b16 %v62
    %v145 = vunpack.c.l.b16 %v63
    %v146 = vunpack.c.h.b16 %v63
    %v147 = vunpack.c.l.b16 %v64
    %v148 = vunpack.c.h.b16 %v64
    %v149 = vunpack.c.l.b16 %v65
    %v150 = vunpack.c.h.b16 %v65
    %v151 = vunpack.c.l.b16 %v66
    %v152 = vunpack.c.h.b16 %v66
    %v153 = vunpack.c.l.b16 %v67
    %v154 = vunpack.c.h.b16 %v67
    %v155 = vunpack.c.l.b16 %v68
    %v156 = vunpack.c.h.b16 %v68
    %v157 = vunpack.c.l.b16 %v69
    %v158 = vunpack.c.h.b16 %v69
    %v159 = vunpack.c.l.b16 %v70
    %v160 = vunpack.c.h.b16 %v70
    %v161 = vunpack.c.l.b16 %v71
    %v162 = vunpack.c.h.b16 %v71
    %v163 = vunpack.c.l.b16 %v72
    %v164 = vunpack.c.h.b16 %v72
    %v165 = vunpack.c.l.b16 %v73
    %v166 = vunpack.c.h.b16 %v73
    %v167 = vunpack.c.l.b16 %v74
    %v168 = vunpack.c.h.b16 %v74
    %v169 = vunpack.c.l.b16 %v75
    %v170 = vunpack.c.h.b16 %v75
    %v171 = vunpack.c.l.b16 %v76
    %v172 = vunpack.c.h.b16 %v76
    %v173 = vpack.c.b16 %v113, %v109
    %v174 = vpack.c.b16 %v114, %v110
    %v175 = vpack.c.b16 %v115, %v111
    %v176 = vpack.c.b16 %v116, %v112
    %v177 = vpack.c.b16 %v121, %v117
    %v178 = vpack.c.b16 %v122, %v118
    %v179 = vpack.c.b16 %v123, %v119
    %v180 = vpack.c.b16 %v124, %v120
    %v181 = vpack.c.b16 %v129, %v125
    %v182 = vpack.c.b16 %v130, %v126
    %v183 = vpack.c.b16 %v131, %v127
    %v184 = vpack.c.b16 %v132, %v128
    %v185 = vpack.c.b16 %v137, %v133
    %v186 = vpack.c.b16 %v138, %v134
    %v187 = vpack.c.b16 %v139, %v135
    %v188 = vpack.c.b16 %v140, %v136
    %v189 = vpack.c.b16 %v145, %v141
    %v190 = vpack.c.b16 %v146, %v142
    %v191 = vpack.c.b16 %v147, %v143
    %v192 = vpack.c.b16 %v148, %v144
    %v193 = vpack.c.b16 %v153, %v149
    %v194 = vpack.c.b16 %v154, %v150
    %v195 = vpack.c.b16 %v155, %v151
    %v196 = vpack.c.b16 %v156, %v152
    %v197 = vpack.c.b16 %v161, %v157
    %v198 = vpack.c.b16 %v162, %v158
    %v199 = vpack.c.b16 %v163, %v159
    %v200 = vpack.c.b16 %v164, %v160
    %v201 = vpack.c.b16 %v169, %v165
    %v202 = vpack.c.b16 %v170, %v166
    %v203 = vpack.c.b16 %v171, %v167
    %v204 = vpack.c.b16 %v172, %v168
    %237 = vmatpush.bf16.msra.mxu0 %v201
    %238 = vmatpush.bf16.msra.mxu0 %v197
    %239 = vmatpush.bf16.msra.mxu0 %v193
    %240 = vmatpush.bf16.msra.mxu0 %v189
    %241 = vmatpush.bf16.msra.mxu0 %v185
    %242 = vmatpush.bf16.msra.mxu0 %v181
    %243 = vmatpush.bf16.msra.mxu0 %v177
    %244 = vmatpush.bf16.msra.mxu0 %v173
    %245 = vmatmul.bf16.gmra.mxu0 %v44
    %v246 = vpop.f32.mrf.mxu0
    %v247 = vadd.f32 0.0, %v246
    %v248 = vpop.f32.mrf.mxu0
    %249 = vdwg.mxu0
    %250 = vmatpush.bf16.msra.mxu0 %v202
    %251 = vmatpush.bf16.msra.mxu0 %v198
    %252 = vmatpush.bf16.msra.mxu0 %v194
    %253 = vmatpush.bf16.msra.mxu0 %v190
    %254 = vmatpush.bf16.msra.mxu0 %v186
    %255 = vmatpush.bf16.msra.mxu0 %v182
    %256 = vmatpush.bf16.msra.mxu0 %v178
    %257 = vmatpush.bf16.msra.mxu0 %v174
    %258 = vmatmul.bf16.gmra.mxu0 %v44
    %v259 = vpop.f32.mrf.mxu0
    %v260 = vadd.f32 0.0, %v259
    %v261 = vpop.f32.mrf.mxu0
    %262 = vdwg.mxu0
    %263 = vmatpush.bf16.msra.mxu0 %v203
    %264 = vmatpush.bf16.msra.mxu0 %v199
    %265 = vmatpush.bf16.msra.mxu0 %v195
    %266 = vmatpush.bf16.msra.mxu0 %v191
    %267 = vmatpush.bf16.msra.mxu0 %v187
    %268 = vmatpush.bf16.msra.mxu0 %v183
    %269 = vmatpush.bf16.msra.mxu0 %v179
    %270 = vmatpush.bf16.msra.mxu0 %v175
    %271 = vmatmul.bf16.gmra.mxu0 %v44
    %v272 = vpop.f32.mrf.mxu0
    %v273 = vadd.f32 0.0, %v272
    %v274 = vpop.f32.mrf.mxu0
    %275 = vdwg.mxu0
    %276 = vmatpush.bf16.msra.mxu0 %v204
    %277 = vmatpush.bf16.msra.mxu0 %v200
    %278 = vmatpush.bf16.msra.mxu0 %v196
    %279 = vmatpush.bf16.msra.mxu0 %v192
    %280 = vmatpush.bf16.msra.mxu0 %v188
    %281 = vmatpush.bf16.msra.mxu0 %v184
    %282 = vmatpush.bf16.msra.mxu0 %v180
    %283 = vmatpush.bf16.msra.mxu0 %v176
    %284 = vmatmul.bf16.gmra.mxu0 %v44
    %v285 = vpop.f32.mrf.mxu0
    %v286 = vadd.f32 0.0, %v285
    %v287 = vpop.f32.mrf.mxu0
    %288 = vdwg.mxu0
    %v293 = vrot.slane %v260, 6
    %v294 = vrot.slane %v273, 4
    %v295 = vrot.slane %v286, 2
    %vm296 = vcmask 1041408
    %v297 = vsel %vm296, %v247, %v293
    %vm298 = vcmask 1045508
    %v299 = vsel %vm298, %v294, %v295
    %vm300 = vcmask 1043456
    %v301 = vsel %vm300, %v297, %v299
    %v303 = vadd.f32 %v43, %v301
    %v304 = vxor.u32 %v303, 2147483648
    %v305 = vmul.f32 %v304, 1.442695
    %v306 = vpow.pop %v305
    %v307 = vadd.f32 %v306, 1.0
    %v308 = vrcp.pop %v307
    %v309 = vmul.f32 %v307, %v308
    %v310 = vsub.f32 1.0, %v309
    %v311 = vmul.f32 %v308, %v310
    %v312 = vadd.f32 %v308, %v311
    %vm313 = vweird.f32 %v307
    %vm314 = vweird.f32 %v308
    %vm315 = vmor %vm313, %vm314
    %v316 = vsel %vm315, %v308, %v312
    %v317 = vand.u32 2147483647, %v307
    %vm318 = vcmp.eq.f32.partialorder %v317, 8.507059e+37
    %v319 = vand.u32 %v307, 2147483648
    %v320 = vor.u32 1.1754944e-38, %v319
    %v321 = vsel %vm318, %v320, %v316
    %v322 = vmul.f32 1.0, %v321
    %v324 = vrot.slane %v303, 2
    %v326 = vxor.u32 %v324, 2147483648
    %v327 = vmul.f32 %v326, 1.442695
    %v328 = vpow.pop %v327
    %v329 = vadd.f32 %v328, 1.0
    %v330 = vrcp.pop %v329
    %v331 = vmul.f32 %v329, %v330
    %v332 = vsub.f32 1.0, %v331
    %v333 = vmul.f32 %v330, %v332
    %v334 = vadd.f32 %v330, %v333
    %vm335 = vweird.f32 %v329
    %vm336 = vweird.f32 %v330
    %vm337 = vmor %vm335, %vm336
    %v338 = vsel %vm337, %v330, %v334
    %v339 = vand.u32 2147483647, %v329
    %vm340 = vcmp.eq.f32.partialorder %v339, 8.507059e+37
    %v341 = vand.u32 %v329, 2147483648
    %v342 = vor.u32 1.1754944e-38, %v341
    %v343 = vsel %vm340, %v342, %v338
    %v344 = vmul.f32 1.0, %v343
    %v345 = vrot.slane %v303, 4
    %v347 = vtanh.pop %v345
    %v348 = vrot.slane %v303, 6
    %v350 = vxor.u32 %v348, 2147483648
    %v351 = vmul.f32 %v350, 1.442695
    %v352 = vpow.pop %v351
    %v353 = vadd.f32 %v352, 1.0
    %v354 = vrcp.pop %v353
    %v355 = vmul.f32 %v353, %v354
    %v356 = vsub.f32 1.0, %v355
    %v357 = vmul.f32 %v354, %v356
    %v358 = vadd.f32 %v354, %v357
    %vm359 = vweird.f32 %v353
    %vm360 = vweird.f32 %v354
    %vm361 = vmor %vm359, %vm360
    %v362 = vsel %vm361, %v354, %v358
    %v363 = vand.u32 2147483647, %v353
    %vm364 = vcmp.eq.f32.partialorder %v363, 8.507059e+37
    %v365 = vand.u32 %v353, 2147483648
    %v366 = vor.u32 1.1754944e-38, %v365
    %v367 = vsel %vm364, %v366, %v362
    %v368 = vmul.f32 1.0, %v367
    %v369 = vmul.f32 %v344, %v41
    %v370 = vmul.f32 %v322, %v347
    %v371 = vadd.f32 %v369, %v370
    %v372 = vtanh.pop %v371
    %v373 = vmul.f32 %v368, %v372
    %s374 = scalar_lea.vmem %s0, 4
    %v375 = vld [vmem:[%s374] sm:$0xf]
    %v376 = vunpack.c.l.bf16 %v375
    %v377 = vpack.c.bf16 %v373, %v373
    %378 = vmatpush.bf16.msra.mxu0 %v201
    %379 = vmatpush.bf16.msra.mxu0 %v197
    %380 = vmatpush.bf16.msra.mxu0 %v193
    %381 = vmatpush.bf16.msra.mxu0 %v189
    %382 = vmatpush.bf16.msra.mxu0 %v185
    %383 = vmatpush.bf16.msra.mxu0 %v181
    %384 = vmatpush.bf16.msra.mxu0 %v177
    %385 = vmatpush.bf16.msra.mxu0 %v173
    %386 = vmatmul.bf16.gmra.mxu0 %v377
    %v387 = vpop.f32.mrf.mxu0
    %v388 = vadd.f32 0.0, %v387
    %v389 = vpop.f32.mrf.mxu0
    %390 = vdwg.mxu0
    %391 = vmatpush.bf16.msra.mxu0 %v202
    %392 = vmatpush.bf16.msra.mxu0 %v198
    %393 = vmatpush.bf16.msra.mxu0 %v194
    %394 = vmatpush.bf16.msra.mxu0 %v190
    %395 = vmatpush.bf16.msra.mxu0 %v186
    %396 = vmatpush.bf16.msra.mxu0 %v182
    %397 = vmatpush.bf16.msra.mxu0 %v178
    %398 = vmatpush.bf16.msra.mxu0 %v174
    %399 = vmatmul.bf16.gmra.mxu0 %v377
    %v400 = vpop.f32.mrf.mxu0
    %v401 = vadd.f32 0.0, %v400
    %v402 = vpop.f32.mrf.mxu0
    %403 = vdwg.mxu0
    %404 = vmatpush.bf16.msra.mxu0 %v203
    %405 = vmatpush.bf16.msra.mxu0 %v199
    %406 = vmatpush.bf16.msra.mxu0 %v195
    %407 = vmatpush.bf16.msra.mxu0 %v191
    %408 = vmatpush.bf16.msra.mxu0 %v187
    %409 = vmatpush.bf16.msra.mxu0 %v183
    %410 = vmatpush.bf16.msra.mxu0 %v179
    %411 = vmatpush.bf16.msra.mxu0 %v175
    %412 = vmatmul.bf16.gmra.mxu0 %v377
    %v413 = vpop.f32.mrf.mxu0
    %v414 = vadd.f32 0.0, %v413
    %v415 = vpop.f32.mrf.mxu0
    %416 = vdwg.mxu0
    %417 = vmatpush.bf16.msra.mxu0 %v204
    %418 = vmatpush.bf16.msra.mxu0 %v200
    %419 = vmatpush.bf16.msra.mxu0 %v196
    %420 = vmatpush.bf16.msra.mxu0 %v192
    %421 = vmatpush.bf16.msra.mxu0 %v188
    %422 = vmatpush.bf16.msra.mxu0 %v184
    %423 = vmatpush.bf16.msra.mxu0 %v180
    %424 = vmatpush.bf16.msra.mxu0 %v176
    %425 = vmatmul.bf16.gmra.mxu0 %v377
    %v426 = vpop.f32.mrf.mxu0
    %v427 = vadd.f32 0.0, %v426
    %v428 = vpop.f32.mrf.mxu0
    %429 = vdwg.mxu0
    %v434 = vrot.slane %v401, 6
    %v435 = vrot.slane %v414, 4
    %v436 = vrot.slane %v427, 2
    %v437 = vsel %vm296, %v388, %v434
    %v438 = vsel %vm298, %v435, %v436
    %v439 = vsel %vm300, %v437, %v438
    %v441 = vadd.f32 %v376, %v439
    %v442 = vxor.u32 %v441, 2147483648
    %v443 = vmul.f32 %v442, 1.442695
    %v444 = vpow.pop %v443
    %v445 = vadd.f32 %v444, 1.0
    %v446 = vrcp.pop %v445
    %v447 = vmul.f32 %v445, %v446
    %v448 = vsub.f32 1.0, %v447
    %v449 = vmul.f32 %v446, %v448
    %v450 = vadd.f32 %v446, %v449
    %vm451 = vweird.f32 %v445
    %vm452 = vweird.f32 %v446
    %vm453 = vmor %vm451, %vm452
    %v454 = vsel %vm453, %v446, %v450
    %v455 = vand.u32 2147483647, %v445
    %vm456 = vcmp.eq.f32.partialorder %v455, 8.507059e+37
    %v457 = vand.u32 %v445, 2147483648
    %v458 = vor.u32 1.1754944e-38, %v457
    %v459 = vsel %vm456, %v458, %v454
    %v460 = vmul.f32 1.0, %v459
    %v462 = vrot.slane %v441, 2
    %v464 = vxor.u32 %v462, 2147483648
    %v465 = vmul.f32 %v464, 1.442695
    %v466 = vpow.pop %v465
    %v467 = vadd.f32 %v466, 1.0
    %v468 = vrcp.pop %v467
    %v469 = vmul.f32 %v467, %v468
    %v470 = vsub.f32 1.0, %v469
    %v471 = vmul.f32 %v468, %v470
    %v472 = vadd.f32 %v468, %v471
    %vm473 = vweird.f32 %v467
    %vm474 = vweird.f32 %v468
    %vm475 = vmor %vm473, %vm474
    %v476 = vsel %vm475, %v468, %v472
    %v477 = vand.u32 2147483647, %v467
    %vm478 = vcmp.eq.f32.partialorder %v477, 8.507059e+37
    %v479 = vand.u32 %v467, 2147483648
    %v480 = vor.u32 1.1754944e-38, %v479
    %v481 = vsel %vm478, %v480, %v476
    %v482 = vmul.f32 1.0, %v481
    %v483 = vrot.slane %v441, 4
    %v485 = vtanh.pop %v483
    %v486 = vrot.slane %v441, 6
    %v488 = vxor.u32 %v486, 2147483648
    %v489 = vmul.f32 %v488, 1.442695
    %v490 = vpow.pop %v489
    %v491 = vadd.f32 %v490, 1.0
    %v492 = vrcp.pop %v491
    %v493 = vmul.f32 %v491, %v492
    %v494 = vsub.f32 1.0, %v493
    %v495 = vmul.f32 %v492, %v494
    %v496 = vadd.f32 %v492, %v495
    %vm497 = vweird.f32 %v491
    %vm498 = vweird.f32 %v492
    %vm499 = vmor %vm497, %vm498
    %v500 = vsel %vm499, %v492, %v496
    %v501 = vand.u32 2147483647, %v491
    %vm502 = vcmp.eq.f32.partialorder %v501, 8.507059e+37
    %v503 = vand.u32 %v491, 2147483648
    %v504 = vor.u32 1.1754944e-38, %v503
    %v505 = vsel %vm502, %v504, %v500
    %v506 = vmul.f32 1.0, %v505
    %v507 = vmul.f32 %v482, %v371
    %v508 = vmul.f32 %v460, %v485
    %v509 = vadd.f32 %v507, %v508
    %v510 = vtanh.pop %v509
    %v511 = vmul.f32 %v506, %v510
    %s512 = scalar_lea.vmem %s0, 8
    %v513 = vld [vmem:[%s512] sm:$0xf]
    %v514 = vunpack.c.l.bf16 %v513
    %v515 = vpack.c.bf16 %v511, %v511
    %516 = vmatpush.bf16.msra.mxu0 %v201
    %517 = vmatpush.bf16.msra.mxu0 %v197
    %518 = vmatpush.bf16.msra.mxu0 %v193
    %519 = vmatpush.bf16.msra.mxu0 %v189
    %520 = vmatpush.bf16.msra.mxu0 %v185
    %521 = vmatpush.bf16.msra.mxu0 %v181
    %522 = vmatpush.bf16.msra.mxu0 %v177
    %523 = vmatpush.bf16.msra.mxu0 %v173
    %524 = vmatmul.bf16.gmra.mxu0 %v515
    %v525 = vpop.f32.mrf.mxu0
    %v526 = vadd.f32 0.0, %v525
    %v527 = vpop.f32.mrf.mxu0
    %528 = vdwg.mxu0
    %529 = vmatpush.bf16.msra.mxu0 %v202
    %530 = vmatpush.bf16.msra.mxu0 %v198
    %531 = vmatpush.bf16.msra.mxu0 %v194
    %532 = vmatpush.bf16.msra.mxu0 %v190
    %533 = vmatpush.bf16.msra.mxu0 %v186
    %534 = vmatpush.bf16.msra.mxu0 %v182
    %535 = vmatpush.bf16.msra.mxu0 %v178
    %536 = vmatpush.bf16.msra.mxu0 %v174
    %537 = vmatmul.bf16.gmra.mxu0 %v515
    %v538 = vpop.f32.mrf.mxu0
    %v539 = vadd.f32 0.0, %v538
    %v540 = vpop.f32.mrf.mxu0
    %541 = vdwg.mxu0
    %542 = vmatpush.bf16.msra.mxu0 %v203
    %543 = vmatpush.bf16.msra.mxu0 %v199
    %544 = vmatpush.bf16.msra.mxu0 %v195
    %545 = vmatpush.bf16.msra.mxu0 %v191
    %546 = vmatpush.bf16.msra.mxu0 %v187
    %547 = vmatpush.bf16.msra.mxu0 %v183
    %548 = vmatpush.bf16.msra.mxu0 %v179
    %549 = vmatpush.bf16.msra.mxu0 %v175
    %550 = vmatmul.bf16.gmra.mxu0 %v515
    %v551 = vpop.f32.mrf.mxu0
    %v552 = vadd.f32 0.0, %v551
    %v553 = vpop.f32.mrf.mxu0
    %554 = vdwg.mxu0
    %555 = vmatpush.bf16.msra.mxu0 %v204
    %556 = vmatpush.bf16.msra.mxu0 %v200
    %557 = vmatpush.bf16.msra.mxu0 %v196
    %558 = vmatpush.bf16.msra.mxu0 %v192
    %559 = vmatpush.bf16.msra.mxu0 %v188
    %560 = vmatpush.bf16.msra.mxu0 %v184
    %561 = vmatpush.bf16.msra.mxu0 %v180
    %562 = vmatpush.bf16.msra.mxu0 %v176
    %563 = vmatmul.bf16.gmra.mxu0 %v515
    %v564 = vpop.f32.mrf.mxu0
    %v565 = vadd.f32 0.0, %v564
    %v566 = vpop.f32.mrf.mxu0
    %567 = vdwg.mxu0
    %v572 = vrot.slane %v539, 6
    %v573 = vrot.slane %v552, 4
    %v574 = vrot.slane %v565, 2
    %v575 = vsel %vm296, %v526, %v572
    %v576 = vsel %vm298, %v573, %v574
    %v577 = vsel %vm300, %v575, %v576
    %v579 = vadd.f32 %v514, %v577
    %v580 = vxor.u32 %v579, 2147483648
    %v581 = vmul.f32 %v580, 1.442695
    %v582 = vpow.pop %v581
    %v583 = vadd.f32 %v582, 1.0
    %v584 = vrcp.pop %v583
    %v585 = vmul.f32 %v583, %v584
    %v586 = vsub.f32 1.0, %v585
    %v587 = vmul.f32 %v584, %v586
    %v588 = vadd.f32 %v584, %v587
    %vm589 = vweird.f32 %v583
    %vm590 = vweird.f32 %v584
    %vm591 = vmor %vm589, %vm590
    %v592 = vsel %vm591, %v584, %v588
    %v593 = vand.u32 2147483647, %v583
    %vm594 = vcmp.eq.f32.partialorder %v593, 8.507059e+37
    %v595 = vand.u32 %v583, 2147483648
    %v596 = vor.u32 1.1754944e-38, %v595
    %v597 = vsel %vm594, %v596, %v592
    %v598 = vmul.f32 1.0, %v597
    %v600 = vrot.slane %v579, 2
    %v602 = vxor.u32 %v600, 2147483648
    %v603 = vmul.f32 %v602, 1.442695
    %v604 = vpow.pop %v603
    %v605 = vadd.f32 %v604, 1.0
    %v606 = vrcp.pop %v605
    %v607 = vmul.f32 %v605, %v606
    %v608 = vsub.f32 1.0, %v607
    %v609 = vmul.f32 %v606, %v608
    %v610 = vadd.f32 %v606, %v609
    %vm611 = vweird.f32 %v605
    %vm612 = vweird.f32 %v606
    %vm613 = vmor %vm611, %vm612
    %v614 = vsel %vm613, %v606, %v610
    %v615 = vand.u32 2147483647, %v605
    %vm616 = vcmp.eq.f32.partialorder %v615, 8.507059e+37
    %v617 = vand.u32 %v605, 2147483648
    %v618 = vor.u32 1.1754944e-38, %v617
    %v619 = vsel %vm616, %v618, %v614
    %v620 = vmul.f32 1.0, %v619
    %v621 = vrot.slane %v579, 4
    %v623 = vtanh.pop %v621
    %v624 = vrot.slane %v579, 6
    %v626 = vxor.u32 %v624, 2147483648
    %v627 = vmul.f32 %v626, 1.442695
    %v628 = vpow.pop %v627
    %v629 = vadd.f32 %v628, 1.0
    %v630 = vrcp.pop %v629
    %v631 = vmul.f32 %v629, %v630
    %v632 = vsub.f32 1.0, %v631
    %v633 = vmul.f32 %v630, %v632
    %v634 = vadd.f32 %v630, %v633
    %vm635 = vweird.f32 %v629
    %vm636 = vweird.f32 %v630
    %vm637 = vmor %vm635, %vm636
    %v638 = vsel %vm637, %v630, %v634
    %v639 = vand.u32 2147483647, %v629
    %vm640 = vcmp.eq.f32.partialorder %v639, 8.507059e+37
    %v641 = vand.u32 %v629, 2147483648
    %v642 = vor.u32 1.1754944e-38, %v641
    %v643 = vsel %vm640, %v642, %v638
    %v644 = vmul.f32 1.0, %v643
    %v645 = vmul.f32 %v620, %v509
    %v646 = vmul.f32 %v598, %v623
    %v647 = vadd.f32 %v645, %v646
    %v648 = vtanh.pop %v647
    %v649 = vmul.f32 %v644, %v648
    %s650 = scalar_lea.vmem %s0, 12
    %v651 = vld [vmem:[%s650] sm:$0xf]
    %v652 = vunpack.c.l.bf16 %v651
    %v653 = vpack.c.bf16 %v649, %v649
    %654 = vmatpush.bf16.msra.mxu0 %v201
    %655 = vmatpush.bf16.msra.mxu0 %v197
    %656 = vmatpush.bf16.msra.mxu0 %v193
    %657 = vmatpush.bf16.msra.mxu0 %v189
    %658 = vmatpush.bf16.msra.mxu0 %v185
    %659 = vmatpush.bf16.msra.mxu0 %v181
    %660 = vmatpush.bf16.msra.mxu0 %v177
    %661 = vmatpush.bf16.msra.mxu0 %v173
    %662 = vmatmul.bf16.gmra.mxu0 %v653
    %v663 = vpop.f32.mrf.mxu0
    %v664 = vadd.f32 0.0, %v663
    %v665 = vpop.f32.mrf.mxu0
    %666 = vdwg.mxu0
    %667 = vmatpush.bf16.msra.mxu0 %v202
    %668 = vmatpush.bf16.msra.mxu0 %v198
    %669 = vmatpush.bf16.msra.mxu0 %v194
    %670 = vmatpush.bf16.msra.mxu0 %v190
    %671 = vmatpush.bf16.msra.mxu0 %v186
    %672 = vmatpush.bf16.msra.mxu0 %v182
    %673 = vmatpush.bf16.msra.mxu0 %v178
    %674 = vmatpush.bf16.msra.mxu0 %v174
    %675 = vmatmul.bf16.gmra.mxu0 %v653
    %v676 = vpop.f32.mrf.mxu0
    %v677 = vadd.f32 0.0, %v676
    %v678 = vpop.f32.mrf.mxu0
    %679 = vdwg.mxu0
    %680 = vmatpush.bf16.msra.mxu0 %v203
    %681 = vmatpush.bf16.msra.mxu0 %v199
    %682 = vmatpush.bf16.msra.mxu0 %v195
    %683 = vmatpush.bf16.msra.mxu0 %v191
    %684 = vmatpush.bf16.msra.mxu0 %v187
    %685 = vmatpush.bf16.msra.mxu0 %v183
    %686 = vmatpush.bf16.msra.mxu0 %v179
    %687 = vmatpush.bf16.msra.mxu0 %v175
    %688 = vmatmul.bf16.gmra.mxu0 %v653
    %v689 = vpop.f32.mrf.mxu0
    %v690 = vadd.f32 0.0, %v689
    %v691 = vpop.f32.mrf.mxu0
    %692 = vdwg.mxu0
    %693 = vmatpush.bf16.msra.mxu0 %v204
    %694 = vmatpush.bf16.msra.mxu0 %v200
    %695 = vmatpush.bf16.msra.mxu0 %v196
    %696 = vmatpush.bf16.msra.mxu0 %v192
    %697 = vmatpush.bf16.msra.mxu0 %v188
    %698 = vmatpush.bf16.msra.mxu0 %v184
    %699 = vmatpush.bf16.msra.mxu0 %v180
    %700 = vmatpush.bf16.msra.mxu0 %v176
    %701 = vmatmul.bf16.gmra.mxu0 %v653
    %v702 = vpop.f32.mrf.mxu0
    %v703 = vadd.f32 0.0, %v702
    %v704 = vpop.f32.mrf.mxu0
    %705 = vdwg.mxu0
    %v710 = vrot.slane %v677, 6
    %v711 = vrot.slane %v690, 4
    %v712 = vrot.slane %v703, 2
    %v713 = vsel %vm296, %v664, %v710
    %v714 = vsel %vm298, %v711, %v712
    %v715 = vsel %vm300, %v713, %v714
    %v717 = vadd.f32 %v652, %v715
    %v718 = vxor.u32 %v717, 2147483648
    %v719 = vmul.f32 %v718, 1.442695
    %v720 = vpow.pop %v719
    %v721 = vadd.f32 %v720, 1.0
    %v722 = vrcp.pop %v721
    %v723 = vmul.f32 %v721, %v722
    %v724 = vsub.f32 1.0, %v723
    %v725 = vmul.f32 %v722, %v724
    %v726 = vadd.f32 %v722, %v725
    %vm727 = vweird.f32 %v721
    %vm728 = vweird.f32 %v722
    %vm729 = vmor %vm727, %vm728
    %v730 = vsel %vm729, %v722, %v726
    %v731 = vand.u32 2147483647, %v721
    %vm732 = vcmp.eq.f32.partialorder %v731, 8.507059e+37
    %v733 = vand.u32 %v721, 2147483648
    %v734 = vor.u32 1.1754944e-38, %v733
    %v735 = vsel %vm732, %v734, %v730
    %v736 = vmul.f32 1.0, %v735
    %v738 = vrot.slane %v717, 2
    %v740 = vxor.u32 %v738, 2147483648
    %v741 = vmul.f32 %v740, 1.442695
    %v742 = vpow.pop %v741
    %v743 = vadd.f32 %v742, 1.0
    %v744 = vrcp.pop %v743
    %v745 = vmul.f32 %v743, %v744
    %v746 = vsub.f32 1.0, %v745
    %v747 = vmul.f32 %v744, %v746
    %v748 = vadd.f32 %v744, %v747
    %vm749 = vweird.f32 %v743
    %vm750 = vweird.f32 %v744
    %vm751 = vmor %vm749, %vm750
    %v752 = vsel %vm751, %v744, %v748
    %v753 = vand.u32 2147483647, %v743
    %vm754 = vcmp.eq.f32.partialorder %v753, 8.507059e+37
    %v755 = vand.u32 %v743, 2147483648
    %v756 = vor.u32 1.1754944e-38, %v755
    %v757 = vsel %vm754, %v756, %v752
    %v758 = vmul.f32 1.0, %v757
    %v759 = vrot.slane %v717, 4
    %v761 = vtanh.pop %v759
    %v762 = vrot.slane %v717, 6
    %v764 = vxor.u32 %v762, 2147483648
    %v765 = vmul.f32 %v764, 1.442695
    %v766 = vpow.pop %v765
    %v767 = vadd.f32 %v766, 1.0
    %v768 = vrcp.pop %v767
    %v769 = vmul.f32 %v767, %v768
    %v770 = vsub.f32 1.0, %v769
    %v771 = vmul.f32 %v768, %v770
    %v772 = vadd.f32 %v768, %v771
    %vm773 = vweird.f32 %v767
    %vm774 = vweird.f32 %v768
    %vm775 = vmor %vm773, %vm774
    %v776 = vsel %vm775, %v768, %v772
    %v777 = vand.u32 2147483647, %v767
    %vm778 = vcmp.eq.f32.partialorder %v777, 8.507059e+37
    %v779 = vand.u32 %v767, 2147483648
    %v780 = vor.u32 1.1754944e-38, %v779
    %v781 = vsel %vm778, %v780, %v776
    %v782 = vmul.f32 1.0, %v781
    %v783 = vmul.f32 %v758, %v647
    %v784 = vmul.f32 %v736, %v761
    %v785 = vadd.f32 %v783, %v784
    %v786 = vtanh.pop %v785
    %v787 = vmul.f32 %v782, %v786
    %s788 = scalar_lea.vmem %s0, 16
    %v789 = vld [vmem:[%s788] sm:$0xf]
    %v790 = vunpack.c.l.bf16 %v789
    %v791 = vpack.c.bf16 %v787, %v787
    %792 = vmatpush.bf16.msra.mxu0 %v201
    %793 = vmatpush.bf16.msra.mxu0 %v197
    %794 = vmatpush.bf16.msra.mxu0 %v193
    %795 = vmatpush.bf16.msra.mxu0 %v189
    %796 = vmatpush.bf16.msra.mxu0 %v185
    %797 = vmatpush.bf16.msra.mxu0 %v181
    %798 = vmatpush.bf16.msra.mxu0 %v177
    %799 = vmatpush.bf16.msra.mxu0 %v173
    %800 = vmatmul.bf16.gmra.mxu0 %v791
    %v801 = vpop.f32.mrf.mxu0
    %v802 = vadd.f32 0.0, %v801
    %v803 = vpop.f32.mrf.mxu0
    %804 = vdwg.mxu0
    %805 = vmatpush.bf16.msra.mxu0 %v202
    %806 = vmatpush.bf16.msra.mxu0 %v198
    %807 = vmatpush.bf16.msra.mxu0 %v194
    %808 = vmatpush.bf16.msra.mxu0 %v190
    %809 = vmatpush.bf16.msra.mxu0 %v186
    %810 = vmatpush.bf16.msra.mxu0 %v182
    %811 = vmatpush.bf16.msra.mxu0 %v178
    %812 = vmatpush.bf16.msra.mxu0 %v174
    %813 = vmatmul.bf16.gmra.mxu0 %v791
    %v814 = vpop.f32.mrf.mxu0
    %v815 = vadd.f32 0.0, %v814
    %v816 = vpop.f32.mrf.mxu0
    %817 = vdwg.mxu0
    %818 = vmatpush.bf16.msra.mxu0 %v203
    %819 = vmatpush.bf16.msra.mxu0 %v199
    %820 = vmatpush.bf16.msra.mxu0 %v195
    %821 = vmatpush.bf16.msra.mxu0 %v191
    %822 = vmatpush.bf16.msra.mxu0 %v187
    %823 = vmatpush.bf16.msra.mxu0 %v183
    %824 = vmatpush.bf16.msra.mxu0 %v179
    %825 = vmatpush.bf16.msra.mxu0 %v175
    %826 = vmatmul.bf16.gmra.mxu0 %v791
    %v827 = vpop.f32.mrf.mxu0
    %v828 = vadd.f32 0.0, %v827
    %v829 = vpop.f32.mrf.mxu0
    %830 = vdwg.mxu0
    %831 = vmatpush.bf16.msra.mxu0 %v204
    %832 = vmatpush.bf16.msra.mxu0 %v200
    %833 = vmatpush.bf16.msra.mxu0 %v196
    %834 = vmatpush.bf16.msra.mxu0 %v192
    %835 = vmatpush.bf16.msra.mxu0 %v188
    %836 = vmatpush.bf16.msra.mxu0 %v184
    %837 = vmatpush.bf16.msra.mxu0 %v180
    %838 = vmatpush.bf16.msra.mxu0 %v176
    %839 = vmatmul.bf16.gmra.mxu0 %v791
    %v840 = vpop.f32.mrf.mxu0
    %v841 = vadd.f32 0.0, %v840
    %v842 = vpop.f32.mrf.mxu0
    %843 = vdwg.mxu0
    %v848 = vrot.slane %v815, 6
    %v849 = vrot.slane %v828, 4
    %v850 = vrot.slane %v841, 2
    %v851 = vsel %vm296, %v802, %v848
    %v852 = vsel %vm298, %v849, %v850
    %v853 = vsel %vm300, %v851, %v852
    %v855 = vadd.f32 %v790, %v853
    %v856 = vxor.u32 %v855, 2147483648
    %v857 = vmul.f32 %v856, 1.442695
    %v858 = vpow.pop %v857
    %v859 = vadd.f32 %v858, 1.0
    %v860 = vrcp.pop %v859
    %v861 = vmul.f32 %v859, %v860
    %v862 = vsub.f32 1.0, %v861
    %v863 = vmul.f32 %v860, %v862
    %v864 = vadd.f32 %v860, %v863
    %vm865 = vweird.f32 %v859
    %vm866 = vweird.f32 %v860
    %vm867 = vmor %vm865, %vm866
    %v868 = vsel %vm867, %v860, %v864
    %v869 = vand.u32 2147483647, %v859
    %vm870 = vcmp.eq.f32.partialorder %v869, 8.507059e+37
    %v871 = vand.u32 %v859, 2147483648
    %v872 = vor.u32 1.1754944e-38, %v871
    %v873 = vsel %vm870, %v872, %v868
    %v874 = vmul.f32 1.0, %v873
    %v876 = vrot.slane %v855, 2
    %v878 = vxor.u32 %v876, 2147483648
    %v879 = vmul.f32 %v878, 1.442695
    %v880 = vpow.pop %v879
    %v881 = vadd.f32 %v880, 1.0
    %v882 = vrcp.pop %v881
    %v883 = vmul.f32 %v881, %v882
    %v884 = vsub.f32 1.0, %v883
    %v885 = vmul.f32 %v882, %v884
    %v886 = vadd.f32 %v882, %v885
    %vm887 = vweird.f32 %v881
    %vm888 = vweird.f32 %v882
    %vm889 = vmor %vm887, %vm888
    %v890 = vsel %vm889, %v882, %v886
    %v891 = vand.u32 2147483647, %v881
    %vm892 = vcmp.eq.f32.partialorder %v891, 8.507059e+37
    %v893 = vand.u32 %v881, 2147483648
    %v894 = vor.u32 1.1754944e-38, %v893
    %v895 = vsel %vm892, %v894, %v890
    %v896 = vmul.f32 1.0, %v895
    %v897 = vrot.slane %v855, 4
    %v899 = vtanh.pop %v897
    %v900 = vrot.slane %v855, 6
    %v902 = vxor.u32 %v900, 2147483648
    %v903 = vmul.f32 %v902, 1.442695
    %v904 = vpow.pop %v903
    %v905 = vadd.f32 %v904, 1.0
    %v906 = vrcp.pop %v905
    %v907 = vmul.f32 %v905, %v906
    %v908 = vsub.f32 1.0, %v907
    %v909 = vmul.f32 %v906, %v908
    %v910 = vadd.f32 %v906, %v909
    %vm911 = vweird.f32 %v905
    %vm912 = vweird.f32 %v906
    %vm913 = vmor %vm911, %vm912
    %v914 = vsel %vm913, %v906, %v910
    %v915 = vand.u32 2147483647, %v905
    %vm916 = vcmp.eq.f32.partialorder %v915, 8.507059e+37
    %v917 = vand.u32 %v905, 2147483648
    %v918 = vor.u32 1.1754944e-38, %v917
    %v919 = vsel %vm916, %v918, %v914
    %v920 = vmul.f32 1.0, %v919
    %v921 = vmul.f32 %v896, %v785
    %v922 = vmul.f32 %v874, %v899
    %v923 = vadd.f32 %v921, %v922
    %v924 = vtanh.pop %v923
    %v925 = vmul.f32 %v920, %v924
    %s926 = scalar_lea.vmem %s0, 20
    %v927 = vld [vmem:[%s926] sm:$0xf]
    %v928 = vunpack.c.l.bf16 %v927
    %v929 = vpack.c.bf16 %v925, %v925
    %930 = vmatpush.bf16.msra.mxu0 %v201
    %931 = vmatpush.bf16.msra.mxu0 %v197
    %932 = vmatpush.bf16.msra.mxu0 %v193
    %933 = vmatpush.bf16.msra.mxu0 %v189
    %934 = vmatpush.bf16.msra.mxu0 %v185
    %935 = vmatpush.bf16.msra.mxu0 %v181
    %936 = vmatpush.bf16.msra.mxu0 %v177
    %937 = vmatpush.bf16.msra.mxu0 %v173
    %938 = vmatmul.bf16.gmra.mxu0 %v929
    %v939 = vpop.f32.mrf.mxu0
    %v940 = vadd.f32 0.0, %v939
    %v941 = vpop.f32.mrf.mxu0
    %942 = vdwg.mxu0
    %943 = vmatpush.bf16.msra.mxu0 %v202
    %944 = vmatpush.bf16.msra.mxu0 %v198
    %945 = vmatpush.bf16.msra.mxu0 %v194
    %946 = vmatpush.bf16.msra.mxu0 %v190
    %947 = vmatpush.bf16.msra.mxu0 %v186
    %948 = vmatpush.bf16.msra.mxu0 %v182
    %949 = vmatpush.bf16.msra.mxu0 %v178
    %950 = vmatpush.bf16.msra.mxu0 %v174
    %951 = vmatmul.bf16.gmra.mxu0 %v929
    %v952 = vpop.f32.mrf.mxu0
    %v953 = vadd.f32 0.0, %v952
    %v954 = vpop.f32.mrf.mxu0
    %955 = vdwg.mxu0
    %956 = vmatpush.bf16.msra.mxu0 %v203
    %957 = vmatpush.bf16.msra.mxu0 %v199
    %958 = vmatpush.bf16.msra.mxu0 %v195
    %959 = vmatpush.bf16.msra.mxu0 %v191
    %960 = vmatpush.bf16.msra.mxu0 %v187
    %961 = vmatpush.bf16.msra.mxu0 %v183
    %962 = vmatpush.bf16.msra.mxu0 %v179
    %963 = vmatpush.bf16.msra.mxu0 %v175
    %964 = vmatmul.bf16.gmra.mxu0 %v929
    %v965 = vpop.f32.mrf.mxu0
    %v966 = vadd.f32 0.0, %v965
    %v967 = vpop.f32.mrf.mxu0
    %968 = vdwg.mxu0
    %969 = vmatpush.bf16.msra.mxu0 %v204
    %970 = vmatpush.bf16.msra.mxu0 %v200
    %971 = vmatpush.bf16.msra.mxu0 %v196
    %972 = vmatpush.bf16.msra.mxu0 %v192
    %973 = vmatpush.bf16.msra.mxu0 %v188
    %974 = vmatpush.bf16.msra.mxu0 %v184
    %975 = vmatpush.bf16.msra.mxu0 %v180
    %976 = vmatpush.bf16.msra.mxu0 %v176
    %977 = vmatmul.bf16.gmra.mxu0 %v929
    %v978 = vpop.f32.mrf.mxu0
    %v979 = vadd.f32 0.0, %v978
    %v980 = vpop.f32.mrf.mxu0
    %981 = vdwg.mxu0
    %v986 = vrot.slane %v953, 6
    %v987 = vrot.slane %v966, 4
    %v988 = vrot.slane %v979, 2
    %v989 = vsel %vm296, %v940, %v986
    %v990 = vsel %vm298, %v987, %v988
    %v991 = vsel %vm300, %v989, %v990
    %v993 = vadd.f32 %v928, %v991
    %v994 = vxor.u32 %v993, 2147483648
    %v995 = vmul.f32 %v994, 1.442695
    %v996 = vpow.pop %v995
    %v997 = vadd.f32 %v996, 1.0
    %v998 = vrcp.pop %v997
    %v999 = vmul.f32 %v997, %v998
    %v1000 = vsub.f32 1.0, %v999
    %v1001 = vmul.f32 %v998, %v1000
    %v1002 = vadd.f32 %v998, %v1001
    %vm1003 = vweird.f32 %v997
    %vm1004 = vweird.f32 %v998
    %vm1005 = vmor %vm1003, %vm1004
    %v1006 = vsel %vm1005, %v998, %v1002
    %v1007 = vand.u32 2147483647, %v997
    %vm1008 = vcmp.eq.f32.partialorder %v1007, 8.507059e+37
    %v1009 = vand.u32 %v997, 2147483648
    %v1010 = vor.u32 1.1754944e-38, %v1009
    %v1011 = vsel %vm1008, %v1010, %v1006
    %v1012 = vmul.f32 1.0, %v1011
    %v1014 = vrot.slane %v993, 2
    %v1016 = vxor.u32 %v1014, 2147483648
    %v1017 = vmul.f32 %v1016, 1.442695
    %v1018 = vpow.pop %v1017
    %v1019 = vadd.f32 %v1018, 1.0
    %v1020 = vrcp.pop %v1019
    %v1021 = vmul.f32 %v1019, %v1020
    %v1022 = vsub.f32 1.0, %v1021
    %v1023 = vmul.f32 %v1020, %v1022
    %v1024 = vadd.f32 %v1020, %v1023
    %vm1025 = vweird.f32 %v1019
    %vm1026 = vweird.f32 %v1020
    %vm1027 = vmor %vm1025, %vm1026
    %v1028 = vsel %vm1027, %v1020, %v1024
    %v1029 = vand.u32 2147483647, %v1019
    %vm1030 = vcmp.eq.f32.partialorder %v1029, 8.507059e+37
    %v1031 = vand.u32 %v1019, 2147483648
    %v1032 = vor.u32 1.1754944e-38, %v1031
    %v1033 = vsel %vm1030, %v1032, %v1028
    %v1034 = vmul.f32 1.0, %v1033
    %v1035 = vrot.slane %v993, 4
    %v1037 = vtanh.pop %v1035
    %v1038 = vrot.slane %v993, 6
    %v1040 = vxor.u32 %v1038, 2147483648
    %v1041 = vmul.f32 %v1040, 1.442695
    %v1042 = vpow.pop %v1041
    %v1043 = vadd.f32 %v1042, 1.0
    %v1044 = vrcp.pop %v1043
    %v1045 = vmul.f32 %v1043, %v1044
    %v1046 = vsub.f32 1.0, %v1045
    %v1047 = vmul.f32 %v1044, %v1046
    %v1048 = vadd.f32 %v1044, %v1047
    %vm1049 = vweird.f32 %v1043
    %vm1050 = vweird.f32 %v1044
    %vm1051 = vmor %vm1049, %vm1050
    %v1052 = vsel %vm1051, %v1044, %v1048
    %v1053 = vand.u32 2147483647, %v1043
    %vm1054 = vcmp.eq.f32.partialorder %v1053, 8.507059e+37
    %v1055 = vand.u32 %v1043, 2147483648
    %v1056 = vor.u32 1.1754944e-38, %v1055
    %v1057 = vsel %vm1054, %v1056, %v1052
    %v1058 = vmul.f32 1.0, %v1057
    %v1059 = vmul.f32 %v1034, %v923
    %v1060 = vmul.f32 %v1012, %v1037
    %v1061 = vadd.f32 %v1059, %v1060
    %v1062 = vtanh.pop %v1061
    %v1063 = vmul.f32 %v1058, %v1062
    %s1064 = scalar_lea.vmem %s0, 24
    %v1065 = vld [vmem:[%s1064] sm:$0xf]
    %v1066 = vunpack.c.l.bf16 %v1065
    %v1067 = vpack.c.bf16 %v1063, %v1063
    %1068 = vmatpush.bf16.msra.mxu0 %v201
    %1069 = vmatpush.bf16.msra.mxu0 %v197
    %1070 = vmatpush.bf16.msra.mxu0 %v193
    %1071 = vmatpush.bf16.msra.mxu0 %v189
    %1072 = vmatpush.bf16.msra.mxu0 %v185
    %1073 = vmatpush.bf16.msra.mxu0 %v181
    %1074 = vmatpush.bf16.msra.mxu0 %v177
    %1075 = vmatpush.bf16.msra.mxu0 %v173
    %1076 = vmatmul.bf16.gmra.mxu0 %v1067
    %v1077 = vpop.f32.mrf.mxu0
    %v1078 = vadd.f32 0.0, %v1077
    %v1079 = vpop.f32.mrf.mxu0
    %1080 = vdwg.mxu0
    %1081 = vmatpush.bf16.msra.mxu0 %v202
    %1082 = vmatpush.bf16.msra.mxu0 %v198
    %1083 = vmatpush.bf16.msra.mxu0 %v194
    %1084 = vmatpush.bf16.msra.mxu0 %v190
    %1085 = vmatpush.bf16.msra.mxu0 %v186
    %1086 = vmatpush.bf16.msra.mxu0 %v182
    %1087 = vmatpush.bf16.msra.mxu0 %v178
    %1088 = vmatpush.bf16.msra.mxu0 %v174
    %1089 = vmatmul.bf16.gmra.mxu0 %v1067
    %v1090 = vpop.f32.mrf.mxu0
    %v1091 = vadd.f32 0.0, %v1090
    %v1092 = vpop.f32.mrf.mxu0
    %1093 = vdwg.mxu0
    %1094 = vmatpush.bf16.msra.mxu0 %v203
    %1095 = vmatpush.bf16.msra.mxu0 %v199
    %1096 = vmatpush.bf16.msra.mxu0 %v195
    %1097 = vmatpush.bf16.msra.mxu0 %v191
    %1098 = vmatpush.bf16.msra.mxu0 %v187
    %1099 = vmatpush.bf16.msra.mxu0 %v183
    %1100 = vmatpush.bf16.msra.mxu0 %v179
    %1101 = vmatpush.bf16.msra.mxu0 %v175
    %1102 = vmatmul.bf16.gmra.mxu0 %v1067
    %v1103 = vpop.f32.mrf.mxu0
    %v1104 = vadd.f32 0.0, %v1103
    %v1105 = vpop.f32.mrf.mxu0
    %1106 = vdwg.mxu0
    %1107 = vmatpush.bf16.msra.mxu0 %v204
    %1108 = vmatpush.bf16.msra.mxu0 %v200
    %1109 = vmatpush.bf16.msra.mxu0 %v196
    %1110 = vmatpush.bf16.msra.mxu0 %v192
    %1111 = vmatpush.bf16.msra.mxu0 %v188
    %1112 = vmatpush.bf16.msra.mxu0 %v184
    %1113 = vmatpush.bf16.msra.mxu0 %v180
    %1114 = vmatpush.bf16.msra.mxu0 %v176
    %1115 = vmatmul.bf16.gmra.mxu0 %v1067
    %v1116 = vpop.f32.mrf.mxu0
    %v1117 = vadd.f32 0.0, %v1116
    %v1118 = vpop.f32.mrf.mxu0
    %1119 = vdwg.mxu0
    %v1124 = vrot.slane %v1091, 6
    %v1125 = vrot.slane %v1104, 4
    %v1126 = vrot.slane %v1117, 2
    %v1127 = vsel %vm296, %v1078, %v1124
    %v1128 = vsel %vm298, %v1125, %v1126
    %v1129 = vsel %vm300, %v1127, %v1128
    %v1131 = vadd.f32 %v1066, %v1129
    %v1132 = vxor.u32 %v1131, 2147483648
    %v1133 = vmul.f32 %v1132, 1.442695
    %v1134 = vpow.pop %v1133
    %v1135 = vadd.f32 %v1134, 1.0
    %v1136 = vrcp.pop %v1135
    %v1137 = vmul.f32 %v1135, %v1136
    %v1138 = vsub.f32 1.0, %v1137
    %v1139 = vmul.f32 %v1136, %v1138
    %v1140 = vadd.f32 %v1136, %v1139
    %vm1141 = vweird.f32 %v1135
    %vm1142 = vweird.f32 %v1136
    %vm1143 = vmor %vm1141, %vm1142
    %v1144 = vsel %vm1143, %v1136, %v1140
    %v1145 = vand.u32 2147483647, %v1135
    %vm1146 = vcmp.eq.f32.partialorder %v1145, 8.507059e+37
    %v1147 = vand.u32 %v1135, 2147483648
    %v1148 = vor.u32 1.1754944e-38, %v1147
    %v1149 = vsel %vm1146, %v1148, %v1144
    %v1150 = vmul.f32 1.0, %v1149
    %v1152 = vrot.slane %v1131, 2
    %v1154 = vxor.u32 %v1152, 2147483648
    %v1155 = vmul.f32 %v1154, 1.442695
    %v1156 = vpow.pop %v1155
    %v1157 = vadd.f32 %v1156, 1.0
    %v1158 = vrcp.pop %v1157
    %v1159 = vmul.f32 %v1157, %v1158
    %v1160 = vsub.f32 1.0, %v1159
    %v1161 = vmul.f32 %v1158, %v1160
    %v1162 = vadd.f32 %v1158, %v1161
    %vm1163 = vweird.f32 %v1157
    %vm1164 = vweird.f32 %v1158
    %vm1165 = vmor %vm1163, %vm1164
    %v1166 = vsel %vm1165, %v1158, %v1162
    %v1167 = vand.u32 2147483647, %v1157
    %vm1168 = vcmp.eq.f32.partialorder %v1167, 8.507059e+37
    %v1169 = vand.u32 %v1157, 2147483648
    %v1170 = vor.u32 1.1754944e-38, %v1169
    %v1171 = vsel %vm1168, %v1170, %v1166
    %v1172 = vmul.f32 1.0, %v1171
    %v1173 = vrot.slane %v1131, 4
    %v1175 = vtanh.pop %v1173
    %v1176 = vrot.slane %v1131, 6
    %v1178 = vxor.u32 %v1176, 2147483648
    %v1179 = vmul.f32 %v1178, 1.442695
    %v1180 = vpow.pop %v1179
    %v1181 = vadd.f32 %v1180, 1.0
    %v1182 = vrcp.pop %v1181
    %v1183 = vmul.f32 %v1181, %v1182
    %v1184 = vsub.f32 1.0, %v1183
    %v1185 = vmul.f32 %v1182, %v1184
    %v1186 = vadd.f32 %v1182, %v1185
    %vm1187 = vweird.f32 %v1181
    %vm1188 = vweird.f32 %v1182
    %vm1189 = vmor %vm1187, %vm1188
    %v1190 = vsel %vm1189, %v1182, %v1186
    %v1191 = vand.u32 2147483647, %v1181
    %vm1192 = vcmp.eq.f32.partialorder %v1191, 8.507059e+37
    %v1193 = vand.u32 %v1181, 2147483648
    %v1194 = vor.u32 1.1754944e-38, %v1193
    %v1195 = vsel %vm1192, %v1194, %v1190
    %v1196 = vmul.f32 1.0, %v1195
    %v1197 = vmul.f32 %v1172, %v1061
    %v1198 = vmul.f32 %v1150, %v1175
    %v1199 = vadd.f32 %v1197, %v1198
    %v1200 = vtanh.pop %v1199
    %v1201 = vmul.f32 %v1196, %v1200
    %s1202 = scalar_lea.vmem %s0, 28
    %v1203 = vld [vmem:[%s1202] sm:$0xf]
    %v1204 = vunpack.c.l.bf16 %v1203
    %v1205 = vpack.c.bf16 %v1201, %v1201
    %1206 = vmatpush.bf16.msra.mxu0 %v201
    %1207 = vmatpush.bf16.msra.mxu0 %v197
    %1208 = vmatpush.bf16.msra.mxu0 %v193
    %1209 = vmatpush.bf16.msra.mxu0 %v189
    %1210 = vmatpush.bf16.msra.mxu0 %v185
    %1211 = vmatpush.bf16.msra.mxu0 %v181
    %1212 = vmatpush.bf16.msra.mxu0 %v177
    %1213 = vmatpush.bf16.msra.mxu0 %v173
    %1214 = vmatmul.bf16.gmra.mxu0 %v1205
    %v1215 = vpop.f32.mrf.mxu0
    %v1216 = vadd.f32 0.0, %v1215
    %v1217 = vpop.f32.mrf.mxu0
    %1218 = vdwg.mxu0
    %1219 = vmatpush.bf16.msra.mxu0 %v202
    %1220 = vmatpush.bf16.msra.mxu0 %v198
    %1221 = vmatpush.bf16.msra.mxu0 %v194
    %1222 = vmatpush.bf16.msra.mxu0 %v190
    %1223 = vmatpush.bf16.msra.mxu0 %v186
    %1224 = vmatpush.bf16.msra.mxu0 %v182
    %1225 = vmatpush.bf16.msra.mxu0 %v178
    %1226 = vmatpush.bf16.msra.mxu0 %v174
    %1227 = vmatmul.bf16.gmra.mxu0 %v1205
    %v1228 = vpop.f32.mrf.mxu0
    %v1229 = vadd.f32 0.0, %v1228
    %v1230 = vpop.f32.mrf.mxu0
    %1231 = vdwg.mxu0
    %1232 = vmatpush.bf16.msra.mxu0 %v203
    %1233 = vmatpush.bf16.msra.mxu0 %v199
    %1234 = vmatpush.bf16.msra.mxu0 %v195
    %1235 = vmatpush.bf16.msra.mxu0 %v191
    %1236 = vmatpush.bf16.msra.mxu0 %v187
    %1237 = vmatpush.bf16.msra.mxu0 %v183
    %1238 = vmatpush.bf16.msra.mxu0 %v179
    %1239 = vmatpush.bf16.msra.mxu0 %v175
    %1240 = vmatmul.bf16.gmra.mxu0 %v1205
    %v1241 = vpop.f32.mrf.mxu0
    %v1242 = vadd.f32 0.0, %v1241
    %v1243 = vpop.f32.mrf.mxu0
    %1244 = vdwg.mxu0
    %1245 = vmatpush.bf16.msra.mxu0 %v204
    %1246 = vmatpush.bf16.msra.mxu0 %v200
    %1247 = vmatpush.bf16.msra.mxu0 %v196
    %1248 = vmatpush.bf16.msra.mxu0 %v192
    %1249 = vmatpush.bf16.msra.mxu0 %v188
    %1250 = vmatpush.bf16.msra.mxu0 %v184
    %1251 = vmatpush.bf16.msra.mxu0 %v180
    %1252 = vmatpush.bf16.msra.mxu0 %v176
    %1253 = vmatmul.bf16.gmra.mxu0 %v1205
    %v1254 = vpop.f32.mrf.mxu0
    %v1255 = vadd.f32 0.0, %v1254
    %v1256 = vpop.f32.mrf.mxu0
    %1257 = vdwg.mxu0
    %v1262 = vrot.slane %v1229, 6
    %v1263 = vrot.slane %v1242, 4
    %v1264 = vrot.slane %v1255, 2
    %v1265 = vsel %vm296, %v1216, %v1262
    %v1266 = vsel %vm298, %v1263, %v1264
    %v1267 = vsel %vm300, %v1265, %v1266
    %v1269 = vadd.f32 %v1204, %v1267
    %v1270 = vxor.u32 %v1269, 2147483648
    %v1271 = vmul.f32 %v1270, 1.442695
    %v1272 = vpow.pop %v1271
    %v1273 = vadd.f32 %v1272, 1.0
    %v1274 = vrcp.pop %v1273
    %v1275 = vmul.f32 %v1273, %v1274
    %v1276 = vsub.f32 1.0, %v1275
    %v1277 = vmul.f32 %v1274, %v1276
    %v1278 = vadd.f32 %v1274, %v1277
    %vm1279 = vweird.f32 %v1273
    %vm1280 = vweird.f32 %v1274
    %vm1281 = vmor %vm1279, %vm1280
    %v1282 = vsel %vm1281, %v1274, %v1278
    %v1283 = vand.u32 2147483647, %v1273
    %vm1284 = vcmp.eq.f32.partialorder %v1283, 8.507059e+37
    %v1285 = vand.u32 %v1273, 2147483648
    %v1286 = vor.u32 1.1754944e-38, %v1285
    %v1287 = vsel %vm1284, %v1286, %v1282
    %v1288 = vmul.f32 1.0, %v1287
    %v1290 = vrot.slane %v1269, 2
    %v1292 = vxor.u32 %v1290, 2147483648
    %v1293 = vmul.f32 %v1292, 1.442695
    %v1294 = vpow.pop %v1293
    %v1295 = vadd.f32 %v1294, 1.0
    %v1296 = vrcp.pop %v1295
    %v1297 = vmul.f32 %v1295, %v1296
    %v1298 = vsub.f32 1.0, %v1297
    %v1299 = vmul.f32 %v1296, %v1298
    %v1300 = vadd.f32 %v1296, %v1299
    %vm1301 = vweird.f32 %v1295
    %vm1302 = vweird.f32 %v1296
    %vm1303 = vmor %vm1301, %vm1302
    %v1304 = vsel %vm1303, %v1296, %v1300
    %v1305 = vand.u32 2147483647, %v1295
    %vm1306 = vcmp.eq.f32.partialorder %v1305, 8.507059e+37
    %v1307 = vand.u32 %v1295, 2147483648
    %v1308 = vor.u32 1.1754944e-38, %v1307
    %v1309 = vsel %vm1306, %v1308, %v1304
    %v1310 = vmul.f32 1.0, %v1309
    %v1311 = vrot.slane %v1269, 4
    %v1313 = vtanh.pop %v1311
    %v1314 = vrot.slane %v1269, 6
    %v1316 = vxor.u32 %v1314, 2147483648
    %v1317 = vmul.f32 %v1316, 1.442695
    %v1318 = vpow.pop %v1317
    %v1319 = vadd.f32 %v1318, 1.0
    %v1320 = vrcp.pop %v1319
    %v1321 = vmul.f32 %v1319, %v1320
    %v1322 = vsub.f32 1.0, %v1321
    %v1323 = vmul.f32 %v1320, %v1322
    %v1324 = vadd.f32 %v1320, %v1323
    %vm1325 = vweird.f32 %v1319
    %vm1326 = vweird.f32 %v1320
    %vm1327 = vmor %vm1325, %vm1326
    %v1328 = vsel %vm1327, %v1320, %v1324
    %v1329 = vand.u32 2147483647, %v1319
    %vm1330 = vcmp.eq.f32.partialorder %v1329, 8.507059e+37
    %v1331 = vand.u32 %v1319, 2147483648
    %v1332 = vor.u32 1.1754944e-38, %v1331
    %v1333 = vsel %vm1330, %v1332, %v1328
    %v1334 = vmul.f32 1.0, %v1333
    %v1335 = vmul.f32 %v1310, %v1199
    %v1336 = vmul.f32 %v1288, %v1313
    %v1337 = vadd.f32 %v1335, %v1336
    %v1338 = vtanh.pop %v1337
    %v1339 = vmul.f32 %v1334, %v1338
    %1340 = vst [vmem:[#allocation2] sm:$0x3] %v1339
    %1341 = vst [vmem:[#allocation3] sm:$0x3] %v1337
    // Predicated region
    $region26: #{lstm_model.7} parent=1 // pred_check
      %p1342 = pneg %p34
    $region27: #{lstm_model.7} parent=1 // pred_check_branch
      %1344 = sbr.rel (%p1342) target = $region29
    $region28: #{lstm_model.7} parent=1 // pred_region
      %v1345 = vpack.c.bf16 %v1339, %v1339
      %v1346 = vld [vmem:[%s2] sm:$0xf]
      %v1347 = vld [vmem:[%s2 + $0x4] sm:$0xf]
      %v1348 = vld [vmem:[%s2 + $0x8] sm:$0xf]
      %v1349 = vld [vmem:[%s2 + $0xc] sm:$0xf]
      %v1350 = vld [vmem:[%s2 + $0x10] sm:$0xf]
      %v1351 = vld [vmem:[%s2 + $0x14] sm:$0xf]
      %v1352 = vld [vmem:[%s2 + $0x18] sm:$0xf]
      %v1353 = vld [vmem:[%s2 + $0x1c] sm:$0xf]
      %v1354 = vld [vmem:[%s2 + $0x20] sm:$0xf]
      %v1355 = vld [vmem:[%s2 + $0x24] sm:$0xf]
      %v1356 = vld [vmem:[%s2 + $0x28] sm:$0xf]
      %v1357 = vld [vmem:[%s2 + $0x2c] sm:$0xf]
      %v1358 = vld [vmem:[%s2 + $0x30] sm:$0xf]
      %v1359 = vld [vmem:[%s2 + $0x34] sm:$0xf]
      %v1360 = vld [vmem:[%s2 + $0x38] sm:$0xf]
      %v1361 = vld [vmem:[%s2 + $0x3c] sm:$0xf]
      %v1362 = vld [vmem:[%s3] sm:$0x1]
      %v1364 = vperm.slane %v1362, 0
      %v1382 = vunpack.c.l.b16 %v1346
      %v1383 = vunpack.c.l.b16 %v1347
      %v1384 = vunpack.c.l.b16 %v1348
      %v1385 = vunpack.c.l.b16 %v1349
      %v1386 = vunpack.c.l.b16 %v1350
      %v1387 = vunpack.c.l.b16 %v1351
      %v1388 = vunpack.c.l.b16 %v1352
      %v1389 = vunpack.c.l.b16 %v1353
      %v1390 = vunpack.c.l.b16 %v1354
      %v1391 = vunpack.c.l.b16 %v1355
      %v1392 = vunpack.c.l.b16 %v1356
      %v1393 = vunpack.c.l.b16 %v1357
      %v1394 = vunpack.c.l.b16 %v1358
      %v1395 = vunpack.c.l.b16 %v1359
      %v1396 = vunpack.c.l.b16 %v1360
      %v1397 = vunpack.c.l.b16 %v1361
      %v1398 = vpack.c.b16 %v1383, %v1382
      %v1399 = vpack.c.b16 %v1385, %v1384
      %v1400 = vpack.c.b16 %v1387, %v1386
      %v1401 = vpack.c.b16 %v1389, %v1388
      %v1402 = vpack.c.b16 %v1391, %v1390
      %v1403 = vpack.c.b16 %v1393, %v1392
      %v1404 = vpack.c.b16 %v1395, %v1394
      %v1405 = vpack.c.b16 %v1397, %v1396
      %1414 = vmatpush.bf16.msra.mxu0 %v1405
      %1415 = vmatpush.bf16.msra.mxu0 %v1404
      %1416 = vmatpush.bf16.msra.mxu0 %v1403
      %1417 = vmatpush.bf16.msra.mxu0 %v1402
      %1418 = vmatpush.bf16.msra.mxu0 %v1401
      %1419 = vmatpush.bf16.msra.mxu0 %v1400
      %1420 = vmatpush.bf16.msra.mxu0 %v1399
      %1421 = vmatpush.bf16.msra.mxu0 %v1398
      %1422 = vmatmul.bf16.gmra.mxu0 %v1345
      %v1423 = vpop.f32.mrf.mxu0
      %v1424 = vadd.f32 %v1364, %v1423
      %v1425 = vpop.f32.mrf.mxu0
      %1426 = vdwg.mxu0
      %vm1427 = vcmask 25600
      %1428 = vst.msk [vmem:[#allocation7] sm:$0x3] %vm1427, %v1424
    $region29: #{lstm_model.7} parent=1 // pred_fallthru
      _
    // Predicated region
    $region30: #{lstm_model.7} parent=1 // pred_check
      _
    $region31: #{lstm_model.7} parent=1 // pred_check_branch
      %1430 = sbr.rel (0) target = $region33
    $region32: #{lstm_model.7} parent=1 // pred_region
      %1432 = vsyncadd [#allocation6], 0
      %s1434 = sshll.u32 [#allocation7], 4
      %s1435 = int_to_ptr.vmem [resolvable:$true] %s1434
      %s1436 = sshll.u32 %s4, 4
      %s1437 = int_to_ptr.hbm [resolvable:$true] %s1436
      %1439 = dma.vmem_to_hbm [thread:$0]  %s1435, 32, %s1437, [#allocation6]
    $region33: #{lstm_model.7} parent=1 // pred_fallthru
      _
    // Predicated region
    $region34: #{lstm_model.7} parent=1 // pred_check
      _
    $region35: #{lstm_model.7} parent=1 // pred_check_branch
      %1441 = sbr.rel (0) target = $region37
    $region36: #{lstm_model.7} parent=1 // pred_region
      %1443 = dma.done [#allocation6], 32
    $region37: #{lstm_model.7} parent=1 // pred_fallthru
      _
    %1444 = vsyncpa [#allocation5], 1
    %1445 = vsyncpa [#allocation6], 1

// kernel: lstm_model.5
$region0: #{lstm_model.5}
  #allocation0 [shape = 'u32[]', space=smem, size = 0x4, offset = 0x4, fixed_abs, tag = 'smem constant byte address 0x4 - core index']
  #allocation1 [shape = 'u32[72,128]{1,0:T(1,128)}', space=vmem, size = 0x9000, scoped, tag = 'internal scratch']
  #allocation2 [shape = 'f32[2,128]{1,0:T(2,128)}', space=vmem, size = 0x400, scoped, tag = 'scratch operand']
  #allocation3 [shape = 'f32[2,128]{1,0:T(2,128)}', space=vmem, size = 0x400, scoped, tag = 'scratch operand']
  %s0 = inlined_call_operand.vmem [shape: bf16[8,2,512], index: 0, kind: input, shape index: {}]
  %s1 = inlined_call_operand.hbm [shape: bf16[128,512], index: 1, kind: input, shape index: {}]
  %s2 = inlined_call_operand.vmem [shape: bf16[8,2,128], index: 2, kind: output, shape index: {}]
  %s3 = sld [smem:[#allocation0]]
  $region26: #{lstm_model.5} parent=0
    _
  %s5 = ssub.s32 1, %s3
  %s6 = scalar_select 0, %s5, %s3
  $region1: #{lstm_model.5} parent=0
    #allocation4 [shape = 'u8[131072]{0}', space=vmem, size = 0x20000, scoped, tag = 'input window, operand 1, single buffered']
    #allocation5 [shape = 's32[1]{0}', space=sflag, size = 0x4, scoped, tag = 'scoped memory for lstm_model.5']
    %7 = vsyncpa [#allocation5], 0
    // Predicated region
    $region2: #{lstm_model.5} parent=1 // pred_check
      _
    $region3: #{lstm_model.5} parent=1 // pred_check_branch
      %9 = sbr.rel (0) target = $region5
    $region4: #{lstm_model.5} parent=1 // pred_region
      _
    $region5: #{lstm_model.5} parent=1 // pred_fallthru
      _
    // Predicated region
    $region6: #{lstm_model.5} parent=1 // pred_check
      _
    $region7: #{lstm_model.5} parent=1 // pred_check_branch
      %11 = sbr.rel (0) target = $region9
    $region8: #{lstm_model.5} parent=1 // pred_region
      %13 = vsyncadd [#allocation5], 0
      %s14 = sshll.u32 %s1, 4
      %s15 = int_to_ptr.hbm [resolvable:$true] %s14
      %s16 = sshll.u32 [#allocation4], 4
      %s17 = int_to_ptr.vmem [resolvable:$true] %s16
      %22 = dma.hbm_to_vmem [thread:$0]  %s15, 4096, %s17, [#allocation5], 256, 256, 16
    $region9: #{lstm_model.5} parent=1 // pred_fallthru
      _
    // Predicated region
    $region10: #{lstm_model.5} parent=1 // pred_check
      _
    $region11: #{lstm_model.5} parent=1 // pred_check_branch
      %24 = sbr.rel (0) target = $region13
    $region12: #{lstm_model.5} parent=1 // pred_region
      %26 = dma.done [#allocation5], 4096
    $region13: #{lstm_model.5} parent=1 // pred_fallthru
      _
    %p27 = scmp.eq.s32.totalorder 0, 0
    // Predicated region
    $region14: #{lstm_model.5} parent=1 // pred_check
      %p28 = pneg %p27
    $region15: #{lstm_model.5} parent=1 // pred_check_branch
      %30 = sbr.rel (%p28) target = $region17
    $region16: #{lstm_model.5} parent=1 // pred_region
      %31 = vst [vmem:[#allocation2] sm:$0x3] 0.0
      %32 = vst [vmem:[#allocation3] sm:$0x3] 0.0
    $region17: #{lstm_model.5} parent=1 // pred_fallthru
      _
    %v33 = vld [vmem:[#allocation2] sm:$0x3]
    %v34 = vld [vmem:[#allocation3] sm:$0x3]
    %v35 = vld [vmem:[%s0] sm:$0xf]
    %v36 = vunpack.c.l.bf16 %v35
    %v37 = vpack.c.bf16 %v33, %v33
    %v38 = vld [vmem:[#allocation4] sm:$0xff]
    %v39 = vld [vmem:[#allocation4 + $0x8] sm:$0xff]
    %v40 = vld [vmem:[#allocation4 + $0x10] sm:$0xff]
    %v41 = vld [vmem:[#allocation4 + $0x18] sm:$0xff]
    %v42 = vld [vmem:[#allocation4 + $0x20] sm:$0xff]
    %v43 = vld [vmem:[#allocation4 + $0x28] sm:$0xff]
    %v44 = vld [vmem:[#allocation4 + $0x30] sm:$0xff]
    %v45 = vld [vmem:[#allocation4 + $0x38] sm:$0xff]
    %v46 = vld [vmem:[#allocation4 + $0x40] sm:$0xff]
    %v47 = vld [vmem:[#allocation4 + $0x48] sm:$0xff]
    %v48 = vld [vmem:[#allocation4 + $0x50] sm:$0xff]
    %v49 = vld [vmem:[#allocation4 + $0x58] sm:$0xff]
    %v50 = vld [vmem:[#allocation4 + $0x60] sm:$0xff]
    %v51 = vld [vmem:[#allocation4 + $0x68] sm:$0xff]
    %v52 = vld [vmem:[#allocation4 + $0x70] sm:$0xff]
    %v53 = vld [vmem:[#allocation4 + $0x78] sm:$0xff]
    %v54 = vld [vmem:[#allocation4 + $0x80] sm:$0xff]
    %v55 = vld [vmem:[#allocation4 + $0x88] sm:$0xff]
    %v56 = vld [vmem:[#allocation4 + $0x90] sm:$0xff]
    %v57 = vld [vmem:[#allocation4 + $0x98] sm:$0xff]
    %v58 = vld [vmem:[#allocation4 + $0xa0] sm:$0xff]
    %v59 = vld [vmem:[#allocation4 + $0xa8] sm:$0xff]
    %v60 = vld [vmem:[#allocation4 + $0xb0] sm:$0xff]
    %v61 = vld [vmem:[#allocation4 + $0xb8] sm:$0xff]
    %v62 = vld [vmem:[#allocation4 + $0xc0] sm:$0xff]
    %v63 = vld [vmem:[#allocation4 + $0xc8] sm:$0xff]
    %v64 = vld [vmem:[#allocation4 + $0xd0] sm:$0xff]
    %v65 = vld [vmem:[#allocation4 + $0xd8] sm:$0xff]
    %v66 = vld [vmem:[#allocation4 + $0xe0] sm:$0xff]
    %v67 = vld [vmem:[#allocation4 + $0xe8] sm:$0xff]
    %v68 = vld [vmem:[#allocation4 + $0xf0] sm:$0xff]
    %v69 = vld [vmem:[#allocation4 + $0xf8] sm:$0xff]
    %v102 = vunpack.c.l.b16 %v38
    %v103 = vunpack.c.h.b16 %v38
    %v104 = vunpack.c.l.b16 %v39
    %v105 = vunpack.c.h.b16 %v39
    %v106 = vunpack.c.l.b16 %v40
    %v107 = vunpack.c.h.b16 %v40
    %v108 = vunpack.c.l.b16 %v41
    %v109 = vunpack.c.h.b16 %v41
    %v110 = vunpack.c.l.b16 %v42
    %v111 = vunpack.c.h.b16 %v42
    %v112 = vunpack.c.l.b16 %v43
    %v113 = vunpack.c.h.b16 %v43
    %v114 = vunpack.c.l.b16 %v44
    %v115 = vunpack.c.h.b16 %v44
    %v116 = vunpack.c.l.b16 %v45
    %v117 = vunpack.c.h.b16 %v45
    %v118 = vunpack.c.l.b16 %v46
    %v119 = vunpack.c.h.b16 %v46
    %v120 = vunpack.c.l.b16 %v47
    %v121 = vunpack.c.h.b16 %v47
    %v122 = vunpack.c.l.b16 %v48
    %v123 = vunpack.c.h.b16 %v48
    %v124 = vunpack.c.l.b16 %v49
    %v125 = vunpack.c.h.b16 %v49
    %v126 = vunpack.c.l.b16 %v50
    %v127 = vunpack.c.h.b16 %v50
    %v128 = vunpack.c.l.b16 %v51
    %v129 = vunpack.c.h.b16 %v51
    %v130 = vunpack.c.l.b16 %v52
    %v131 = vunpack.c.h.b16 %v52
    %v132 = vunpack.c.l.b16 %v53
    %v133 = vunpack.c.h.b16 %v53
    %v134 = vunpack.c.l.b16 %v54
    %v135 = vunpack.c.h.b16 %v54
    %v136 = vunpack.c.l.b16 %v55
    %v137 = vunpack.c.h.b16 %v55
    %v138 = vunpack.c.l.b16 %v56
    %v139 = vunpack.c.h.b16 %v56
    %v140 = vunpack.c.l.b16 %v57
    %v141 = vunpack.c.h.b16 %v57
    %v142 = vunpack.c.l.b16 %v58
    %v143 = vunpack.c.h.b16 %v58
    %v144 = vunpack.c.l.b16 %v59
    %v145 = vunpack.c.h.b16 %v59
    %v146 = vunpack.c.l.b16 %v60
    %v147 = vunpack.c.h.b16 %v60
    %v148 = vunpack.c.l.b16 %v61
    %v149 = vunpack.c.h.b16 %v61
    %v150 = vunpack.c.l.b16 %v62
    %v151 = vunpack.c.h.b16 %v62
    %v152 = vunpack.c.l.b16 %v63
    %v153 = vunpack.c.h.b16 %v63
    %v154 = vunpack.c.l.b16 %v64
    %v155 = vunpack.c.h.b16 %v64
    %v156 = vunpack.c.l.b16 %v65
    %v157 = vunpack.c.h.b16 %v65
    %v158 = vunpack.c.l.b16 %v66
    %v159 = vunpack.c.h.b16 %v66
    %v160 = vunpack.c.l.b16 %v67
    %v161 = vunpack.c.h.b16 %v67
    %v162 = vunpack.c.l.b16 %v68
    %v163 = vunpack.c.h.b16 %v68
    %v164 = vunpack.c.l.b16 %v69
    %v165 = vunpack.c.h.b16 %v69
    %v166 = vpack.c.b16 %v106, %v102
    %v167 = vpack.c.b16 %v107, %v103
    %v168 = vpack.c.b16 %v108, %v104
    %v169 = vpack.c.b16 %v109, %v105
    %v170 = vpack.c.b16 %v114, %v110
    %v171 = vpack.c.b16 %v115, %v111
    %v172 = vpack.c.b16 %v116, %v112
    %v173 = vpack.c.b16 %v117, %v113
    %v174 = vpack.c.b16 %v122, %v118
    %v175 = vpack.c.b16 %v123, %v119
    %v176 = vpack.c.b16 %v124, %v120
    %v177 = vpack.c.b16 %v125, %v121
    %v178 = vpack.c.b16 %v130, %v126
    %v179 = vpack.c.b16 %v131, %v127
    %v180 = vpack.c.b16 %v132, %v128
    %v181 = vpack.c.b16 %v133, %v129
    %v182 = vpack.c.b16 %v138, %v134
    %v183 = vpack.c.b16 %v139, %v135
    %v184 = vpack.c.b16 %v140, %v136
    %v185 = vpack.c.b16 %v141, %v137
    %v186 = vpack.c.b16 %v146, %v142
    %v187 = vpack.c.b16 %v147, %v143
    %v188 = vpack.c.b16 %v148, %v144
    %v189 = vpack.c.b16 %v149, %v145
    %v190 = vpack.c.b16 %v154, %v150
    %v191 = vpack.c.b16 %v155, %v151
    %v192 = vpack.c.b16 %v156, %v152
    %v193 = vpack.c.b16 %v157, %v153
    %v194 = vpack.c.b16 %v162, %v158
    %v195 = vpack.c.b16 %v163, %v159
    %v196 = vpack.c.b16 %v164, %v160
    %v197 = vpack.c.b16 %v165, %v161
    %230 = vmatpush.bf16.msra.mxu0 %v194
    %231 = vmatpush.bf16.msra.mxu0 %v190
    %232 = vmatpush.bf16.msra.mxu0 %v186
    %233 = vmatpush.bf16.msra.mxu0 %v182
    %234 = vmatpush.bf16.msra.mxu0 %v178
    %235 = vmatpush.bf16.msra.mxu0 %v174
    %236 = vmatpush.bf16.msra.mxu0 %v170
    %237 = vmatpush.bf16.msra.mxu0 %v166
    %238 = vmatmul.bf16.gmra.mxu0 %v37
    %v239 = vpop.f32.mrf.mxu0
    %v240 = vadd.f32 0.0, %v239
    %v241 = vpop.f32.mrf.mxu0
    %242 = vdwg.mxu0
    %243 = vmatpush.bf16.msra.mxu0 %v195
    %244 = vmatpush.bf16.msra.mxu0 %v191
    %245 = vmatpush.bf16.msra.mxu0 %v187
    %246 = vmatpush.bf16.msra.mxu0 %v183
    %247 = vmatpush.bf16.msra.mxu0 %v179
    %248 = vmatpush.bf16.msra.mxu0 %v175
    %249 = vmatpush.bf16.msra.mxu0 %v171
    %250 = vmatpush.bf16.msra.mxu0 %v167
    %251 = vmatmul.bf16.gmra.mxu0 %v37
    %v252 = vpop.f32.mrf.mxu0
    %v253 = vadd.f32 0.0, %v252
    %v254 = vpop.f32.mrf.mxu0
    %255 = vdwg.mxu0
    %256 = vmatpush.bf16.msra.mxu0 %v196
    %257 = vmatpush.bf16.msra.mxu0 %v192
    %258 = vmatpush.bf16.msra.mxu0 %v188
    %259 = vmatpush.bf16.msra.mxu0 %v184
    %260 = vmatpush.bf16.msra.mxu0 %v180
    %261 = vmatpush.bf16.msra.mxu0 %v176
    %262 = vmatpush.bf16.msra.mxu0 %v172
    %263 = vmatpush.bf16.msra.mxu0 %v168
    %264 = vmatmul.bf16.gmra.mxu0 %v37
    %v265 = vpop.f32.mrf.mxu0
    %v266 = vadd.f32 0.0, %v265
    %v267 = vpop.f32.mrf.mxu0
    %268 = vdwg.mxu0
    %269 = vmatpush.bf16.msra.mxu0 %v197
    %270 = vmatpush.bf16.msra.mxu0 %v193
    %271 = vmatpush.bf16.msra.mxu0 %v189
    %272 = vmatpush.bf16.msra.mxu0 %v185
    %273 = vmatpush.bf16.msra.mxu0 %v181
    %274 = vmatpush.bf16.msra.mxu0 %v177
    %275 = vmatpush.bf16.msra.mxu0 %v173
    %276 = vmatpush.bf16.msra.mxu0 %v169
    %277 = vmatmul.bf16.gmra.mxu0 %v37
    %v278 = vpop.f32.mrf.mxu0
    %v279 = vadd.f32 0.0, %v278
    %v280 = vpop.f32.mrf.mxu0
    %281 = vdwg.mxu0
    %v286 = vrot.slane %v253, 6
    %v287 = vrot.slane %v266, 4
    %v288 = vrot.slane %v279, 2
    %vm289 = vcmask 1041408
    %v290 = vsel %vm289, %v240, %v286
    %vm291 = vcmask 1045508
    %v292 = vsel %vm291, %v287, %v288
    %vm293 = vcmask 1043456
    %v294 = vsel %vm293, %v290, %v292
    %v296 = vadd.f32 %v36, %v294
    %v297 = vxor.u32 %v296, 2147483648
    %v298 = vmul.f32 %v297, 1.442695
    %v299 = vpow.pop %v298
    %v300 = vadd.f32 %v299, 1.0
    %v301 = vrcp.pop %v300
    %v302 = vmul.f32 %v300, %v301
    %v303 = vsub.f32 1.0, %v302
    %v304 = vmul.f32 %v301, %v303
    %v305 = vadd.f32 %v301, %v304
    %vm306 = vweird.f32 %v300
    %vm307 = vweird.f32 %v301
    %vm308 = vmor %vm306, %vm307
    %v309 = vsel %vm308, %v301, %v305
    %v310 = vand.u32 2147483647, %v300
    %vm311 = vcmp.eq.f32.partialorder %v310, 8.507059e+37
    %v312 = vand.u32 %v300, 2147483648
    %v313 = vor.u32 1.1754944e-38, %v312
    %v314 = vsel %vm311, %v313, %v309
    %v315 = vmul.f32 1.0, %v314
    %v317 = vrot.slane %v296, 2
    %v319 = vxor.u32 %v317, 2147483648
    %v320 = vmul.f32 %v319, 1.442695
    %v321 = vpow.pop %v320
    %v322 = vadd.f32 %v321, 1.0
    %v323 = vrcp.pop %v322
    %v324 = vmul.f32 %v322, %v323
    %v325 = vsub.f32 1.0, %v324
    %v326 = vmul.f32 %v323, %v325
    %v327 = vadd.f32 %v323, %v326
    %vm328 = vweird.f32 %v322
    %vm329 = vweird.f32 %v323
    %vm330 = vmor %vm328, %vm329
    %v331 = vsel %vm330, %v323, %v327
    %v332 = vand.u32 2147483647, %v322
    %vm333 = vcmp.eq.f32.partialorder %v332, 8.507059e+37
    %v334 = vand.u32 %v322, 2147483648
    %v335 = vor.u32 1.1754944e-38, %v334
    %v336 = vsel %vm333, %v335, %v331
    %v337 = vmul.f32 1.0, %v336
    %v338 = vrot.slane %v296, 4
    %v340 = vtanh.pop %v338
    %v341 = vrot.slane %v296, 6
    %v343 = vxor.u32 %v341, 2147483648
    %v344 = vmul.f32 %v343, 1.442695
    %v345 = vpow.pop %v344
    %v346 = vadd.f32 %v345, 1.0
    %v347 = vrcp.pop %v346
    %v348 = vmul.f32 %v346, %v347
    %v349 = vsub.f32 1.0, %v348
    %v350 = vmul.f32 %v347, %v349
    %v351 = vadd.f32 %v347, %v350
    %vm352 = vweird.f32 %v346
    %vm353 = vweird.f32 %v347
    %vm354 = vmor %vm352, %vm353
    %v355 = vsel %vm354, %v347, %v351
    %v356 = vand.u32 2147483647, %v346
    %vm357 = vcmp.eq.f32.partialorder %v356, 8.507059e+37
    %v358 = vand.u32 %v346, 2147483648
    %v359 = vor.u32 1.1754944e-38, %v358
    %v360 = vsel %vm357, %v359, %v355
    %v361 = vmul.f32 1.0, %v360
    %v362 = vmul.f32 %v337, %v34
    %v363 = vmul.f32 %v315, %v340
    %v364 = vadd.f32 %v362, %v363
    %v365 = vtanh.pop %v364
    %v366 = vmul.f32 %v361, %v365
    %v367 = vpack.c.bf16 %v366, %v366
    %368 = vst [vmem:[%s2] sm:$0x1] %v367
    %s369 = scalar_lea.vmem %s0, 4
    %v370 = vld [vmem:[%s369] sm:$0xf]
    %v371 = vunpack.c.l.bf16 %v370
    %v372 = vld [vmem:[#allocation4] sm:$0xff]
    %v373 = vld [vmem:[#allocation4 + $0x8] sm:$0xff]
    %v374 = vld [vmem:[#allocation4 + $0x10] sm:$0xff]
    %v375 = vld [vmem:[#allocation4 + $0x18] sm:$0xff]
    %v376 = vld [vmem:[#allocation4 + $0x20] sm:$0xff]
    %v377 = vld [vmem:[#allocation4 + $0x28] sm:$0xff]
    %v378 = vld [vmem:[#allocation4 + $0x30] sm:$0xff]
    %v379 = vld [vmem:[#allocation4 + $0x38] sm:$0xff]
    %v380 = vld [vmem:[#allocation4 + $0x40] sm:$0xff]
    %v381 = vld [vmem:[#allocation4 + $0x48] sm:$0xff]
    %v382 = vld [vmem:[#allocation4 + $0x50] sm:$0xff]
    %v383 = vld [vmem:[#allocation4 + $0x58] sm:$0xff]
    %v384 = vld [vmem:[#allocation4 + $0x60] sm:$0xff]
    %v385 = vld [vmem:[#allocation4 + $0x68] sm:$0xff]
    %v386 = vld [vmem:[#allocation4 + $0x70] sm:$0xff]
    %v387 = vld [vmem:[#allocation4 + $0x78] sm:$0xff]
    %v388 = vld [vmem:[#allocation4 + $0x80] sm:$0xff]
    %v389 = vld [vmem:[#allocation4 + $0x88] sm:$0xff]
    %v390 = vld [vmem:[#allocation4 + $0x90] sm:$0xff]
    %v391 = vld [vmem:[#allocation4 + $0x98] sm:$0xff]
    %v392 = vld [vmem:[#allocation4 + $0xa0] sm:$0xff]
    %v393 = vld [vmem:[#allocation4 + $0xa8] sm:$0xff]
    %v394 = vld [vmem:[#allocation4 + $0xb0] sm:$0xff]
    %v395 = vld [vmem:[#allocation4 + $0xb8] sm:$0xff]
    %v396 = vld [vmem:[#allocation4 + $0xc0] sm:$0xff]
    %v397 = vld [vmem:[#allocation4 + $0xc8] sm:$0xff]
    %v398 = vld [vmem:[#allocation4 + $0xd0] sm:$0xff]
    %v399 = vld [vmem:[#allocation4 + $0xd8] sm:$0xff]
    %v400 = vld [vmem:[#allocation4 + $0xe0] sm:$0xff]
    %v401 = vld [vmem:[#allocation4 + $0xe8] sm:$0xff]
    %v402 = vld [vmem:[#allocation4 + $0xf0] sm:$0xff]
    %v403 = vld [vmem:[#allocation4 + $0xf8] sm:$0xff]
    %v436 = vunpack.c.l.b16 %v372
    %v437 = vunpack.c.h.b16 %v372
    %v438 = vunpack.c.l.b16 %v373
    %v439 = vunpack.c.h.b16 %v373
    %v440 = vunpack.c.l.b16 %v374
    %v441 = vunpack.c.h.b16 %v374
    %v442 = vunpack.c.l.b16 %v375
    %v443 = vunpack.c.h.b16 %v375
    %v444 = vunpack.c.l.b16 %v376
    %v445 = vunpack.c.h.b16 %v376
    %v446 = vunpack.c.l.b16 %v377
    %v447 = vunpack.c.h.b16 %v377
    %v448 = vunpack.c.l.b16 %v378
    %v449 = vunpack.c.h.b16 %v378
    %v450 = vunpack.c.l.b16 %v379
    %v451 = vunpack.c.h.b16 %v379
    %v452 = vunpack.c.l.b16 %v380
    %v453 = vunpack.c.h.b16 %v380
    %v454 = vunpack.c.l.b16 %v381
    %v455 = vunpack.c.h.b16 %v381
    %v456 = vunpack.c.l.b16 %v382
    %v457 = vunpack.c.h.b16 %v382
    %v458 = vunpack.c.l.b16 %v383
    %v459 = vunpack.c.h.b16 %v383
    %v460 = vunpack.c.l.b16 %v384
    %v461 = vunpack.c.h.b16 %v384
    %v462 = vunpack.c.l.b16 %v385
    %v463 = vunpack.c.h.b16 %v385
    %v464 = vunpack.c.l.b16 %v386
    %v465 = vunpack.c.h.b16 %v386
    %v466 = vunpack.c.l.b16 %v387
    %v467 = vunpack.c.h.b16 %v387
    %v468 = vunpack.c.l.b16 %v388
    %v469 = vunpack.c.h.b16 %v388
    %v470 = vunpack.c.l.b16 %v389
    %v471 = vunpack.c.h.b16 %v389
    %v472 = vunpack.c.l.b16 %v390
    %v473 = vunpack.c.h.b16 %v390
    %v474 = vunpack.c.l.b16 %v391
    %v475 = vunpack.c.h.b16 %v391
    %v476 = vunpack.c.l.b16 %v392
    %v477 = vunpack.c.h.b16 %v392
    %v478 = vunpack.c.l.b16 %v393
    %v479 = vunpack.c.h.b16 %v393
    %v480 = vunpack.c.l.b16 %v394
    %v481 = vunpack.c.h.b16 %v394
    %v482 = vunpack.c.l.b16 %v395
    %v483 = vunpack.c.h.b16 %v395
    %v484 = vunpack.c.l.b16 %v396
    %v485 = vunpack.c.h.b16 %v396
    %v486 = vunpack.c.l.b16 %v397
    %v487 = vunpack.c.h.b16 %v397
    %v488 = vunpack.c.l.b16 %v398
    %v489 = vunpack.c.h.b16 %v398
    %v490 = vunpack.c.l.b16 %v399
    %v491 = vunpack.c.h.b16 %v399
    %v492 = vunpack.c.l.b16 %v400
    %v493 = vunpack.c.h.b16 %v400
    %v494 = vunpack.c.l.b16 %v401
    %v495 = vunpack.c.h.b16 %v401
    %v496 = vunpack.c.l.b16 %v402
    %v497 = vunpack.c.h.b16 %v402
    %v498 = vunpack.c.l.b16 %v403
    %v499 = vunpack.c.h.b16 %v403
    %v500 = vpack.c.b16 %v440, %v436
    %v501 = vpack.c.b16 %v441, %v437
    %v502 = vpack.c.b16 %v442, %v438
    %v503 = vpack.c.b16 %v443, %v439
    %v504 = vpack.c.b16 %v448, %v444
    %v505 = vpack.c.b16 %v449, %v445
    %v506 = vpack.c.b16 %v450, %v446
    %v507 = vpack.c.b16 %v451, %v447
    %v508 = vpack.c.b16 %v456, %v452
    %v509 = vpack.c.b16 %v457, %v453
    %v510 = vpack.c.b16 %v458, %v454
    %v511 = vpack.c.b16 %v459, %v455
    %v512 = vpack.c.b16 %v464, %v460
    %v513 = vpack.c.b16 %v465, %v461
    %v514 = vpack.c.b16 %v466, %v462
    %v515 = vpack.c.b16 %v467, %v463
    %v516 = vpack.c.b16 %v472, %v468
    %v517 = vpack.c.b16 %v473, %v469
    %v518 = vpack.c.b16 %v474, %v470
    %v519 = vpack.c.b16 %v475, %v471
    %v520 = vpack.c.b16 %v480, %v476
    %v521 = vpack.c.b16 %v481, %v477
    %v522 = vpack.c.b16 %v482, %v478
    %v523 = vpack.c.b16 %v483, %v479
    %v524 = vpack.c.b16 %v488, %v484
    %v525 = vpack.c.b16 %v489, %v485
    %v526 = vpack.c.b16 %v490, %v486
    %v527 = vpack.c.b16 %v491, %v487
    %v528 = vpack.c.b16 %v496, %v492
    %v529 = vpack.c.b16 %v497, %v493
    %v530 = vpack.c.b16 %v498, %v494
    %v531 = vpack.c.b16 %v499, %v495
    %564 = vmatpush.bf16.msra.mxu0 %v528
    %565 = vmatpush.bf16.msra.mxu0 %v524
    %566 = vmatpush.bf16.msra.mxu0 %v520
    %567 = vmatpush.bf16.msra.mxu0 %v516
    %568 = vmatpush.bf16.msra.mxu0 %v512
    %569 = vmatpush.bf16.msra.mxu0 %v508
    %570 = vmatpush.bf16.msra.mxu0 %v504
    %571 = vmatpush.bf16.msra.mxu0 %v500
    %572 = vmatmul.bf16.gmra.mxu0 %v367
    %v573 = vpop.f32.mrf.mxu0
    %v574 = vadd.f32 0.0, %v573
    %v575 = vpop.f32.mrf.mxu0
    %576 = vdwg.mxu0
    %577 = vmatpush.bf16.msra.mxu0 %v529
    %578 = vmatpush.bf16.msra.mxu0 %v525
    %579 = vmatpush.bf16.msra.mxu0 %v521
    %580 = vmatpush.bf16.msra.mxu0 %v517
    %581 = vmatpush.bf16.msra.mxu0 %v513
    %582 = vmatpush.bf16.msra.mxu0 %v509
    %583 = vmatpush.bf16.msra.mxu0 %v505
    %584 = vmatpush.bf16.msra.mxu0 %v501
    %585 = vmatmul.bf16.gmra.mxu0 %v367
    %v586 = vpop.f32.mrf.mxu0
    %v587 = vadd.f32 0.0, %v586
    %v588 = vpop.f32.mrf.mxu0
    %589 = vdwg.mxu0
    %590 = vmatpush.bf16.msra.mxu0 %v530
    %591 = vmatpush.bf16.msra.mxu0 %v526
    %592 = vmatpush.bf16.msra.mxu0 %v522
    %593 = vmatpush.bf16.msra.mxu0 %v518
    %594 = vmatpush.bf16.msra.mxu0 %v514
    %595 = vmatpush.bf16.msra.mxu0 %v510
    %596 = vmatpush.bf16.msra.mxu0 %v506
    %597 = vmatpush.bf16.msra.mxu0 %v502
    %598 = vmatmul.bf16.gmra.mxu0 %v367
    %v599 = vpop.f32.mrf.mxu0
    %v600 = vadd.f32 0.0, %v599
    %v601 = vpop.f32.mrf.mxu0
    %602 = vdwg.mxu0
    %603 = vmatpush.bf16.msra.mxu0 %v531
    %604 = vmatpush.bf16.msra.mxu0 %v527
    %605 = vmatpush.bf16.msra.mxu0 %v523
    %606 = vmatpush.bf16.msra.mxu0 %v519
    %607 = vmatpush.bf16.msra.mxu0 %v515
    %608 = vmatpush.bf16.msra.mxu0 %v511
    %609 = vmatpush.bf16.msra.mxu0 %v507
    %610 = vmatpush.bf16.msra.mxu0 %v503
    %611 = vmatmul.bf16.gmra.mxu0 %v367
    %v612 = vpop.f32.mrf.mxu0
    %v613 = vadd.f32 0.0, %v612
    %v614 = vpop.f32.mrf.mxu0
    %615 = vdwg.mxu0
    %v620 = vrot.slane %v587, 6
    %v621 = vrot.slane %v600, 4
    %v622 = vrot.slane %v613, 2
    %v623 = vsel %vm289, %v574, %v620
    %v624 = vsel %vm291, %v621, %v622
    %v625 = vsel %vm293, %v623, %v624
    %v627 = vadd.f32 %v371, %v625
    %v628 = vxor.u32 %v627, 2147483648
    %v629 = vmul.f32 %v628, 1.442695
    %v630 = vpow.pop %v629
    %v631 = vadd.f32 %v630, 1.0
    %v632 = vrcp.pop %v631
    %v633 = vmul.f32 %v631, %v632
    %v634 = vsub.f32 1.0, %v633
    %v635 = vmul.f32 %v632, %v634
    %v636 = vadd.f32 %v632, %v635
    %vm637 = vweird.f32 %v631
    %vm638 = vweird.f32 %v632
    %vm639 = vmor %vm637, %vm638
    %v640 = vsel %vm639, %v632, %v636
    %v641 = vand.u32 2147483647, %v631
    %vm642 = vcmp.eq.f32.partialorder %v641, 8.507059e+37
    %v643 = vand.u32 %v631, 2147483648
    %v644 = vor.u32 1.1754944e-38, %v643
    %v645 = vsel %vm642, %v644, %v640
    %v646 = vmul.f32 1.0, %v645
    %v648 = vrot.slane %v627, 2
    %v650 = vxor.u32 %v648, 2147483648
    %v651 = vmul.f32 %v650, 1.442695
    %v652 = vpow.pop %v651
    %v653 = vadd.f32 %v652, 1.0
    %v654 = vrcp.pop %v653
    %v655 = vmul.f32 %v653, %v654
    %v656 = vsub.f32 1.0, %v655
    %v657 = vmul.f32 %v654, %v656
    %v658 = vadd.f32 %v654, %v657
    %vm659 = vweird.f32 %v653
    %vm660 = vweird.f32 %v654
    %vm661 = vmor %vm659, %vm660
    %v662 = vsel %vm661, %v654, %v658
    %v663 = vand.u32 2147483647, %v653
    %vm664 = vcmp.eq.f32.partialorder %v663, 8.507059e+37
    %v665 = vand.u32 %v653, 2147483648
    %v666 = vor.u32 1.1754944e-38, %v665
    %v667 = vsel %vm664, %v666, %v662
    %v668 = vmul.f32 1.0, %v667
    %v669 = vrot.slane %v627, 4
    %v671 = vtanh.pop %v669
    %v672 = vrot.slane %v627, 6
    %v674 = vxor.u32 %v672, 2147483648
    %v675 = vmul.f32 %v674, 1.442695
    %v676 = vpow.pop %v675
    %v677 = vadd.f32 %v676, 1.0
    %v678 = vrcp.pop %v677
    %v679 = vmul.f32 %v677, %v678
    %v680 = vsub.f32 1.0, %v679
    %v681 = vmul.f32 %v678, %v680
    %v682 = vadd.f32 %v678, %v681
    %vm683 = vweird.f32 %v677
    %vm684 = vweird.f32 %v678
    %vm685 = vmor %vm683, %vm684
    %v686 = vsel %vm685, %v678, %v682
    %v687 = vand.u32 2147483647, %v677
    %vm688 = vcmp.eq.f32.partialorder %v687, 8.507059e+37
    %v689 = vand.u32 %v677, 2147483648
    %v690 = vor.u32 1.1754944e-38, %v689
    %v691 = vsel %vm688, %v690, %v686
    %v692 = vmul.f32 1.0, %v691
    %v693 = vmul.f32 %v668, %v364
    %v694 = vmul.f32 %v646, %v671
    %v695 = vadd.f32 %v693, %v694
    %v696 = vtanh.pop %v695
    %v697 = vmul.f32 %v692, %v696
    %v698 = vpack.c.bf16 %v697, %v697
    %s699 = scalar_lea.vmem %s2, 1
    %700 = vst [vmem:[%s699] sm:$0x1] %v698
    %s701 = scalar_lea.vmem %s0, 8
    %v702 = vld [vmem:[%s701] sm:$0xf]
    %v703 = vunpack.c.l.bf16 %v702
    %v704 = vld [vmem:[#allocation4] sm:$0xff]
    %v705 = vld [vmem:[#allocation4 + $0x8] sm:$0xff]
    %v706 = vld [vmem:[#allocation4 + $0x10] sm:$0xff]
    %v707 = vld [vmem:[#allocation4 + $0x18] sm:$0xff]
    %v708 = vld [vmem:[#allocation4 + $0x20] sm:$0xff]
    %v709 = vld [vmem:[#allocation4 + $0x28] sm:$0xff]
    %v710 = vld [vmem:[#allocation4 + $0x30] sm:$0xff]
    %v711 = vld [vmem:[#allocation4 + $0x38] sm:$0xff]
    %v712 = vld [vmem:[#allocation4 + $0x40] sm:$0xff]
    %v713 = vld [vmem:[#allocation4 + $0x48] sm:$0xff]
    %v714 = vld [vmem:[#allocation4 + $0x50] sm:$0xff]
    %v715 = vld [vmem:[#allocation4 + $0x58] sm:$0xff]
    %v716 = vld [vmem:[#allocation4 + $0x60] sm:$0xff]
    %v717 = vld [vmem:[#allocation4 + $0x68] sm:$0xff]
    %v718 = vld [vmem:[#allocation4 + $0x70] sm:$0xff]
    %v719 = vld [vmem:[#allocation4 + $0x78] sm:$0xff]
    %v720 = vld [vmem:[#allocation4 + $0x80] sm:$0xff]
    %v721 = vld [vmem:[#allocation4 + $0x88] sm:$0xff]
    %v722 = vld [vmem:[#allocation4 + $0x90] sm:$0xff]
    %v723 = vld [vmem:[#allocation4 + $0x98] sm:$0xff]
    %v724 = vld [vmem:[#allocation4 + $0xa0] sm:$0xff]
    %v725 = vld [vmem:[#allocation4 + $0xa8] sm:$0xff]
    %v726 = vld [vmem:[#allocation4 + $0xb0] sm:$0xff]
    %v727 = vld [vmem:[#allocation4 + $0xb8] sm:$0xff]
    %v728 = vld [vmem:[#allocation4 + $0xc0] sm:$0xff]
    %v729 = vld [vmem:[#allocation4 + $0xc8] sm:$0xff]
    %v730 = vld [vmem:[#allocation4 + $0xd0] sm:$0xff]
    %v731 = vld [vmem:[#allocation4 + $0xd8] sm:$0xff]
    %v732 = vld [vmem:[#allocation4 + $0xe0] sm:$0xff]
    %v733 = vld [vmem:[#allocation4 + $0xe8] sm:$0xff]
    %v734 = vld [vmem:[#allocation4 + $0xf0] sm:$0xff]
    %v735 = vld [vmem:[#allocation4 + $0xf8] sm:$0xff]
    %v768 = vunpack.c.l.b16 %v704
    %v769 = vunpack.c.h.b16 %v704
    %v770 = vunpack.c.l.b16 %v705
    %v771 = vunpack.c.h.b16 %v705
    %v772 = vunpack.c.l.b16 %v706
    %v773 = vunpack.c.h.b16 %v706
    %v774 = vunpack.c.l.b16 %v707
    %v775 = vunpack.c.h.b16 %v707
    %v776 = vunpack.c.l.b16 %v708
    %v777 = vunpack.c.h.b16 %v708
    %v778 = vunpack.c.l.b16 %v709
    %v779 = vunpack.c.h.b16 %v709
    %v780 = vunpack.c.l.b16 %v710
    %v781 = vunpack.c.h.b16 %v710
    %v782 = vunpack.c.l.b16 %v711
    %v783 = vunpack.c.h.b16 %v711
    %v784 = vunpack.c.l.b16 %v712
    %v785 = vunpack.c.h.b16 %v712
    %v786 = vunpack.c.l.b16 %v713
    %v787 = vunpack.c.h.b16 %v713
    %v788 = vunpack.c.l.b16 %v714
    %v789 = vunpack.c.h.b16 %v714
    %v790 = vunpack.c.l.b16 %v715
    %v791 = vunpack.c.h.b16 %v715
    %v792 = vunpack.c.l.b16 %v716
    %v793 = vunpack.c.h.b16 %v716
    %v794 = vunpack.c.l.b16 %v717
    %v795 = vunpack.c.h.b16 %v717
    %v796 = vunpack.c.l.b16 %v718
    %v797 = vunpack.c.h.b16 %v718
    %v798 = vunpack.c.l.b16 %v719
    %v799 = vunpack.c.h.b16 %v719
    %v800 = vunpack.c.l.b16 %v720
    %v801 = vunpack.c.h.b16 %v720
    %v802 = vunpack.c.l.b16 %v721
    %v803 = vunpack.c.h.b16 %v721
    %v804 = vunpack.c.l.b16 %v722
    %v805 = vunpack.c.h.b16 %v722
    %v806 = vunpack.c.l.b16 %v723
    %v807 = vunpack.c.h.b16 %v723
    %v808 = vunpack.c.l.b16 %v724
    %v809 = vunpack.c.h.b16 %v724
    %v810 = vunpack.c.l.b16 %v725
    %v811 = vunpack.c.h.b16 %v725
    %v812 = vunpack.c.l.b16 %v726
    %v813 = vunpack.c.h.b16 %v726
    %v814 = vunpack.c.l.b16 %v727
    %v815 = vunpack.c.h.b16 %v727
    %v816 = vunpack.c.l.b16 %v728
    %v817 = vunpack.c.h.b16 %v728
    %v818 = vunpack.c.l.b16 %v729
    %v819 = vunpack.c.h.b16 %v729
    %v820 = vunpack.c.l.b16 %v730
    %v821 = vunpack.c.h.b16 %v730
    %v822 = vunpack.c.l.b16 %v731
    %v823 = vunpack.c.h.b16 %v731
    %v824 = vunpack.c.l.b16 %v732
    %v825 = vunpack.c.h.b16 %v732
    %v826 = vunpack.c.l.b16 %v733
    %v827 = vunpack.c.h.b16 %v733
    %v828 = vunpack.c.l.b16 %v734
    %v829 = vunpack.c.h.b16 %v734
    %v830 = vunpack.c.l.b16 %v735
    %v831 = vunpack.c.h.b16 %v735
    %v832 = vpack.c.b16 %v772, %v768
    %v833 = vpack.c.b16 %v773, %v769
    %v834 = vpack.c.b16 %v774, %v770
    %v835 = vpack.c.b16 %v775, %v771
    %v836 = vpack.c.b16 %v780, %v776
    %v837 = vpack.c.b16 %v781, %v777
    %v838 = vpack.c.b16 %v782, %v778
    %v839 = vpack.c.b16 %v783, %v779
    %v840 = vpack.c.b16 %v788, %v784
    %v841 = vpack.c.b16 %v789, %v785
    %v842 = vpack.c.b16 %v790, %v786
    %v843 = vpack.c.b16 %v791, %v787
    %v844 = vpack.c.b16 %v796, %v792
    %v845 = vpack.c.b16 %v797, %v793
    %v846 = vpack.c.b16 %v798, %v794
    %v847 = vpack.c.b16 %v799, %v795
    %v848 = vpack.c.b16 %v804, %v800
    %v849 = vpack.c.b16 %v805, %v801
    %v850 = vpack.c.b16 %v806, %v802
    %v851 = vpack.c.b16 %v807, %v803
    %v852 = vpack.c.b16 %v812, %v808
    %v853 = vpack.c.b16 %v813, %v809
    %v854 = vpack.c.b16 %v814, %v810
    %v855 = vpack.c.b16 %v815, %v811
    %v856 = vpack.c.b16 %v820, %v816
    %v857 = vpack.c.b16 %v821, %v817
    %v858 = vpack.c.b16 %v822, %v818
    %v859 = vpack.c.b16 %v823, %v819
    %v860 = vpack.c.b16 %v828, %v824
    %v861 = vpack.c.b16 %v829, %v825
    %v862 = vpack.c.b16 %v830, %v826
    %v863 = vpack.c.b16 %v831, %v827
    %896 = vmatpush.bf16.msra.mxu0 %v860
    %897 = vmatpush.bf16.msra.mxu0 %v856
    %898 = vmatpush.bf16.msra.mxu0 %v852
    %899 = vmatpush.bf16.msra.mxu0 %v848
    %900 = vmatpush.bf16.msra.mxu0 %v844
    %901 = vmatpush.bf16.msra.mxu0 %v840
    %902 = vmatpush.bf16.msra.mxu0 %v836
    %903 = vmatpush.bf16.msra.mxu0 %v832
    %904 = vmatmul.bf16.gmra.mxu0 %v698
    %v905 = vpop.f32.mrf.mxu0
    %v906 = vadd.f32 0.0, %v905
    %v907 = vpop.f32.mrf.mxu0
    %908 = vdwg.mxu0
    %909 = vmatpush.bf16.msra.mxu0 %v861
    %910 = vmatpush.bf16.msra.mxu0 %v857
    %911 = vmatpush.bf16.msra.mxu0 %v853
    %912 = vmatpush.bf16.msra.mxu0 %v849
    %913 = vmatpush.bf16.msra.mxu0 %v845
    %914 = vmatpush.bf16.msra.mxu0 %v841
    %915 = vmatpush.bf16.msra.mxu0 %v837
    %916 = vmatpush.bf16.msra.mxu0 %v833
    %917 = vmatmul.bf16.gmra.mxu0 %v698
    %v918 = vpop.f32.mrf.mxu0
    %v919 = vadd.f32 0.0, %v918
    %v920 = vpop.f32.mrf.mxu0
    %921 = vdwg.mxu0
    %922 = vmatpush.bf16.msra.mxu0 %v862
    %923 = vmatpush.bf16.msra.mxu0 %v858
    %924 = vmatpush.bf16.msra.mxu0 %v854
    %925 = vmatpush.bf16.msra.mxu0 %v850
    %926 = vmatpush.bf16.msra.mxu0 %v846
    %927 = vmatpush.bf16.msra.mxu0 %v842
    %928 = vmatpush.bf16.msra.mxu0 %v838
    %929 = vmatpush.bf16.msra.mxu0 %v834
    %930 = vmatmul.bf16.gmra.mxu0 %v698
    %v931 = vpop.f32.mrf.mxu0
    %v932 = vadd.f32 0.0, %v931
    %v933 = vpop.f32.mrf.mxu0
    %934 = vdwg.mxu0
    %935 = vmatpush.bf16.msra.mxu0 %v863
    %936 = vmatpush.bf16.msra.mxu0 %v859
    %937 = vmatpush.bf16.msra.mxu0 %v855
    %938 = vmatpush.bf16.msra.mxu0 %v851
    %939 = vmatpush.bf16.msra.mxu0 %v847
    %940 = vmatpush.bf16.msra.mxu0 %v843
    %941 = vmatpush.bf16.msra.mxu0 %v839
    %942 = vmatpush.bf16.msra.mxu0 %v835
    %943 = vmatmul.bf16.gmra.mxu0 %v698
    %v944 = vpop.f32.mrf.mxu0
    %v945 = vadd.f32 0.0, %v944
    %v946 = vpop.f32.mrf.mxu0
    %947 = vdwg.mxu0
    %v952 = vrot.slane %v919, 6
    %v953 = vrot.slane %v932, 4
    %v954 = vrot.slane %v945, 2
    %v955 = vsel %vm289, %v906, %v952
    %v956 = vsel %vm291, %v953, %v954
    %v957 = vsel %vm293, %v955, %v956
    %v959 = vadd.f32 %v703, %v957
    %v960 = vxor.u32 %v959, 2147483648
    %v961 = vmul.f32 %v960, 1.442695
    %v962 = vpow.pop %v961
    %v963 = vadd.f32 %v962, 1.0
    %v964 = vrcp.pop %v963
    %v965 = vmul.f32 %v963, %v964
    %v966 = vsub.f32 1.0, %v965
    %v967 = vmul.f32 %v964, %v966
    %v968 = vadd.f32 %v964, %v967
    %vm969 = vweird.f32 %v963
    %vm970 = vweird.f32 %v964
    %vm971 = vmor %vm969, %vm970
    %v972 = vsel %vm971, %v964, %v968
    %v973 = vand.u32 2147483647, %v963
    %vm974 = vcmp.eq.f32.partialorder %v973, 8.507059e+37
    %v975 = vand.u32 %v963, 2147483648
    %v976 = vor.u32 1.1754944e-38, %v975
    %v977 = vsel %vm974, %v976, %v972
    %v978 = vmul.f32 1.0, %v977
    %v980 = vrot.slane %v959, 2
    %v982 = vxor.u32 %v980, 2147483648
    %v983 = vmul.f32 %v982, 1.442695
    %v984 = vpow.pop %v983
    %v985 = vadd.f32 %v984, 1.0
    %v986 = vrcp.pop %v985
    %v987 = vmul.f32 %v985, %v986
    %v988 = vsub.f32 1.0, %v987
    %v989 = vmul.f32 %v986, %v988
    %v990 = vadd.f32 %v986, %v989
    %vm991 = vweird.f32 %v985
    %vm992 = vweird.f32 %v986
    %vm993 = vmor %vm991, %vm992
    %v994 = vsel %vm993, %v986, %v990
    %v995 = vand.u32 2147483647, %v985
    %vm996 = vcmp.eq.f32.partialorder %v995, 8.507059e+37
    %v997 = vand.u32 %v985, 2147483648
    %v998 = vor.u32 1.1754944e-38, %v997
    %v999 = vsel %vm996, %v998, %v994
    %v1000 = vmul.f32 1.0, %v999
    %v1001 = vrot.slane %v959, 4
    %v1003 = vtanh.pop %v1001
    %v1004 = vrot.slane %v959, 6
    %v1006 = vxor.u32 %v1004, 2147483648
    %v1007 = vmul.f32 %v1006, 1.442695
    %v1008 = vpow.pop %v1007
    %v1009 = vadd.f32 %v1008, 1.0
    %v1010 = vrcp.pop %v1009
    %v1011 = vmul.f32 %v1009, %v1010
    %v1012 = vsub.f32 1.0, %v1011
    %v1013 = vmul.f32 %v1010, %v1012
    %v1014 = vadd.f32 %v1010, %v1013
    %vm1015 = vweird.f32 %v1009
    %vm1016 = vweird.f32 %v1010
    %vm1017 = vmor %vm1015, %vm1016
    %v1018 = vsel %vm1017, %v1010, %v1014
    %v1019 = vand.u32 2147483647, %v1009
    %vm1020 = vcmp.eq.f32.partialorder %v1019, 8.507059e+37
    %v1021 = vand.u32 %v1009, 2147483648
    %v1022 = vor.u32 1.1754944e-38, %v1021
    %v1023 = vsel %vm1020, %v1022, %v1018
    %v1024 = vmul.f32 1.0, %v1023
    %v1025 = vmul.f32 %v1000, %v695
    %v1026 = vmul.f32 %v978, %v1003
    %v1027 = vadd.f32 %v1025, %v1026
    %v1028 = vtanh.pop %v1027
    %v1029 = vmul.f32 %v1024, %v1028
    %v1030 = vpack.c.bf16 %v1029, %v1029
    %s1031 = scalar_lea.vmem %s2, 2
    %1032 = vst [vmem:[%s1031] sm:$0x1] %v1030
    %s1033 = scalar_lea.vmem %s0, 12
    %v1034 = vld [vmem:[%s1033] sm:$0xf]
    %v1035 = vunpack.c.l.bf16 %v1034
    %v1036 = vld [vmem:[#allocation4] sm:$0xff]
    %v1037 = vld [vmem:[#allocation4 + $0x8] sm:$0xff]
    %v1038 = vld [vmem:[#allocation4 + $0x10] sm:$0xff]
    %v1039 = vld [vmem:[#allocation4 + $0x18] sm:$0xff]
    %v1040 = vld [vmem:[#allocation4 + $0x20] sm:$0xff]
    %v1041 = vld [vmem:[#allocation4 + $0x28] sm:$0xff]
    %v1042 = vld [vmem:[#allocation4 + $0x30] sm:$0xff]
    %v1043 = vld [vmem:[#allocation4 + $0x38] sm:$0xff]
    %v1044 = vld [vmem:[#allocation4 + $0x40] sm:$0xff]
    %v1045 = vld [vmem:[#allocation4 + $0x48] sm:$0xff]
    %v1046 = vld [vmem:[#allocation4 + $0x50] sm:$0xff]
    %v1047 = vld [vmem:[#allocation4 + $0x58] sm:$0xff]
    %v1048 = vld [vmem:[#allocation4 + $0x60] sm:$0xff]
    %v1049 = vld [vmem:[#allocation4 + $0x68] sm:$0xff]
    %v1050 = vld [vmem:[#allocation4 + $0x70] sm:$0xff]
    %v1051 = vld [vmem:[#allocation4 + $0x78] sm:$0xff]
    %v1052 = vld [vmem:[#allocation4 + $0x80] sm:$0xff]
    %v1053 = vld [vmem:[#allocation4 + $0x88] sm:$0xff]
    %v1054 = vld [vmem:[#allocation4 + $0x90] sm:$0xff]
    %v1055 = vld [vmem:[#allocation4 + $0x98] sm:$0xff]
    %v1056 = vld [vmem:[#allocation4 + $0xa0] sm:$0xff]
    %v1057 = vld [vmem:[#allocation4 + $0xa8] sm:$0xff]
    %v1058 = vld [vmem:[#allocation4 + $0xb0] sm:$0xff]
    %v1059 = vld [vmem:[#allocation4 + $0xb8] sm:$0xff]
    %v1060 = vld [vmem:[#allocation4 + $0xc0] sm:$0xff]
    %v1061 = vld [vmem:[#allocation4 + $0xc8] sm:$0xff]
    %v1062 = vld [vmem:[#allocation4 + $0xd0] sm:$0xff]
    %v1063 = vld [vmem:[#allocation4 + $0xd8] sm:$0xff]
    %v1064 = vld [vmem:[#allocation4 + $0xe0] sm:$0xff]
    %v1065 = vld [vmem:[#allocation4 + $0xe8] sm:$0xff]
    %v1066 = vld [vmem:[#allocation4 + $0xf0] sm:$0xff]
    %v1067 = vld [vmem:[#allocation4 + $0xf8] sm:$0xff]
    %v1100 = vunpack.c.l.b16 %v1036
    %v1101 = vunpack.c.h.b16 %v1036
    %v1102 = vunpack.c.l.b16 %v1037
    %v1103 = vunpack.c.h.b16 %v1037
    %v1104 = vunpack.c.l.b16 %v1038
    %v1105 = vunpack.c.h.b16 %v1038
    %v1106 = vunpack.c.l.b16 %v1039
    %v1107 = vunpack.c.h.b16 %v1039
    %v1108 = vunpack.c.l.b16 %v1040
    %v1109 = vunpack.c.h.b16 %v1040
    %v1110 = vunpack.c.l.b16 %v1041
    %v1111 = vunpack.c.h.b16 %v1041
    %v1112 = vunpack.c.l.b16 %v1042
    %v1113 = vunpack.c.h.b16 %v1042
    %v1114 = vunpack.c.l.b16 %v1043
    %v1115 = vunpack.c.h.b16 %v1043
    %v1116 = vunpack.c.l.b16 %v1044
    %v1117 = vunpack.c.h.b16 %v1044
    %v1118 = vunpack.c.l.b16 %v1045
    %v1119 = vunpack.c.h.b16 %v1045
    %v1120 = vunpack.c.l.b16 %v1046
    %v1121 = vunpack.c.h.b16 %v1046
    %v1122 = vunpack.c.l.b16 %v1047
    %v1123 = vunpack.c.h.b16 %v1047
    %v1124 = vunpack.c.l.b16 %v1048
    %v1125 = vunpack.c.h.b16 %v1048
    %v1126 = vunpack.c.l.b16 %v1049
    %v1127 = vunpack.c.h.b16 %v1049
    %v1128 = vunpack.c.l.b16 %v1050
    %v1129 = vunpack.c.h.b16 %v1050
    %v1130 = vunpack.c.l.b16 %v1051
    %v1131 = vunpack.c.h.b16 %v1051
    %v1132 = vunpack.c.l.b16 %v1052
    %v1133 = vunpack.c.h.b16 %v1052
    %v1134 = vunpack.c.l.b16 %v1053
    %v1135 = vunpack.c.h.b16 %v1053
    %v1136 = vunpack.c.l.b16 %v1054
    %v1137 = vunpack.c.h.b16 %v1054
    %v1138 = vunpack.c.l.b16 %v1055
    %v1139 = vunpack.c.h.b16 %v1055
    %v1140 = vunpack.c.l.b16 %v1056
    %v1141 = vunpack.c.h.b16 %v1056
    %v1142 = vunpack.c.l.b16 %v1057
    %v1143 = vunpack.c.h.b16 %v1057
    %v1144 = vunpack.c.l.b16 %v1058
    %v1145 = vunpack.c.h.b16 %v1058
    %v1146 = vunpack.c.l.b16 %v1059
    %v1147 = vunpack.c.h.b16 %v1059
    %v1148 = vunpack.c.l.b16 %v1060
    %v1149 = vunpack.c.h.b16 %v1060
    %v1150 = vunpack.c.l.b16 %v1061
    %v1151 = vunpack.c.h.b16 %v1061
    %v1152 = vunpack.c.l.b16 %v1062
    %v1153 = vunpack.c.h.b16 %v1062
    %v1154 = vunpack.c.l.b16 %v1063
    %v1155 = vunpack.c.h.b16 %v1063
    %v1156 = vunpack.c.l.b16 %v1064
    %v1157 = vunpack.c.h.b16 %v1064
    %v1158 = vunpack.c.l.b16 %v1065
    %v1159 = vunpack.c.h.b16 %v1065
    %v1160 = vunpack.c.l.b16 %v1066
    %v1161 = vunpack.c.h.b16 %v1066
    %v1162 = vunpack.c.l.b16 %v1067
    %v1163 = vunpack.c.h.b16 %v1067
    %v1164 = vpack.c.b16 %v1104, %v1100
    %v1165 = vpack.c.b16 %v1105, %v1101
    %v1166 = vpack.c.b16 %v1106, %v1102
    %v1167 = vpack.c.b16 %v1107, %v1103
    %v1168 = vpack.c.b16 %v1112, %v1108
    %v1169 = vpack.c.b16 %v1113, %v1109
    %v1170 = vpack.c.b16 %v1114, %v1110
    %v1171 = vpack.c.b16 %v1115, %v1111
    %v1172 = vpack.c.b16 %v1120, %v1116
    %v1173 = vpack.c.b16 %v1121, %v1117
    %v1174 = vpack.c.b16 %v1122, %v1118
    %v1175 = vpack.c.b16 %v1123, %v1119
    %v1176 = vpack.c.b16 %v1128, %v1124
    %v1177 = vpack.c.b16 %v1129, %v1125
    %v1178 = vpack.c.b16 %v1130, %v1126
    %v1179 = vpack.c.b16 %v1131, %v1127
    %v1180 = vpack.c.b16 %v1136, %v1132
    %v1181 = vpack.c.b16 %v1137, %v1133
    %v1182 = vpack.c.b16 %v1138, %v1134
    %v1183 = vpack.c.b16 %v1139, %v1135
    %v1184 = vpack.c.b16 %v1144, %v1140
    %v1185 = vpack.c.b16 %v1145, %v1141
    %v1186 = vpack.c.b16 %v1146, %v1142
    %v1187 = vpack.c.b16 %v1147, %v1143
    %v1188 = vpack.c.b16 %v1152, %v1148
    %v1189 = vpack.c.b16 %v1153, %v1149
    %v1190 = vpack.c.b16 %v1154, %v1150
    %v1191 = vpack.c.b16 %v1155, %v1151
    %v1192 = vpack.c.b16 %v1160, %v1156
    %v1193 = vpack.c.b16 %v1161, %v1157
    %v1194 = vpack.c.b16 %v1162, %v1158
    %v1195 = vpack.c.b16 %v1163, %v1159
    %1228 = vmatpush.bf16.msra.mxu0 %v1192
    %1229 = vmatpush.bf16.msra.mxu0 %v1188
    %1230 = vmatpush.bf16.msra.mxu0 %v1184
    %1231 = vmatpush.bf16.msra.mxu0 %v1180
    %1232 = vmatpush.bf16.msra.mxu0 %v1176
    %1233 = vmatpush.bf16.msra.mxu0 %v1172
    %1234 = vmatpush.bf16.msra.mxu0 %v1168
    %1235 = vmatpush.bf16.msra.mxu0 %v1164
    %1236 = vmatmul.bf16.gmra.mxu0 %v1030
    %v1237 = vpop.f32.mrf.mxu0
    %v1238 = vadd.f32 0.0, %v1237
    %v1239 = vpop.f32.mrf.mxu0
    %1240 = vdwg.mxu0
    %1241 = vmatpush.bf16.msra.mxu0 %v1193
    %1242 = vmatpush.bf16.msra.mxu0 %v1189
    %1243 = vmatpush.bf16.msra.mxu0 %v1185
    %1244 = vmatpush.bf16.msra.mxu0 %v1181
    %1245 = vmatpush.bf16.msra.mxu0 %v1177
    %1246 = vmatpush.bf16.msra.mxu0 %v1173
    %1247 = vmatpush.bf16.msra.mxu0 %v1169
    %1248 = vmatpush.bf16.msra.mxu0 %v1165
    %1249 = vmatmul.bf16.gmra.mxu0 %v1030
    %v1250 = vpop.f32.mrf.mxu0
    %v1251 = vadd.f32 0.0, %v1250
    %v1252 = vpop.f32.mrf.mxu0
    %1253 = vdwg.mxu0
    %1254 = vmatpush.bf16.msra.mxu0 %v1194
    %1255 = vmatpush.bf16.msra.mxu0 %v1190
    %1256 = vmatpush.bf16.msra.mxu0 %v1186
    %1257 = vmatpush.bf16.msra.mxu0 %v1182
    %1258 = vmatpush.bf16.msra.mxu0 %v1178
    %1259 = vmatpush.bf16.msra.mxu0 %v1174
    %1260 = vmatpush.bf16.msra.mxu0 %v1170
    %1261 = vmatpush.bf16.msra.mxu0 %v1166
    %1262 = vmatmul.bf16.gmra.mxu0 %v1030
    %v1263 = vpop.f32.mrf.mxu0
    %v1264 = vadd.f32 0.0, %v1263
    %v1265 = vpop.f32.mrf.mxu0
    %1266 = vdwg.mxu0
    %1267 = vmatpush.bf16.msra.mxu0 %v1195
    %1268 = vmatpush.bf16.msra.mxu0 %v1191
    %1269 = vmatpush.bf16.msra.mxu0 %v1187
    %1270 = vmatpush.bf16.msra.mxu0 %v1183
    %1271 = vmatpush.bf16.msra.mxu0 %v1179
    %1272 = vmatpush.bf16.msra.mxu0 %v1175
    %1273 = vmatpush.bf16.msra.mxu0 %v1171
    %1274 = vmatpush.bf16.msra.mxu0 %v1167
    %1275 = vmatmul.bf16.gmra.mxu0 %v1030
    %v1276 = vpop.f32.mrf.mxu0
    %v1277 = vadd.f32 0.0, %v1276
    %v1278 = vpop.f32.mrf.mxu0
    %1279 = vdwg.mxu0
    %v1284 = vrot.slane %v1251, 6
    %v1285 = vrot.slane %v1264, 4
    %v1286 = vrot.slane %v1277, 2
    %v1287 = vsel %vm289, %v1238, %v1284
    %v1288 = vsel %vm291, %v1285, %v1286
    %v1289 = vsel %vm293, %v1287, %v1288
    %v1291 = vadd.f32 %v1035, %v1289
    %v1292 = vxor.u32 %v1291, 2147483648
    %v1293 = vmul.f32 %v1292, 1.442695
    %v1294 = vpow.pop %v1293
    %v1295 = vadd.f32 %v1294, 1.0
    %v1296 = vrcp.pop %v1295
    %v1297 = vmul.f32 %v1295, %v1296
    %v1298 = vsub.f32 1.0, %v1297
    %v1299 = vmul.f32 %v1296, %v1298
    %v1300 = vadd.f32 %v1296, %v1299
    %vm1301 = vweird.f32 %v1295
    %vm1302 = vweird.f32 %v1296
    %vm1303 = vmor %vm1301, %vm1302
    %v1304 = vsel %vm1303, %v1296, %v1300
    %v1305 = vand.u32 2147483647, %v1295
    %vm1306 = vcmp.eq.f32.partialorder %v1305, 8.507059e+37
    %v1307 = vand.u32 %v1295, 2147483648
    %v1308 = vor.u32 1.1754944e-38, %v1307
    %v1309 = vsel %vm1306, %v1308, %v1304
    %v1310 = vmul.f32 1.0, %v1309
    %v1312 = vrot.slane %v1291, 2
    %v1314 = vxor.u32 %v1312, 2147483648
    %v1315 = vmul.f32 %v1314, 1.442695
    %v1316 = vpow.pop %v1315
    %v1317 = vadd.f32 %v1316, 1.0
    %v1318 = vrcp.pop %v1317
    %v1319 = vmul.f32 %v1317, %v1318
    %v1320 = vsub.f32 1.0, %v1319
    %v1321 = vmul.f32 %v1318, %v1320
    %v1322 = vadd.f32 %v1318, %v1321
    %vm1323 = vweird.f32 %v1317
    %vm1324 = vweird.f32 %v1318
    %vm1325 = vmor %vm1323, %vm1324
    %v1326 = vsel %vm1325, %v1318, %v1322
    %v1327 = vand.u32 2147483647, %v1317
    %vm1328 = vcmp.eq.f32.partialorder %v1327, 8.507059e+37
    %v1329 = vand.u32 %v1317, 2147483648
    %v1330 = vor.u32 1.1754944e-38, %v1329
    %v1331 = vsel %vm1328, %v1330, %v1326
    %v1332 = vmul.f32 1.0, %v1331
    %v1333 = vrot.slane %v1291, 4
    %v1335 = vtanh.pop %v1333
    %v1336 = vrot.slane %v1291, 6
    %v1338 = vxor.u32 %v1336, 2147483648
    %v1339 = vmul.f32 %v1338, 1.442695
    %v1340 = vpow.pop %v1339
    %v1341 = vadd.f32 %v1340, 1.0
    %v1342 = vrcp.pop %v1341
    %v1343 = vmul.f32 %v1341, %v1342
    %v1344 = vsub.f32 1.0, %v1343
    %v1345 = vmul.f32 %v1342, %v1344
    %v1346 = vadd.f32 %v1342, %v1345
    %vm1347 = vweird.f32 %v1341
    %vm1348 = vweird.f32 %v1342
    %vm1349 = vmor %vm1347, %vm1348
    %v1350 = vsel %vm1349, %v1342, %v1346
    %v1351 = vand.u32 2147483647, %v1341
    %vm1352 = vcmp.eq.f32.partialorder %v1351, 8.507059e+37
    %v1353 = vand.u32 %v1341, 2147483648
    %v1354 = vor.u32 1.1754944e-38, %v1353
    %v1355 = vsel %vm1352, %v1354, %v1350
    %v1356 = vmul.f32 1.0, %v1355
    %v1357 = vmul.f32 %v1332, %v1027
    %v1358 = vmul.f32 %v1310, %v1335
    %v1359 = vadd.f32 %v1357, %v1358
    %v1360 = vtanh.pop %v1359
    %v1361 = vmul.f32 %v1356, %v1360
    %v1362 = vpack.c.bf16 %v1361, %v1361
    %s1363 = scalar_lea.vmem %s2, 3
    %1364 = vst [vmem:[%s1363] sm:$0x1] %v1362
    %s1365 = scalar_lea.vmem %s0, 16
    %v1366 = vld [vmem:[%s1365] sm:$0xf]
    %v1367 = vunpack.c.l.bf16 %v1366
    %v1368 = vld [vmem:[#allocation4] sm:$0xff]
    %v1369 = vld [vmem:[#allocation4 + $0x8] sm:$0xff]
    %v1370 = vld [vmem:[#allocation4 + $0x10] sm:$0xff]
    %v1371 = vld [vmem:[#allocation4 + $0x18] sm:$0xff]
    %v1372 = vld [vmem:[#allocation4 + $0x20] sm:$0xff]
    %v1373 = vld [vmem:[#allocation4 + $0x28] sm:$0xff]
    %v1374 = vld [vmem:[#allocation4 + $0x30] sm:$0xff]
    %v1375 = vld [vmem:[#allocation4 + $0x38] sm:$0xff]
    %v1376 = vld [vmem:[#allocation4 + $0x40] sm:$0xff]
    %v1377 = vld [vmem:[#allocation4 + $0x48] sm:$0xff]
    %v1378 = vld [vmem:[#allocation4 + $0x50] sm:$0xff]
    %v1379 = vld [vmem:[#allocation4 + $0x58] sm:$0xff]
    %v1380 = vld [vmem:[#allocation4 + $0x60] sm:$0xff]
    %v1381 = vld [vmem:[#allocation4 + $0x68] sm:$0xff]
    %v1382 = vld [vmem:[#allocation4 + $0x70] sm:$0xff]
    %v1383 = vld [vmem:[#allocation4 + $0x78] sm:$0xff]
    %v1384 = vld [vmem:[#allocation4 + $0x80] sm:$0xff]
    %v1385 = vld [vmem:[#allocation4 + $0x88] sm:$0xff]
    %v1386 = vld [vmem:[#allocation4 + $0x90] sm:$0xff]
    %v1387 = vld [vmem:[#allocation4 + $0x98] sm:$0xff]
    %v1388 = vld [vmem:[#allocation4 + $0xa0] sm:$0xff]
    %v1389 = vld [vmem:[#allocation4 + $0xa8] sm:$0xff]
    %v1390 = vld [vmem:[#allocation4 + $0xb0] sm:$0xff]
    %v1391 = vld [vmem:[#allocation4 + $0xb8] sm:$0xff]
    %v1392 = vld [vmem:[#allocation4 + $0xc0] sm:$0xff]
    %v1393 = vld [vmem:[#allocation4 + $0xc8] sm:$0xff]
    %v1394 = vld [vmem:[#allocation4 + $0xd0] sm:$0xff]
    %v1395 = vld [vmem:[#allocation4 + $0xd8] sm:$0xff]
    %v1396 = vld [vmem:[#allocation4 + $0xe0] sm:$0xff]
    %v1397 = vld [vmem:[#allocation4 + $0xe8] sm:$0xff]
    %v1398 = vld [vmem:[#allocation4 + $0xf0] sm:$0xff]
    %v1399 = vld [vmem:[#allocation4 + $0xf8] sm:$0xff]
    %v1432 = vunpack.c.l.b16 %v1368
    %v1433 = vunpack.c.h.b16 %v1368
    %v1434 = vunpack.c.l.b16 %v1369
    %v1435 = vunpack.c.h.b16 %v1369
    %v1436 = vunpack.c.l.b16 %v1370
    %v1437 = vunpack.c.h.b16 %v1370
    %v1438 = vunpack.c.l.b16 %v1371
    %v1439 = vunpack.c.h.b16 %v1371
    %v1440 = vunpack.c.l.b16 %v1372
    %v1441 = vunpack.c.h.b16 %v1372
    %v1442 = vunpack.c.l.b16 %v1373
    %v1443 = vunpack.c.h.b16 %v1373
    %v1444 = vunpack.c.l.b16 %v1374
    %v1445 = vunpack.c.h.b16 %v1374
    %v1446 = vunpack.c.l.b16 %v1375
    %v1447 = vunpack.c.h.b16 %v1375
    %v1448 = vunpack.c.l.b16 %v1376
    %v1449 = vunpack.c.h.b16 %v1376
    %v1450 = vunpack.c.l.b16 %v1377
    %v1451 = vunpack.c.h.b16 %v1377
    %v1452 = vunpack.c.l.b16 %v1378
    %v1453 = vunpack.c.h.b16 %v1378
    %v1454 = vunpack.c.l.b16 %v1379
    %v1455 = vunpack.c.h.b16 %v1379
    %v1456 = vunpack.c.l.b16 %v1380
    %v1457 = vunpack.c.h.b16 %v1380
    %v1458 = vunpack.c.l.b16 %v1381
    %v1459 = vunpack.c.h.b16 %v1381
    %v1460 = vunpack.c.l.b16 %v1382
    %v1461 = vunpack.c.h.b16 %v1382
    %v1462 = vunpack.c.l.b16 %v1383
    %v1463 = vunpack.c.h.b16 %v1383
    %v1464 = vunpack.c.l.b16 %v1384
    %v1465 = vunpack.c.h.b16 %v1384
    %v1466 = vunpack.c.l.b16 %v1385
    %v1467 = vunpack.c.h.b16 %v1385
    %v1468 = vunpack.c.l.b16 %v1386
    %v1469 = vunpack.c.h.b16 %v1386
    %v1470 = vunpack.c.l.b16 %v1387
    %v1471 = vunpack.c.h.b16 %v1387
    %v1472 = vunpack.c.l.b16 %v1388
    %v1473 = vunpack.c.h.b16 %v1388
    %v1474 = vunpack.c.l.b16 %v1389
    %v1475 = vunpack.c.h.b16 %v1389
    %v1476 = vunpack.c.l.b16 %v1390
    %v1477 = vunpack.c.h.b16 %v1390
    %v1478 = vunpack.c.l.b16 %v1391
    %v1479 = vunpack.c.h.b16 %v1391
    %v1480 = vunpack.c.l.b16 %v1392
    %v1481 = vunpack.c.h.b16 %v1392
    %v1482 = vunpack.c.l.b16 %v1393
    %v1483 = vunpack.c.h.b16 %v1393
    %v1484 = vunpack.c.l.b16 %v1394
    %v1485 = vunpack.c.h.b16 %v1394
    %v1486 = vunpack.c.l.b16 %v1395
    %v1487 = vunpack.c.h.b16 %v1395
    %v1488 = vunpack.c.l.b16 %v1396
    %v1489 = vunpack.c.h.b16 %v1396
    %v1490 = vunpack.c.l.b16 %v1397
    %v1491 = vunpack.c.h.b16 %v1397
    %v1492 = vunpack.c.l.b16 %v1398
    %v1493 = vunpack.c.h.b16 %v1398
    %v1494 = vunpack.c.l.b16 %v1399
    %v1495 = vunpack.c.h.b16 %v1399
    %v1496 = vpack.c.b16 %v1436, %v1432
    %v1497 = vpack.c.b16 %v1437, %v1433
    %v1498 = vpack.c.b16 %v1438, %v1434
    %v1499 = vpack.c.b16 %v1439, %v1435
    %v1500 = vpack.c.b16 %v1444, %v1440
    %v1501 = vpack.c.b16 %v1445, %v1441
    %v1502 = vpack.c.b16 %v1446, %v1442
    %v1503 = vpack.c.b16 %v1447, %v1443
    %v1504 = vpack.c.b16 %v1452, %v1448
    %v1505 = vpack.c.b16 %v1453, %v1449
    %v1506 = vpack.c.b16 %v1454, %v1450
    %v1507 = vpack.c.b16 %v1455, %v1451
    %v1508 = vpack.c.b16 %v1460, %v1456
    %v1509 = vpack.c.b16 %v1461, %v1457
    %v1510 = vpack.c.b16 %v1462, %v1458
    %v1511 = vpack.c.b16 %v1463, %v1459
    %v1512 = vpack.c.b16 %v1468, %v1464
    %v1513 = vpack.c.b16 %v1469, %v1465
    %v1514 = vpack.c.b16 %v1470, %v1466
    %v1515 = vpack.c.b16 %v1471, %v1467
    %v1516 = vpack.c.b16 %v1476, %v1472
    %v1517 = vpack.c.b16 %v1477, %v1473
    %v1518 = vpack.c.b16 %v1478, %v1474
    %v1519 = vpack.c.b16 %v1479, %v1475
    %v1520 = vpack.c.b16 %v1484, %v1480
    %v1521 = vpack.c.b16 %v1485, %v1481
    %v1522 = vpack.c.b16 %v1486, %v1482
    %v1523 = vpack.c.b16 %v1487, %v1483
    %v1524 = vpack.c.b16 %v1492, %v1488
    %v1525 = vpack.c.b16 %v1493, %v1489
    %v1526 = vpack.c.b16 %v1494, %v1490
    %v1527 = vpack.c.b16 %v1495, %v1491
    %1560 = vmatpush.bf16.msra.mxu0 %v1524
    %1561 = vmatpush.bf16.msra.mxu0 %v1520
    %1562 = vmatpush.bf16.msra.mxu0 %v1516
    %1563 = vmatpush.bf16.msra.mxu0 %v1512
    %1564 = vmatpush.bf16.msra.mxu0 %v1508
    %1565 = vmatpush.bf16.msra.mxu0 %v1504
    %1566 = vmatpush.bf16.msra.mxu0 %v1500
    %1567 = vmatpush.bf16.msra.mxu0 %v1496
    %1568 = vmatmul.bf16.gmra.mxu0 %v1362
    %v1569 = vpop.f32.mrf.mxu0
    %v1570 = vadd.f32 0.0, %v1569
    %v1571 = vpop.f32.mrf.mxu0
    %1572 = vdwg.mxu0
    %1573 = vmatpush.bf16.msra.mxu0 %v1525
    %1574 = vmatpush.bf16.msra.mxu0 %v1521
    %1575 = vmatpush.bf16.msra.mxu0 %v1517
    %1576 = vmatpush.bf16.msra.mxu0 %v1513
    %1577 = vmatpush.bf16.msra.mxu0 %v1509
    %1578 = vmatpush.bf16.msra.mxu0 %v1505
    %1579 = vmatpush.bf16.msra.mxu0 %v1501
    %1580 = vmatpush.bf16.msra.mxu0 %v1497
    %1581 = vmatmul.bf16.gmra.mxu0 %v1362
    %v1582 = vpop.f32.mrf.mxu0
    %v1583 = vadd.f32 0.0, %v1582
    %v1584 = vpop.f32.mrf.mxu0
    %1585 = vdwg.mxu0
    %1586 = vmatpush.bf16.msra.mxu0 %v1526
    %1587 = vmatpush.bf16.msra.mxu0 %v1522
    %1588 = vmatpush.bf16.msra.mxu0 %v1518
    %1589 = vmatpush.bf16.msra.mxu0 %v1514
    %1590 = vmatpush.bf16.msra.mxu0 %v1510
    %1591 = vmatpush.bf16.msra.mxu0 %v1506
    %1592 = vmatpush.bf16.msra.mxu0 %v1502
    %1593 = vmatpush.bf16.msra.mxu0 %v1498
    %1594 = vmatmul.bf16.gmra.mxu0 %v1362
    %v1595 = vpop.f32.mrf.mxu0
    %v1596 = vadd.f32 0.0, %v1595
    %v1597 = vpop.f32.mrf.mxu0
    %1598 = vdwg.mxu0
    %1599 = vmatpush.bf16.msra.mxu0 %v1527
    %1600 = vmatpush.bf16.msra.mxu0 %v1523
    %1601 = vmatpush.bf16.msra.mxu0 %v1519
    %1602 = vmatpush.bf16.msra.mxu0 %v1515
    %1603 = vmatpush.bf16.msra.mxu0 %v1511
    %1604 = vmatpush.bf16.msra.mxu0 %v1507
    %1605 = vmatpush.bf16.msra.mxu0 %v1503
    %1606 = vmatpush.bf16.msra.mxu0 %v1499
    %1607 = vmatmul.bf16.gmra.mxu0 %v1362
    %v1608 = vpop.f32.mrf.mxu0
    %v1609 = vadd.f32 0.0, %v1608
    %v1610 = vpop.f32.mrf.mxu0
    %1611 = vdwg.mxu0
    %v1616 = vrot.slane %v1583, 6
    %v1617 = vrot.slane %v1596, 4
    %v1618 = vrot.slane %v1609, 2
    %v1619 = vsel %vm289, %v1570, %v1616
    %v1620 = vsel %vm291, %v1617, %v1618
    %v1621 = vsel %vm293, %v1619, %v1620
    %v1623 = vadd.f32 %v1367, %v1621
    %v1624 = vxor.u32 %v1623, 2147483648
    %v1625 = vmul.f32 %v1624, 1.442695
    %v1626 = vpow.pop %v1625
    %v1627 = vadd.f32 %v1626, 1.0
    %v1628 = vrcp.pop %v1627
    %v1629 = vmul.f32 %v1627, %v1628
    %v1630 = vsub.f32 1.0, %v1629
    %v1631 = vmul.f32 %v1628, %v1630
    %v1632 = vadd.f32 %v1628, %v1631
    %vm1633 = vweird.f32 %v1627
    %vm1634 = vweird.f32 %v1628
    %vm1635 = vmor %vm1633, %vm1634
    %v1636 = vsel %vm1635, %v1628, %v1632
    %v1637 = vand.u32 2147483647, %v1627
    %vm1638 = vcmp.eq.f32.partialorder %v1637, 8.507059e+37
    %v1639 = vand.u32 %v1627, 2147483648
    %v1640 = vor.u32 1.1754944e-38, %v1639
    %v1641 = vsel %vm1638, %v1640, %v1636
    %v1642 = vmul.f32 1.0, %v1641
    %v1644 = vrot.slane %v1623, 2
    %v1646 = vxor.u32 %v1644, 2147483648
    %v1647 = vmul.f32 %v1646, 1.442695
    %v1648 = vpow.pop %v1647
    %v1649 = vadd.f32 %v1648, 1.0
    %v1650 = vrcp.pop %v1649
    %v1651 = vmul.f32 %v1649, %v1650
    %v1652 = vsub.f32 1.0, %v1651
    %v1653 = vmul.f32 %v1650, %v1652
    %v1654 = vadd.f32 %v1650, %v1653
    %vm1655 = vweird.f32 %v1649
    %vm1656 = vweird.f32 %v1650
    %vm1657 = vmor %vm1655, %vm1656
    %v1658 = vsel %vm1657, %v1650, %v1654
    %v1659 = vand.u32 2147483647, %v1649
    %vm1660 = vcmp.eq.f32.partialorder %v1659, 8.507059e+37
    %v1661 = vand.u32 %v1649, 2147483648
    %v1662 = vor.u32 1.1754944e-38, %v1661
    %v1663 = vsel %vm1660, %v1662, %v1658
    %v1664 = vmul.f32 1.0, %v1663
    %v1665 = vrot.slane %v1623, 4
    %v1667 = vtanh.pop %v1665
    %v1668 = vrot.slane %v1623, 6
    %v1670 = vxor.u32 %v1668, 2147483648
    %v1671 = vmul.f32 %v1670, 1.442695
    %v1672 = vpow.pop %v1671
    %v1673 = vadd.f32 %v1672, 1.0
    %v1674 = vrcp.pop %v1673
    %v1675 = vmul.f32 %v1673, %v1674
    %v1676 = vsub.f32 1.0, %v1675
    %v1677 = vmul.f32 %v1674, %v1676
    %v1678 = vadd.f32 %v1674, %v1677
    %vm1679 = vweird.f32 %v1673
    %vm1680 = vweird.f32 %v1674
    %vm1681 = vmor %vm1679, %vm1680
    %v1682 = vsel %vm1681, %v1674, %v1678
    %v1683 = vand.u32 2147483647, %v1673
    %vm1684 = vcmp.eq.f32.partialorder %v1683, 8.507059e+37
    %v1685 = vand.u32 %v1673, 2147483648
    %v1686 = vor.u32 1.1754944e-38, %v1685
    %v1687 = vsel %vm1684, %v1686, %v1682
    %v1688 = vmul.f32 1.0, %v1687
    %v1689 = vmul.f32 %v1664, %v1359
    %v1690 = vmul.f32 %v1642, %v1667
    %v1691 = vadd.f32 %v1689, %v1690
    %v1692 = vtanh.pop %v1691
    %v1693 = vmul.f32 %v1688, %v1692
    %v1694 = vpack.c.bf16 %v1693, %v1693
    %s1695 = scalar_lea.vmem %s2, 4
    %1696 = vst [vmem:[%s1695] sm:$0x1] %v1694
    %s1697 = scalar_lea.vmem %s0, 20
    %v1698 = vld [vmem:[%s1697] sm:$0xf]
    %v1699 = vunpack.c.l.bf16 %v1698
    %v1700 = vld [vmem:[#allocation4] sm:$0xff]
    %v1701 = vld [vmem:[#allocation4 + $0x8] sm:$0xff]
    %v1702 = vld [vmem:[#allocation4 + $0x10] sm:$0xff]
    %v1703 = vld [vmem:[#allocation4 + $0x18] sm:$0xff]
    %v1704 = vld [vmem:[#allocation4 + $0x20] sm:$0xff]
    %v1705 = vld [vmem:[#allocation4 + $0x28] sm:$0xff]
    %v1706 = vld [vmem:[#allocation4 + $0x30] sm:$0xff]
    %v1707 = vld [vmem:[#allocation4 + $0x38] sm:$0xff]
    %v1708 = vld [vmem:[#allocation4 + $0x40] sm:$0xff]
    %v1709 = vld [vmem:[#allocation4 + $0x48] sm:$0xff]
    %v1710 = vld [vmem:[#allocation4 + $0x50] sm:$0xff]
    %v1711 = vld [vmem:[#allocation4 + $0x58] sm:$0xff]
    %v1712 = vld [vmem:[#allocation4 + $0x60] sm:$0xff]
    %v1713 = vld [vmem:[#allocation4 + $0x68] sm:$0xff]
    %v1714 = vld [vmem:[#allocation4 + $0x70] sm:$0xff]
    %v1715 = vld [vmem:[#allocation4 + $0x78] sm:$0xff]
    %v1716 = vld [vmem:[#allocation4 + $0x80] sm:$0xff]
    %v1717 = vld [vmem:[#allocation4 + $0x88] sm:$0xff]
    %v1718 = vld [vmem:[#allocation4 + $0x90] sm:$0xff]
    %v1719 = vld [vmem:[#allocation4 + $0x98] sm:$0xff]
    %v1720 = vld [vmem:[#allocation4 + $0xa0] sm:$0xff]
    %v1721 = vld [vmem:[#allocation4 + $0xa8] sm:$0xff]
    %v1722 = vld [vmem:[#allocation4 + $0xb0] sm:$0xff]
    %v1723 = vld [vmem:[#allocation4 + $0xb8] sm:$0xff]
    %v1724 = vld [vmem:[#allocation4 + $0xc0] sm:$0xff]
    %v1725 = vld [vmem:[#allocation4 + $0xc8] sm:$0xff]
    %v1726 = vld [vmem:[#allocation4 + $0xd0] sm:$0xff]
    %v1727 = vld [vmem:[#allocation4 + $0xd8] sm:$0xff]
    %v1728 = vld [vmem:[#allocation4 + $0xe0] sm:$0xff]
    %v1729 = vld [vmem:[#allocation4 + $0xe8] sm:$0xff]
    %v1730 = vld [vmem:[#allocation4 + $0xf0] sm:$0xff]
    %v1731 = vld [vmem:[#allocation4 + $0xf8] sm:$0xff]
    %v1764 = vunpack.c.l.b16 %v1700
    %v1765 = vunpack.c.h.b16 %v1700
    %v1766 = vunpack.c.l.b16 %v1701
    %v1767 = vunpack.c.h.b16 %v1701
    %v1768 = vunpack.c.l.b16 %v1702
    %v1769 = vunpack.c.h.b16 %v1702
    %v1770 = vunpack.c.l.b16 %v1703
    %v1771 = vunpack.c.h.b16 %v1703
    %v1772 = vunpack.c.l.b16 %v1704
    %v1773 = vunpack.c.h.b16 %v1704
    %v1774 = vunpack.c.l.b16 %v1705
    %v1775 = vunpack.c.h.b16 %v1705
    %v1776 = vunpack.c.l.b16 %v1706
    %v1777 = vunpack.c.h.b16 %v1706
    %v1778 = vunpack.c.l.b16 %v1707
    %v1779 = vunpack.c.h.b16 %v1707
    %v1780 = vunpack.c.l.b16 %v1708
    %v1781 = vunpack.c.h.b16 %v1708
    %v1782 = vunpack.c.l.b16 %v1709
    %v1783 = vunpack.c.h.b16 %v1709
    %v1784 = vunpack.c.l.b16 %v1710
    %v1785 = vunpack.c.h.b16 %v1710
    %v1786 = vunpack.c.l.b16 %v1711
    %v1787 = vunpack.c.h.b16 %v1711
    %v1788 = vunpack.c.l.b16 %v1712
    %v1789 = vunpack.c.h.b16 %v1712
    %v1790 = vunpack.c.l.b16 %v1713
    %v1791 = vunpack.c.h.b16 %v1713
    %v1792 = vunpack.c.l.b16 %v1714
    %v1793 = vunpack.c.h.b16 %v1714
    %v1794 = vunpack.c.l.b16 %v1715
    %v1795 = vunpack.c.h.b16 %v1715
    %v1796 = vunpack.c.l.b16 %v1716
    %v1797 = vunpack.c.h.b16 %v1716
    %v1798 = vunpack.c.l.b16 %v1717
    %v1799 = vunpack.c.h.b16 %v1717
    %v1800 = vunpack.c.l.b16 %v1718
    %v1801 = vunpack.c.h.b16 %v1718
    %v1802 = vunpack.c.l.b16 %v1719
    %v1803 = vunpack.c.h.b16 %v1719
    %v1804 = vunpack.c.l.b16 %v1720
    %v1805 = vunpack.c.h.b16 %v1720
    %v1806 = vunpack.c.l.b16 %v1721
    %v1807 = vunpack.c.h.b16 %v1721
    %v1808 = vunpack.c.l.b16 %v1722
    %v1809 = vunpack.c.h.b16 %v1722
    %v1810 = vunpack.c.l.b16 %v1723
    %v1811 = vunpack.c.h.b16 %v1723
    %v1812 = vunpack.c.l.b16 %v1724
    %v1813 = vunpack.c.h.b16 %v1724
    %v1814 = vunpack.c.l.b16 %v1725
    %v1815 = vunpack.c.h.b16 %v1725
    %v1816 = vunpack.c.l.b16 %v1726
    %v1817 = vunpack.c.h.b16 %v1726
    %v1818 = vunpack.c.l.b16 %v1727
    %v1819 = vunpack.c.h.b16 %v1727
    %v1820 = vunpack.c.l.b16 %v1728
    %v1821 = vunpack.c.h.b16 %v1728
    %v1822 = vunpack.c.l.b16 %v1729
    %v1823 = vunpack.c.h.b16 %v1729
    %v1824 = vunpack.c.l.b16 %v1730
    %v1825 = vunpack.c.h.b16 %v1730
    %v1826 = vunpack.c.l.b16 %v1731
    %v1827 = vunpack.c.h.b16 %v1731
    %v1828 = vpack.c.b16 %v1768, %v1764
    %v1829 = vpack.c.b16 %v1769, %v1765
    %v1830 = vpack.c.b16 %v1770, %v1766
    %v1831 = vpack.c.b16 %v1771, %v1767
    %v1832 = vpack.c.b16 %v1776, %v1772
    %v1833 = vpack.c.b16 %v1777, %v1773
    %v1834 = vpack.c.b16 %v1778, %v1774
    %v1835 = vpack.c.b16 %v1779, %v1775
    %v1836 = vpack.c.b16 %v1784, %v1780
    %v1837 = vpack.c.b16 %v1785, %v1781
    %v1838 = vpack.c.b16 %v1786, %v1782
    %v1839 = vpack.c.b16 %v1787, %v1783
    %v1840 = vpack.c.b16 %v1792, %v1788
    %v1841 = vpack.c.b16 %v1793, %v1789
    %v1842 = vpack.c.b16 %v1794, %v1790
    %v1843 = vpack.c.b16 %v1795, %v1791
    %v1844 = vpack.c.b16 %v1800, %v1796
    %v1845 = vpack.c.b16 %v1801, %v1797
    %v1846 = vpack.c.b16 %v1802, %v1798
    %v1847 = vpack.c.b16 %v1803, %v1799
    %v1848 = vpack.c.b16 %v1808, %v1804
    %v1849 = vpack.c.b16 %v1809, %v1805
    %v1850 = vpack.c.b16 %v1810, %v1806
    %v1851 = vpack.c.b16 %v1811, %v1807
    %v1852 = vpack.c.b16 %v1816, %v1812
    %v1853 = vpack.c.b16 %v1817, %v1813
    %v1854 = vpack.c.b16 %v1818, %v1814
    %v1855 = vpack.c.b16 %v1819, %v1815
    %v1856 = vpack.c.b16 %v1824, %v1820
    %v1857 = vpack.c.b16 %v1825, %v1821
    %v1858 = vpack.c.b16 %v1826, %v1822
    %v1859 = vpack.c.b16 %v1827, %v1823
    %1892 = vmatpush.bf16.msra.mxu0 %v1856
    %1893 = vmatpush.bf16.msra.mxu0 %v1852
    %1894 = vmatpush.bf16.msra.mxu0 %v1848
    %1895 = vmatpush.bf16.msra.mxu0 %v1844
    %1896 = vmatpush.bf16.msra.mxu0 %v1840
    %1897 = vmatpush.bf16.msra.mxu0 %v1836
    %1898 = vmatpush.bf16.msra.mxu0 %v1832
    %1899 = vmatpush.bf16.msra.mxu0 %v1828
    %1900 = vmatmul.bf16.gmra.mxu0 %v1694
    %v1901 = vpop.f32.mrf.mxu0
    %v1902 = vadd.f32 0.0, %v1901
    %v1903 = vpop.f32.mrf.mxu0
    %1904 = vdwg.mxu0
    %1905 = vmatpush.bf16.msra.mxu0 %v1857
    %1906 = vmatpush.bf16.msra.mxu0 %v1853
    %1907 = vmatpush.bf16.msra.mxu0 %v1849
    %1908 = vmatpush.bf16.msra.mxu0 %v1845
    %1909 = vmatpush.bf16.msra.mxu0 %v1841
    %1910 = vmatpush.bf16.msra.mxu0 %v1837
    %1911 = vmatpush.bf16.msra.mxu0 %v1833
    %1912 = vmatpush.bf16.msra.mxu0 %v1829
    %1913 = vmatmul.bf16.gmra.mxu0 %v1694
    %v1914 = vpop.f32.mrf.mxu0
    %v1915 = vadd.f32 0.0, %v1914
    %v1916 = vpop.f32.mrf.mxu0
    %1917 = vdwg.mxu0
    %1918 = vmatpush.bf16.msra.mxu0 %v1858
    %1919 = vmatpush.bf16.msra.mxu0 %v1854
    %1920 = vmatpush.bf16.msra.mxu0 %v1850
    %1921 = vmatpush.bf16.msra.mxu0 %v1846
    %1922 = vmatpush.bf16.msra.mxu0 %v1842
    %1923 = vmatpush.bf16.msra.mxu0 %v1838
    %1924 = vmatpush.bf16.msra.mxu0 %v1834
    %1925 = vmatpush.bf16.msra.mxu0 %v1830
    %1926 = vmatmul.bf16.gmra.mxu0 %v1694
    %v1927 = vpop.f32.mrf.mxu0
    %v1928 = vadd.f32 0.0, %v1927
    %v1929 = vpop.f32.mrf.mxu0
    %1930 = vdwg.mxu0
    %1931 = vmatpush.bf16.msra.mxu0 %v1859
    %1932 = vmatpush.bf16.msra.mxu0 %v1855
    %1933 = vmatpush.bf16.msra.mxu0 %v1851
    %1934 = vmatpush.bf16.msra.mxu0 %v1847
    %1935 = vmatpush.bf16.msra.mxu0 %v1843
    %1936 = vmatpush.bf16.msra.mxu0 %v1839
    %1937 = vmatpush.bf16.msra.mxu0 %v1835
    %1938 = vmatpush.bf16.msra.mxu0 %v1831
    %1939 = vmatmul.bf16.gmra.mxu0 %v1694
    %v1940 = vpop.f32.mrf.mxu0
    %v1941 = vadd.f32 0.0, %v1940
    %v1942 = vpop.f32.mrf.mxu0
    %1943 = vdwg.mxu0
    %v1948 = vrot.slane %v1915, 6
    %v1949 = vrot.slane %v1928, 4
    %v1950 = vrot.slane %v1941, 2
    %v1951 = vsel %vm289, %v1902, %v1948
    %v1952 = vsel %vm291, %v1949, %v1950
    %v1953 = vsel %vm293, %v1951, %v1952
    %v1955 = vadd.f32 %v1699, %v1953
    %v1956 = vxor.u32 %v1955, 2147483648
    %v1957 = vmul.f32 %v1956, 1.442695
    %v1958 = vpow.pop %v1957
    %v1959 = vadd.f32 %v1958, 1.0
    %v1960 = vrcp.pop %v1959
    %v1961 = vmul.f32 %v1959, %v1960
    %v1962 = vsub.f32 1.0, %v1961
    %v1963 = vmul.f32 %v1960, %v1962
    %v1964 = vadd.f32 %v1960, %v1963
    %vm1965 = vweird.f32 %v1959
    %vm1966 = vweird.f32 %v1960
    %vm1967 = vmor %vm1965, %vm1966
    %v1968 = vsel %vm1967, %v1960, %v1964
    %v1969 = vand.u32 2147483647, %v1959
    %vm1970 = vcmp.eq.f32.partialorder %v1969, 8.507059e+37
    %v1971 = vand.u32 %v1959, 2147483648
    %v1972 = vor.u32 1.1754944e-38, %v1971
    %v1973 = vsel %vm1970, %v1972, %v1968
    %v1974 = vmul.f32 1.0, %v1973
    %v1976 = vrot.slane %v1955, 2
    %v1978 = vxor.u32 %v1976, 2147483648
    %v1979 = vmul.f32 %v1978, 1.442695
    %v1980 = vpow.pop %v1979
    %v1981 = vadd.f32 %v1980, 1.0
    %v1982 = vrcp.pop %v1981
    %v1983 = vmul.f32 %v1981, %v1982
    %v1984 = vsub.f32 1.0, %v1983
    %v1985 = vmul.f32 %v1982, %v1984
    %v1986 = vadd.f32 %v1982, %v1985
    %vm1987 = vweird.f32 %v1981
    %vm1988 = vweird.f32 %v1982
    %vm1989 = vmor %vm1987, %vm1988
    %v1990 = vsel %vm1989, %v1982, %v1986
    %v1991 = vand.u32 2147483647, %v1981
    %vm1992 = vcmp.eq.f32.partialorder %v1991, 8.507059e+37
    %v1993 = vand.u32 %v1981, 2147483648
    %v1994 = vor.u32 1.1754944e-38, %v1993
    %v1995 = vsel %vm1992, %v1994, %v1990
    %v1996 = vmul.f32 1.0, %v1995
    %v1997 = vrot.slane %v1955, 4
    %v1999 = vtanh.pop %v1997
    %v2000 = vrot.slane %v1955, 6
    %v2002 = vxor.u32 %v2000, 2147483648
    %v2003 = vmul.f32 %v2002, 1.442695
    %v2004 = vpow.pop %v2003
    %v2005 = vadd.f32 %v2004, 1.0
    %v2006 = vrcp.pop %v2005
    %v2007 = vmul.f32 %v2005, %v2006
    %v2008 = vsub.f32 1.0, %v2007
    %v2009 = vmul.f32 %v2006, %v2008
    %v2010 = vadd.f32 %v2006, %v2009
    %vm2011 = vweird.f32 %v2005
    %vm2012 = vweird.f32 %v2006
    %vm2013 = vmor %vm2011, %vm2012
    %v2014 = vsel %vm2013, %v2006, %v2010
    %v2015 = vand.u32 2147483647, %v2005
    %vm2016 = vcmp.eq.f32.partialorder %v2015, 8.507059e+37
    %v2017 = vand.u32 %v2005, 2147483648
    %v2018 = vor.u32 1.1754944e-38, %v2017
    %v2019 = vsel %vm2016, %v2018, %v2014
    %v2020 = vmul.f32 1.0, %v2019
    %v2021 = vmul.f32 %v1996, %v1691
    %v2022 = vmul.f32 %v1974, %v1999
    %v2023 = vadd.f32 %v2021, %v2022
    %v2024 = vtanh.pop %v2023
    %v2025 = vmul.f32 %v2020, %v2024
    %v2026 = vpack.c.bf16 %v2025, %v2025
    %s2027 = scalar_lea.vmem %s2, 5
    %2028 = vst [vmem:[%s2027] sm:$0x1] %v2026
    %s2029 = scalar_lea.vmem %s0, 24
    %v2030 = vld [vmem:[%s2029] sm:$0xf]
    %v2031 = vunpack.c.l.bf16 %v2030
    %v2032 = vld [vmem:[#allocation4] sm:$0xff]
    %v2033 = vld [vmem:[#allocation4 + $0x8] sm:$0xff]
    %v2034 = vld [vmem:[#allocation4 + $0x10] sm:$0xff]
    %v2035 = vld [vmem:[#allocation4 + $0x18] sm:$0xff]
    %v2036 = vld [vmem:[#allocation4 + $0x20] sm:$0xff]
    %v2037 = vld [vmem:[#allocation4 + $0x28] sm:$0xff]
    %v2038 = vld [vmem:[#allocation4 + $0x30] sm:$0xff]
    %v2039 = vld [vmem:[#allocation4 + $0x38] sm:$0xff]
    %v2040 = vld [vmem:[#allocation4 + $0x40] sm:$0xff]
    %v2041 = vld [vmem:[#allocation4 + $0x48] sm:$0xff]
    %v2042 = vld [vmem:[#allocation4 + $0x50] sm:$0xff]
    %v2043 = vld [vmem:[#allocation4 + $0x58] sm:$0xff]
    %v2044 = vld [vmem:[#allocation4 + $0x60] sm:$0xff]
    %v2045 = vld [vmem:[#allocation4 + $0x68] sm:$0xff]
    %v2046 = vld [vmem:[#allocation4 + $0x70] sm:$0xff]
    %v2047 = vld [vmem:[#allocation4 + $0x78] sm:$0xff]
    %v2048 = vld [vmem:[#allocation4 + $0x80] sm:$0xff]
    %v2049 = vld [vmem:[#allocation4 + $0x88] sm:$0xff]
    %v2050 = vld [vmem:[#allocation4 + $0x90] sm:$0xff]
    %v2051 = vld [vmem:[#allocation4 + $0x98] sm:$0xff]
    %v2052 = vld [vmem:[#allocation4 + $0xa0] sm:$0xff]
    %v2053 = vld [vmem:[#allocation4 + $0xa8] sm:$0xff]
    %v2054 = vld [vmem:[#allocation4 + $0xb0] sm:$0xff]
    %v2055 = vld [vmem:[#allocation4 + $0xb8] sm:$0xff]
    %v2056 = vld [vmem:[#allocation4 + $0xc0] sm:$0xff]
    %v2057 = vld [vmem:[#allocation4 + $0xc8] sm:$0xff]
    %v2058 = vld [vmem:[#allocation4 + $0xd0] sm:$0xff]
    %v2059 = vld [vmem:[#allocation4 + $0xd8] sm:$0xff]
    %v2060 = vld [vmem:[#allocation4 + $0xe0] sm:$0xff]
    %v2061 = vld [vmem:[#allocation4 + $0xe8] sm:$0xff]
    %v2062 = vld [vmem:[#allocation4 + $0xf0] sm:$0xff]
    %v2063 = vld [vmem:[#allocation4 + $0xf8] sm:$0xff]
    %v2096 = vunpack.c.l.b16 %v2032
    %v2097 = vunpack.c.h.b16 %v2032
    %v2098 = vunpack.c.l.b16 %v2033
    %v2099 = vunpack.c.h.b16 %v2033
    %v2100 = vunpack.c.l.b16 %v2034
    %v2101 = vunpack.c.h.b16 %v2034
    %v2102 = vunpack.c.l.b16 %v2035
    %v2103 = vunpack.c.h.b16 %v2035
    %v2104 = vunpack.c.l.b16 %v2036
    %v2105 = vunpack.c.h.b16 %v2036
    %v2106 = vunpack.c.l.b16 %v2037
    %v2107 = vunpack.c.h.b16 %v2037
    %v2108 = vunpack.c.l.b16 %v2038
    %v2109 = vunpack.c.h.b16 %v2038
    %v2110 = vunpack.c.l.b16 %v2039
    %v2111 = vunpack.c.h.b16 %v2039
    %v2112 = vunpack.c.l.b16 %v2040
    %v2113 = vunpack.c.h.b16 %v2040
    %v2114 = vunpack.c.l.b16 %v2041
    %v2115 = vunpack.c.h.b16 %v2041
    %v2116 = vunpack.c.l.b16 %v2042
    %v2117 = vunpack.c.h.b16 %v2042
    %v2118 = vunpack.c.l.b16 %v2043
    %v2119 = vunpack.c.h.b16 %v2043
    %v2120 = vunpack.c.l.b16 %v2044
    %v2121 = vunpack.c.h.b16 %v2044
    %v2122 = vunpack.c.l.b16 %v2045
    %v2123 = vunpack.c.h.b16 %v2045
    %v2124 = vunpack.c.l.b16 %v2046
    %v2125 = vunpack.c.h.b16 %v2046
    %v2126 = vunpack.c.l.b16 %v2047
    %v2127 = vunpack.c.h.b16 %v2047
    %v2128 = vunpack.c.l.b16 %v2048
    %v2129 = vunpack.c.h.b16 %v2048
    %v2130 = vunpack.c.l.b16 %v2049
    %v2131 = vunpack.c.h.b16 %v2049
    %v2132 = vunpack.c.l.b16 %v2050
    %v2133 = vunpack.c.h.b16 %v2050
    %v2134 = vunpack.c.l.b16 %v2051
    %v2135 = vunpack.c.h.b16 %v2051
    %v2136 = vunpack.c.l.b16 %v2052
    %v2137 = vunpack.c.h.b16 %v2052
    %v2138 = vunpack.c.l.b16 %v2053
    %v2139 = vunpack.c.h.b16 %v2053
    %v2140 = vunpack.c.l.b16 %v2054
    %v2141 = vunpack.c.h.b16 %v2054
    %v2142 = vunpack.c.l.b16 %v2055
    %v2143 = vunpack.c.h.b16 %v2055
    %v2144 = vunpack.c.l.b16 %v2056
    %v2145 = vunpack.c.h.b16 %v2056
    %v2146 = vunpack.c.l.b16 %v2057
    %v2147 = vunpack.c.h.b16 %v2057
    %v2148 = vunpack.c.l.b16 %v2058
    %v2149 = vunpack.c.h.b16 %v2058
    %v2150 = vunpack.c.l.b16 %v2059
    %v2151 = vunpack.c.h.b16 %v2059
    %v2152 = vunpack.c.l.b16 %v2060
    %v2153 = vunpack.c.h.b16 %v2060
    %v2154 = vunpack.c.l.b16 %v2061
    %v2155 = vunpack.c.h.b16 %v2061
    %v2156 = vunpack.c.l.b16 %v2062
    %v2157 = vunpack.c.h.b16 %v2062
    %v2158 = vunpack.c.l.b16 %v2063
    %v2159 = vunpack.c.h.b16 %v2063
    %v2160 = vpack.c.b16 %v2100, %v2096
    %v2161 = vpack.c.b16 %v2101, %v2097
    %v2162 = vpack.c.b16 %v2102, %v2098
    %v2163 = vpack.c.b16 %v2103, %v2099
    %v2164 = vpack.c.b16 %v2108, %v2104
    %v2165 = vpack.c.b16 %v2109, %v2105
    %v2166 = vpack.c.b16 %v2110, %v2106
    %v2167 = vpack.c.b16 %v2111, %v2107
    %v2168 = vpack.c.b16 %v2116, %v2112
    %v2169 = vpack.c.b16 %v2117, %v2113
    %v2170 = vpack.c.b16 %v2118, %v2114
    %v2171 = vpack.c.b16 %v2119, %v2115
    %v2172 = vpack.c.b16 %v2124, %v2120
    %v2173 = vpack.c.b16 %v2125, %v2121
    %v2174 = vpack.c.b16 %v2126, %v2122
    %v2175 = vpack.c.b16 %v2127, %v2123
    %v2176 = vpack.c.b16 %v2132, %v2128
    %v2177 = vpack.c.b16 %v2133, %v2129
    %v2178 = vpack.c.b16 %v2134, %v2130
    %v2179 = vpack.c.b16 %v2135, %v2131
    %v2180 = vpack.c.b16 %v2140, %v2136
    %v2181 = vpack.c.b16 %v2141, %v2137
    %v2182 = vpack.c.b16 %v2142, %v2138
    %v2183 = vpack.c.b16 %v2143, %v2139
    %v2184 = vpack.c.b16 %v2148, %v2144
    %v2185 = vpack.c.b16 %v2149, %v2145
    %v2186 = vpack.c.b16 %v2150, %v2146
    %v2187 = vpack.c.b16 %v2151, %v2147
    %v2188 = vpack.c.b16 %v2156, %v2152
    %v2189 = vpack.c.b16 %v2157, %v2153
    %v2190 = vpack.c.b16 %v2158, %v2154
    %v2191 = vpack.c.b16 %v2159, %v2155
    %2224 = vmatpush.bf16.msra.mxu0 %v2188
    %2225 = vmatpush.bf16.msra.mxu0 %v2184
    %2226 = vmatpush.bf16.msra.mxu0 %v2180
    %2227 = vmatpush.bf16.msra.mxu0 %v2176
    %2228 = vmatpush.bf16.msra.mxu0 %v2172
    %2229 = vmatpush.bf16.msra.mxu0 %v2168
    %2230 = vmatpush.bf16.msra.mxu0 %v2164
    %2231 = vmatpush.bf16.msra.mxu0 %v2160
    %2232 = vmatmul.bf16.gmra.mxu0 %v2026
    %v2233 = vpop.f32.mrf.mxu0
    %v2234 = vadd.f32 0.0, %v2233
    %v2235 = vpop.f32.mrf.mxu0
    %2236 = vdwg.mxu0
    %2237 = vmatpush.bf16.msra.mxu0 %v2189
    %2238 = vmatpush.bf16.msra.mxu0 %v2185
    %2239 = vmatpush.bf16.msra.mxu0 %v2181
    %2240 = vmatpush.bf16.msra.mxu0 %v2177
    %2241 = vmatpush.bf16.msra.mxu0 %v2173
    %2242 = vmatpush.bf16.msra.mxu0 %v2169
    %2243 = vmatpush.bf16.msra.mxu0 %v2165
    %2244 = vmatpush.bf16.msra.mxu0 %v2161
    %2245 = vmatmul.bf16.gmra.mxu0 %v2026
    %v2246 = vpop.f32.mrf.mxu0
    %v2247 = vadd.f32 0.0, %v2246
    %v2248 = vpop.f32.mrf.mxu0
    %2249 = vdwg.mxu0
    %2250 = vmatpush.bf16.msra.mxu0 %v2190
    %2251 = vmatpush.bf16.msra.mxu0 %v2186
    %2252 = vmatpush.bf16.msra.mxu0 %v2182
    %2253 = vmatpush.bf16.msra.mxu0 %v2178
    %2254 = vmatpush.bf16.msra.mxu0 %v2174
    %2255 = vmatpush.bf16.msra.mxu0 %v2170
    %2256 = vmatpush.bf16.msra.mxu0 %v2166
    %2257 = vmatpush.bf16.msra.mxu0 %v2162
    %2258 = vmatmul.bf16.gmra.mxu0 %v2026
    %v2259 = vpop.f32.mrf.mxu0
    %v2260 = vadd.f32 0.0, %v2259
    %v2261 = vpop.f32.mrf.mxu0
    %2262 = vdwg.mxu0
    %2263 = vmatpush.bf16.msra.mxu0 %v2191
    %2264 = vmatpush.bf16.msra.mxu0 %v2187
    %2265 = vmatpush.bf16.msra.mxu0 %v2183
    %2266 = vmatpush.bf16.msra.mxu0 %v2179
    %2267 = vmatpush.bf16.msra.mxu0 %v2175
    %2268 = vmatpush.bf16.msra.mxu0 %v2171
    %2269 = vmatpush.bf16.msra.mxu0 %v2167
    %2270 = vmatpush.bf16.msra.mxu0 %v2163
    %2271 = vmatmul.bf16.gmra.mxu0 %v2026
    %v2272 = vpop.f32.mrf.mxu0
    %v2273 = vadd.f32 0.0, %v2272
    %v2274 = vpop.f32.mrf.mxu0
    %2275 = vdwg.mxu0
    %v2280 = vrot.slane %v2247, 6
    %v2281 = vrot.slane %v2260, 4
    %v2282 = vrot.slane %v2273, 2
    %v2283 = vsel %vm289, %v2234, %v2280
    %v2284 = vsel %vm291, %v2281, %v2282
    %v2285 = vsel %vm293, %v2283, %v2284
    %v2287 = vadd.f32 %v2031, %v2285
    %v2288 = vxor.u32 %v2287, 2147483648
    %v2289 = vmul.f32 %v2288, 1.442695
    %v2290 = vpow.pop %v2289
    %v2291 = vadd.f32 %v2290, 1.0
    %v2292 = vrcp.pop %v2291
    %v2293 = vmul.f32 %v2291, %v2292
    %v2294 = vsub.f32 1.0, %v2293
    %v2295 = vmul.f32 %v2292, %v2294
    %v2296 = vadd.f32 %v2292, %v2295
    %vm2297 = vweird.f32 %v2291
    %vm2298 = vweird.f32 %v2292
    %vm2299 = vmor %vm2297, %vm2298
    %v2300 = vsel %vm2299, %v2292, %v2296
    %v2301 = vand.u32 2147483647, %v2291
    %vm2302 = vcmp.eq.f32.partialorder %v2301, 8.507059e+37
    %v2303 = vand.u32 %v2291, 2147483648
    %v2304 = vor.u32 1.1754944e-38, %v2303
    %v2305 = vsel %vm2302, %v2304, %v2300
    %v2306 = vmul.f32 1.0, %v2305
    %v2308 = vrot.slane %v2287, 2
    %v2310 = vxor.u32 %v2308, 2147483648
    %v2311 = vmul.f32 %v2310, 1.442695
    %v2312 = vpow.pop %v2311
    %v2313 = vadd.f32 %v2312, 1.0
    %v2314 = vrcp.pop %v2313
    %v2315 = vmul.f32 %v2313, %v2314
    %v2316 = vsub.f32 1.0, %v2315
    %v2317 = vmul.f32 %v2314, %v2316
    %v2318 = vadd.f32 %v2314, %v2317
    %vm2319 = vweird.f32 %v2313
    %vm2320 = vweird.f32 %v2314
    %vm2321 = vmor %vm2319, %vm2320
    %v2322 = vsel %vm2321, %v2314, %v2318
    %v2323 = vand.u32 2147483647, %v2313
    %vm2324 = vcmp.eq.f32.partialorder %v2323, 8.507059e+37
    %v2325 = vand.u32 %v2313, 2147483648
    %v2326 = vor.u32 1.1754944e-38, %v2325
    %v2327 = vsel %vm2324, %v2326, %v2322
    %v2328 = vmul.f32 1.0, %v2327
    %v2329 = vrot.slane %v2287, 4
    %v2331 = vtanh.pop %v2329
    %v2332 = vrot.slane %v2287, 6
    %v2334 = vxor.u32 %v2332, 2147483648
    %v2335 = vmul.f32 %v2334, 1.442695
    %v2336 = vpow.pop %v2335
    %v2337 = vadd.f32 %v2336, 1.0
    %v2338 = vrcp.pop %v2337
    %v2339 = vmul.f32 %v2337, %v2338
    %v2340 = vsub.f32 1.0, %v2339
    %v2341 = vmul.f32 %v2338, %v2340
    %v2342 = vadd.f32 %v2338, %v2341
    %vm2343 = vweird.f32 %v2337
    %vm2344 = vweird.f32 %v2338
    %vm2345 = vmor %vm2343, %vm2344
    %v2346 = vsel %vm2345, %v2338, %v2342
    %v2347 = vand.u32 2147483647, %v2337
    %vm2348 = vcmp.eq.f32.partialorder %v2347, 8.507059e+37
    %v2349 = vand.u32 %v2337, 2147483648
    %v2350 = vor.u32 1.1754944e-38, %v2349
    %v2351 = vsel %vm2348, %v2350, %v2346
    %v2352 = vmul.f32 1.0, %v2351
    %v2353 = vmul.f32 %v2328, %v2023
    %v2354 = vmul.f32 %v2306, %v2331
    %v2355 = vadd.f32 %v2353, %v2354
    %v2356 = vtanh.pop %v2355
    %v2357 = vmul.f32 %v2352, %v2356
    %v2358 = vpack.c.bf16 %v2357, %v2357
    %s2359 = scalar_lea.vmem %s2, 6
    %2360 = vst [vmem:[%s2359] sm:$0x1] %v2358
    %s2361 = scalar_lea.vmem %s0, 28
    %v2362 = vld [vmem:[%s2361] sm:$0xf]
    %v2363 = vunpack.c.l.bf16 %v2362
    %v2364 = vld [vmem:[#allocation4] sm:$0xff]
    %v2365 = vld [vmem:[#allocation4 + $0x8] sm:$0xff]
    %v2366 = vld [vmem:[#allocation4 + $0x10] sm:$0xff]
    %v2367 = vld [vmem:[#allocation4 + $0x18] sm:$0xff]
    %v2368 = vld [vmem:[#allocation4 + $0x20] sm:$0xff]
    %v2369 = vld [vmem:[#allocation4 + $0x28] sm:$0xff]
    %v2370 = vld [vmem:[#allocation4 + $0x30] sm:$0xff]
    %v2371 = vld [vmem:[#allocation4 + $0x38] sm:$0xff]
    %v2372 = vld [vmem:[#allocation4 + $0x40] sm:$0xff]
    %v2373 = vld [vmem:[#allocation4 + $0x48] sm:$0xff]
    %v2374 = vld [vmem:[#allocation4 + $0x50] sm:$0xff]
    %v2375 = vld [vmem:[#allocation4 + $0x58] sm:$0xff]
    %v2376 = vld [vmem:[#allocation4 + $0x60] sm:$0xff]
    %v2377 = vld [vmem:[#allocation4 + $0x68] sm:$0xff]
    %v2378 = vld [vmem:[#allocation4 + $0x70] sm:$0xff]
    %v2379 = vld [vmem:[#allocation4 + $0x78] sm:$0xff]
    %v2380 = vld [vmem:[#allocation4 + $0x80] sm:$0xff]
    %v2381 = vld [vmem:[#allocation4 + $0x88] sm:$0xff]
    %v2382 = vld [vmem:[#allocation4 + $0x90] sm:$0xff]
    %v2383 = vld [vmem:[#allocation4 + $0x98] sm:$0xff]
    %v2384 = vld [vmem:[#allocation4 + $0xa0] sm:$0xff]
    %v2385 = vld [vmem:[#allocation4 + $0xa8] sm:$0xff]
    %v2386 = vld [vmem:[#allocation4 + $0xb0] sm:$0xff]
    %v2387 = vld [vmem:[#allocation4 + $0xb8] sm:$0xff]
    %v2388 = vld [vmem:[#allocation4 + $0xc0] sm:$0xff]
    %v2389 = vld [vmem:[#allocation4 + $0xc8] sm:$0xff]
    %v2390 = vld [vmem:[#allocation4 + $0xd0] sm:$0xff]
    %v2391 = vld [vmem:[#allocation4 + $0xd8] sm:$0xff]
    %v2392 = vld [vmem:[#allocation4 + $0xe0] sm:$0xff]
    %v2393 = vld [vmem:[#allocation4 + $0xe8] sm:$0xff]
    %v2394 = vld [vmem:[#allocation4 + $0xf0] sm:$0xff]
    %v2395 = vld [vmem:[#allocation4 + $0xf8] sm:$0xff]
    %v2428 = vunpack.c.l.b16 %v2364
    %v2429 = vunpack.c.h.b16 %v2364
    %v2430 = vunpack.c.l.b16 %v2365
    %v2431 = vunpack.c.h.b16 %v2365
    %v2432 = vunpack.c.l.b16 %v2366
    %v2433 = vunpack.c.h.b16 %v2366
    %v2434 = vunpack.c.l.b16 %v2367
    %v2435 = vunpack.c.h.b16 %v2367
    %v2436 = vunpack.c.l.b16 %v2368
    %v2437 = vunpack.c.h.b16 %v2368
    %v2438 = vunpack.c.l.b16 %v2369
    %v2439 = vunpack.c.h.b16 %v2369
    %v2440 = vunpack.c.l.b16 %v2370
    %v2441 = vunpack.c.h.b16 %v2370
    %v2442 = vunpack.c.l.b16 %v2371
    %v2443 = vunpack.c.h.b16 %v2371
    %v2444 = vunpack.c.l.b16 %v2372
    %v2445 = vunpack.c.h.b16 %v2372
    %v2446 = vunpack.c.l.b16 %v2373
    %v2447 = vunpack.c.h.b16 %v2373
    %v2448 = vunpack.c.l.b16 %v2374
    %v2449 = vunpack.c.h.b16 %v2374
    %v2450 = vunpack.c.l.b16 %v2375
    %v2451 = vunpack.c.h.b16 %v2375
    %v2452 = vunpack.c.l.b16 %v2376
    %v2453 = vunpack.c.h.b16 %v2376
    %v2454 = vunpack.c.l.b16 %v2377
    %v2455 = vunpack.c.h.b16 %v2377
    %v2456 = vunpack.c.l.b16 %v2378
    %v2457 = vunpack.c.h.b16 %v2378
    %v2458 = vunpack.c.l.b16 %v2379
    %v2459 = vunpack.c.h.b16 %v2379
    %v2460 = vunpack.c.l.b16 %v2380
    %v2461 = vunpack.c.h.b16 %v2380
    %v2462 = vunpack.c.l.b16 %v2381
    %v2463 = vunpack.c.h.b16 %v2381
    %v2464 = vunpack.c.l.b16 %v2382
    %v2465 = vunpack.c.h.b16 %v2382
    %v2466 = vunpack.c.l.b16 %v2383
    %v2467 = vunpack.c.h.b16 %v2383
    %v2468 = vunpack.c.l.b16 %v2384
    %v2469 = vunpack.c.h.b16 %v2384
    %v2470 = vunpack.c.l.b16 %v2385
    %v2471 = vunpack.c.h.b16 %v2385
    %v2472 = vunpack.c.l.b16 %v2386
    %v2473 = vunpack.c.h.b16 %v2386
    %v2474 = vunpack.c.l.b16 %v2387
    %v2475 = vunpack.c.h.b16 %v2387
    %v2476 = vunpack.c.l.b16 %v2388
    %v2477 = vunpack.c.h.b16 %v2388
    %v2478 = vunpack.c.l.b16 %v2389
    %v2479 = vunpack.c.h.b16 %v2389
    %v2480 = vunpack.c.l.b16 %v2390
    %v2481 = vunpack.c.h.b16 %v2390
    %v2482 = vunpack.c.l.b16 %v2391
    %v2483 = vunpack.c.h.b16 %v2391
    %v2484 = vunpack.c.l.b16 %v2392
    %v2485 = vunpack.c.h.b16 %v2392
    %v2486 = vunpack.c.l.b16 %v2393
    %v2487 = vunpack.c.h.b16 %v2393
    %v2488 = vunpack.c.l.b16 %v2394
    %v2489 = vunpack.c.h.b16 %v2394
    %v2490 = vunpack.c.l.b16 %v2395
    %v2491 = vunpack.c.h.b16 %v2395
    %v2492 = vpack.c.b16 %v2432, %v2428
    %v2493 = vpack.c.b16 %v2433, %v2429
    %v2494 = vpack.c.b16 %v2434, %v2430
    %v2495 = vpack.c.b16 %v2435, %v2431
    %v2496 = vpack.c.b16 %v2440, %v2436
    %v2497 = vpack.c.b16 %v2441, %v2437
    %v2498 = vpack.c.b16 %v2442, %v2438
    %v2499 = vpack.c.b16 %v2443, %v2439
    %v2500 = vpack.c.b16 %v2448, %v2444
    %v2501 = vpack.c.b16 %v2449, %v2445
    %v2502 = vpack.c.b16 %v2450, %v2446
    %v2503 = vpack.c.b16 %v2451, %v2447
    %v2504 = vpack.c.b16 %v2456, %v2452
    %v2505 = vpack.c.b16 %v2457, %v2453
    %v2506 = vpack.c.b16 %v2458, %v2454
    %v2507 = vpack.c.b16 %v2459, %v2455
    %v2508 = vpack.c.b16 %v2464, %v2460
    %v2509 = vpack.c.b16 %v2465, %v2461
    %v2510 = vpack.c.b16 %v2466, %v2462
    %v2511 = vpack.c.b16 %v2467, %v2463
    %v2512 = vpack.c.b16 %v2472, %v2468
    %v2513 = vpack.c.b16 %v2473, %v2469
    %v2514 = vpack.c.b16 %v2474, %v2470
    %v2515 = vpack.c.b16 %v2475, %v2471
    %v2516 = vpack.c.b16 %v2480, %v2476
    %v2517 = vpack.c.b16 %v2481, %v2477
    %v2518 = vpack.c.b16 %v2482, %v2478
    %v2519 = vpack.c.b16 %v2483, %v2479
    %v2520 = vpack.c.b16 %v2488, %v2484
    %v2521 = vpack.c.b16 %v2489, %v2485
    %v2522 = vpack.c.b16 %v2490, %v2486
    %v2523 = vpack.c.b16 %v2491, %v2487
    %2556 = vmatpush.bf16.msra.mxu0 %v2520
    %2557 = vmatpush.bf16.msra.mxu0 %v2516
    %2558 = vmatpush.bf16.msra.mxu0 %v2512
    %2559 = vmatpush.bf16.msra.mxu0 %v2508
    %2560 = vmatpush.bf16.msra.mxu0 %v2504
    %2561 = vmatpush.bf16.msra.mxu0 %v2500
    %2562 = vmatpush.bf16.msra.mxu0 %v2496
    %2563 = vmatpush.bf16.msra.mxu0 %v2492
    %2564 = vmatmul.bf16.gmra.mxu0 %v2358
    %v2565 = vpop.f32.mrf.mxu0
    %v2566 = vadd.f32 0.0, %v2565
    %v2567 = vpop.f32.mrf.mxu0
    %2568 = vdwg.mxu0
    %2569 = vmatpush.bf16.msra.mxu0 %v2521
    %2570 = vmatpush.bf16.msra.mxu0 %v2517
    %2571 = vmatpush.bf16.msra.mxu0 %v2513
    %2572 = vmatpush.bf16.msra.mxu0 %v2509
    %2573 = vmatpush.bf16.msra.mxu0 %v2505
    %2574 = vmatpush.bf16.msra.mxu0 %v2501
    %2575 = vmatpush.bf16.msra.mxu0 %v2497
    %2576 = vmatpush.bf16.msra.mxu0 %v2493
    %2577 = vmatmul.bf16.gmra.mxu0 %v2358
    %v2578 = vpop.f32.mrf.mxu0
    %v2579 = vadd.f32 0.0, %v2578
    %v2580 = vpop.f32.mrf.mxu0
    %2581 = vdwg.mxu0
    %2582 = vmatpush.bf16.msra.mxu0 %v2522
    %2583 = vmatpush.bf16.msra.mxu0 %v2518
    %2584 = vmatpush.bf16.msra.mxu0 %v2514
    %2585 = vmatpush.bf16.msra.mxu0 %v2510
    %2586 = vmatpush.bf16.msra.mxu0 %v2506
    %2587 = vmatpush.bf16.msra.mxu0 %v2502
    %2588 = vmatpush.bf16.msra.mxu0 %v2498
    %2589 = vmatpush.bf16.msra.mxu0 %v2494
    %2590 = vmatmul.bf16.gmra.mxu0 %v2358
    %v2591 = vpop.f32.mrf.mxu0
    %v2592 = vadd.f32 0.0, %v2591
    %v2593 = vpop.f32.mrf.mxu0
    %2594 = vdwg.mxu0
    %2595 = vmatpush.bf16.msra.mxu0 %v2523
    %2596 = vmatpush.bf16.msra.mxu0 %v2519
    %2597 = vmatpush.bf16.msra.mxu0 %v2515
    %2598 = vmatpush.bf16.msra.mxu0 %v2511
    %2599 = vmatpush.bf16.msra.mxu0 %v2507
    %2600 = vmatpush.bf16.msra.mxu0 %v2503
    %2601 = vmatpush.bf16.msra.mxu0 %v2499
    %2602 = vmatpush.bf16.msra.mxu0 %v2495
    %2603 = vmatmul.bf16.gmra.mxu0 %v2358
    %v2604 = vpop.f32.mrf.mxu0
    %v2605 = vadd.f32 0.0, %v2604
    %v2606 = vpop.f32.mrf.mxu0
    %2607 = vdwg.mxu0
    %v2612 = vrot.slane %v2579, 6
    %v2613 = vrot.slane %v2592, 4
    %v2614 = vrot.slane %v2605, 2
    %v2615 = vsel %vm289, %v2566, %v2612
    %v2616 = vsel %vm291, %v2613, %v2614
    %v2617 = vsel %vm293, %v2615, %v2616
    %v2619 = vadd.f32 %v2363, %v2617
    %v2620 = vxor.u32 %v2619, 2147483648
    %v2621 = vmul.f32 %v2620, 1.442695
    %v2622 = vpow.pop %v2621
    %v2623 = vadd.f32 %v2622, 1.0
    %v2624 = vrcp.pop %v2623
    %v2625 = vmul.f32 %v2623, %v2624
    %v2626 = vsub.f32 1.0, %v2625
    %v2627 = vmul.f32 %v2624, %v2626
    %v2628 = vadd.f32 %v2624, %v2627
    %vm2629 = vweird.f32 %v2623
    %vm2630 = vweird.f32 %v2624
    %vm2631 = vmor %vm2629, %vm2630
    %v2632 = vsel %vm2631, %v2624, %v2628
    %v2633 = vand.u32 2147483647, %v2623
    %vm2634 = vcmp.eq.f32.partialorder %v2633, 8.507059e+37
    %v2635 = vand.u32 %v2623, 2147483648
    %v2636 = vor.u32 1.1754944e-38, %v2635
    %v2637 = vsel %vm2634, %v2636, %v2632
    %v2638 = vmul.f32 1.0, %v2637
    %v2640 = vrot.slane %v2619, 2
    %v2642 = vxor.u32 %v2640, 2147483648
    %v2643 = vmul.f32 %v2642, 1.442695
    %v2644 = vpow.pop %v2643
    %v2645 = vadd.f32 %v2644, 1.0
    %v2646 = vrcp.pop %v2645
    %v2647 = vmul.f32 %v2645, %v2646
    %v2648 = vsub.f32 1.0, %v2647
    %v2649 = vmul.f32 %v2646, %v2648
    %v2650 = vadd.f32 %v2646, %v2649
    %vm2651 = vweird.f32 %v2645
    %vm2652 = vweird.f32 %v2646
    %vm2653 = vmor %vm2651, %vm2652
    %v2654 = vsel %vm2653, %v2646, %v2650
    %v2655 = vand.u32 2147483647, %v2645
    %vm2656 = vcmp.eq.f32.partialorder %v2655, 8.507059e+37
    %v2657 = vand.u32 %v2645, 2147483648
    %v2658 = vor.u32 1.1754944e-38, %v2657
    %v2659 = vsel %vm2656, %v2658, %v2654
    %v2660 = vmul.f32 1.0, %v2659
    %v2661 = vrot.slane %v2619, 4
    %v2663 = vtanh.pop %v2661
    %v2664 = vrot.slane %v2619, 6
    %v2666 = vxor.u32 %v2664, 2147483648
    %v2667 = vmul.f32 %v2666, 1.442695
    %v2668 = vpow.pop %v2667
    %v2669 = vadd.f32 %v2668, 1.0
    %v2670 = vrcp.pop %v2669
    %v2671 = vmul.f32 %v2669, %v2670
    %v2672 = vsub.f32 1.0, %v2671
    %v2673 = vmul.f32 %v2670, %v2672
    %v2674 = vadd.f32 %v2670, %v2673
    %vm2675 = vweird.f32 %v2669
    %vm2676 = vweird.f32 %v2670
    %vm2677 = vmor %vm2675, %vm2676
    %v2678 = vsel %vm2677, %v2670, %v2674
    %v2679 = vand.u32 2147483647, %v2669
    %vm2680 = vcmp.eq.f32.partialorder %v2679, 8.507059e+37
    %v2681 = vand.u32 %v2669, 2147483648
    %v2682 = vor.u32 1.1754944e-38, %v2681
    %v2683 = vsel %vm2680, %v2682, %v2678
    %v2684 = vmul.f32 1.0, %v2683
    %v2685 = vmul.f32 %v2660, %v2355
    %v2686 = vmul.f32 %v2638, %v2663
    %v2687 = vadd.f32 %v2685, %v2686
    %v2688 = vtanh.pop %v2687
    %v2689 = vmul.f32 %v2684, %v2688
    %v2690 = vpack.c.bf16 %v2689, %v2689
    %s2691 = scalar_lea.vmem %s2, 7
    %2692 = vst [vmem:[%s2691] sm:$0x1] %v2690
    %2693 = vst [vmem:[#allocation2] sm:$0x3] %v2689
    %2694 = vst [vmem:[#allocation3] sm:$0x3] %v2687
    // Predicated region
    $region18: #{lstm_model.5} parent=1 // pred_check
      _
    $region19: #{lstm_model.5} parent=1 // pred_check_branch
      %2696 = sbr.rel (0) target = $region21
    $region20: #{lstm_model.5} parent=1 // pred_region
      _
    $region21: #{lstm_model.5} parent=1 // pred_fallthru
      _
    // Predicated region
    $region22: #{lstm_model.5} parent=1 // pred_check
      _
    $region23: #{lstm_model.5} parent=1 // pred_check_branch
      %2698 = sbr.rel (0) target = $region25
    $region24: #{lstm_model.5} parent=1 // pred_region
      _
    $region25: #{lstm_model.5} parent=1 // pred_fallthru
      _
    %2699 = vsyncpa [#allocation5], 1

</llo_original>
